<compile_context>
chip_gen: v7x
topology: tpu7x:2x2x1
jax: 0.10.0
libtpu: 0.0.40
codegen_flags: <defaults>
</compile_context>

<pallas_src>
import functools

import jax
import jax.numpy as jnp
from jax.experimental import pallas as pl
from jax.experimental.pallas import tpu as pltpu


def _ceil8(n):
    return ((n + 7) // 8) * 8


def onedcnn_kernel(x_ref, w1_ref, w2_ref, vfc1_ref, wfc2_ref, bias_ref,
                   out_ref, y1_s, y2_s, *,
                   B, K, C1, C2, L1, L2, P2, LPX, LP1, LP2):
    H = vfc1_ref.shape[-1]
    NCP = out_ref.shape[-1]

    # Packed biases, loaded once: row 0 = conv1, 1 = conv2, 2 = fc1, 3 = fc2.
    bias = bias_ref[...]
    b1 = bias[0:1, :C1]
    b2 = bias[1:2, :C2]
    bfc1 = bias[2:3, :H]
    bfc2 = bias[3:4, :NCP]

    # ---- conv1 + ReLU: K accumulated dots over shifted sublane windows of x.
    for b in range(B):
        acc = jnp.zeros((L1, C1), jnp.float32)
        for k in range(K):
            xw = x_ref[pl.ds(b * LPX + k, L1), :]                 # (L1, Cin)
            acc = acc + jnp.dot(xw, w1_ref[k],
                                preferred_element_type=jnp.float32)
        y1_s[pl.ds(b * LP1, L1), :] = jnp.maximum(acc + b1, 0.0)  # 8-aligned slab

    # ---- conv2 + ReLU, maxpool(2) fused into stride-2 sublane tap reads.
    for b in range(B):
        acc = jnp.zeros((L2, C2), jnp.float32)
        for k in range(K):
            base = b * LP1 + 2 * k
            ev = y1_s[pl.ds(base, L2, stride=2), :]               # (L2, C1)
            od = y1_s[pl.ds(base + 1, L2, stride=2), :]           # (L2, C1)
            acc = acc + jnp.dot(jnp.maximum(ev, od), w2_ref[k],
                                preferred_element_type=jnp.float32)
        y2_s[pl.ds(b * LP2, L2), :] = jnp.maximum(acc + b2, 0.0)  # 8-aligned slab

    # ---- fc1 + ReLU: maxpool(2) fused with the flatten; P2 accumulated
    # (B, C2) @ (C2, H) dots.  Cross-batch gather uses the 8-aligned stride LP2.
    hacc = jnp.zeros((B, H), jnp.float32)
    for t in range(P2):
        ev = y2_s[pl.ds(2 * t, B, stride=LP2), :]                 # (B, C2)
        od = y2_s[pl.ds(2 * t + 1, B, stride=LP2), :]             # (B, C2)
        hacc = hacc + jnp.dot(jnp.maximum(ev, od), vfc1_ref[t],
                              preferred_element_type=jnp.float32)
    h = jnp.maximum(hacc + bfc1, 0.0)                             # (B, H)

    # ---- fc2: weights pre-padded to 128 lanes -> one lane-dense store.
    out_ref[...] = jnp.dot(h, wfc2_ref[...],
                           preferred_element_type=jnp.float32) + bfc2


def prepare_params(params):
    """One-time parameter preprocessing (hoisted out of the per-call forward)."""
    w1, b1, w2, b2, wfc1, bfc1, wfc2, bfc2 = params
    C1, Cin, K = w1.shape
    C2 = w2.shape[0]
    H, F = wfc1.shape
    NC = wfc2.shape[0]
    P2 = F // C2
    NC_PAD = ((NC + 127) // 128) * 128
    LANES = max(128, C1, C2, H, NC_PAD)

    # Per-tap weight blocks: w*_taps[k][i, o] = w[o, i, k].
    w1_taps = jnp.transpose(w1, (2, 1, 0)).astype(jnp.float32)        # (K, Cin, C1)
    w2_taps = jnp.transpose(w2, (2, 1, 0)).astype(jnp.float32)        # (K, C1, C2)
    # PyTorch flattens pooled2 as (C2, P2) C-order (index c*P2 + t); split the
    # fc1 weight into per-timestep (C2, H) blocks for the accumulated dots.
    vfc1 = jnp.transpose(wfc1.reshape(H, C2, P2),
                         (2, 1, 0)).astype(jnp.float32)               # (P2, C2, H)
    wfc2_pad = jnp.zeros((H, NC_PAD), jnp.float32).at[:, :NC].set(
        jnp.transpose(wfc2, (1, 0)).astype(jnp.float32))
    bias_pack = jnp.zeros((8, LANES), jnp.float32)
    bias_pack = bias_pack.at[0, :C1].set(b1.astype(jnp.float32))
    bias_pack = bias_pack.at[1, :C2].set(b2.astype(jnp.float32))
    bias_pack = bias_pack.at[2, :H].set(bfc1.astype(jnp.float32))
    bias_pack = bias_pack.at[3, :NC].set(bfc2.astype(jnp.float32))

    prepped = dict(w1_taps=w1_taps, w2_taps=w2_taps, vfc1=vfc1,
                   wfc2=wfc2_pad, bias=bias_pack)
    meta = dict(K=K, Cin=Cin, C1=C1, C2=C2, H=H, NC=NC, NC_PAD=NC_PAD, P2=P2)
    return prepped, meta


def make_onedcnn_forward(params):
    prepped, meta = prepare_params(params)
    K, C1, C2, P2 = meta["K"], meta["C1"], meta["C2"], meta["P2"]
    NC, NC_PAD = meta["NC"], meta["NC_PAD"]

    @jax.jit
    def forward(x_ncl):
        B, Cin, L = x_ncl.shape
        L1 = L - K + 1
        P1 = L1 // 2
        L2 = P1 - K + 1
        assert L1 % 2 == 0 and L2 % 2 == 0, "pool fusion assumes even lengths"
        assert L2 // 2 == P2
        LPX = _ceil8(L)
        LP1 = _ceil8(L1)
        LP2 = _ceil8(L2)

        # Only per-call layout work: NCL -> (B*LPX, Cin) row-major input.
        x_t = jnp.transpose(x_ncl, (0, 2, 1)).astype(jnp.float32)    # (B, L, Cin)
        if LPX != L:
            x_t = jnp.pad(x_t, ((0, 0), (0, LPX - L), (0, 0)))
        x_flat = x_t.reshape(B * LPX, Cin)

        kernel = functools.partial(
            onedcnn_kernel, B=B, K=K, C1=C1, C2=C2,
            L1=L1, L2=L2, P2=P2, LPX=LPX, LP1=LP1, LP2=LP2)

        vmem = pl.BlockSpec(memory_space=pltpu.MemorySpace.VMEM)
        out_pad = pl.pallas_call(
            kernel,
            out_shape=jax.ShapeDtypeStruct((B, NC_PAD), jnp.float32),
            in_specs=[vmem] * 6,
            out_specs=vmem,
            scratch_shapes=[pltpu.VMEM((B * LP1, C1), jnp.float32),
                            pltpu.VMEM((B * LP2, C2), jnp.float32)],
        )(x_flat, prepped["w1_taps"], prepped["w2_taps"],
          prepped["vfc1"], prepped["wfc2"], prepped["bias"])
        return out_pad[:, :NC]

    return forward


def reference_forward(x, params):
    """Pure-JAX reference mirroring the PyTorch forward exactly."""
    w1, b1, w2, b2, wfc1, bfc1, wfc2, bfc2 = params

    def conv1d(x, w, b):  # x: (B, Cin, L), w: (Cout, Cin, K)
        K = w.shape[2]
        Lout = x.shape[2] - K + 1
        y = jnp.zeros((x.shape[0], w.shape[0], Lout), jnp.float32)
        for k in range(K):
            y = y + jnp.einsum('oi,bil->bol', w[:, :, k], x[:, :, k:k + Lout])
        return y + b[None, :, None]

    def maxpool2(x):
        B, C, L = x.shape
        P = L // 2
        return x[:, :, :2 * P].reshape(B, C, P, 2).max(-1)

    h = maxpool2(jax.nn.relu(conv1d(x, w1, b1)))
    h = maxpool2(jax.nn.relu(conv1d(h, w2, b2)))
    h = h.reshape(x.shape[0], -1)
    h = jax.nn.relu(h @ wfc1.T + bfc1)
    return h @ wfc2.T + bfc2


def init_params(key, input_size, num_classes, K=5):
    L1 = input_size - K + 1
    P1 = L1 // 2
    L2 = P1 - K + 1
    P2 = L2 // 2
    ks = jax.random.split(key, 8)

    def u(k, shape, fan_in):  # PyTorch-style uniform(-1/sqrt(fan_in), 1/sqrt(fan_in))
        bound = 1.0 / (fan_in ** 0.5)
        return jax.random.uniform(k, shape, jnp.float32, -bound, bound)

    w1 = u(ks[0], (16, 4, K), 4 * K)
    b1 = u(ks[1], (16,), 4 * K)
    w2 = u(ks[2], (32, 16, K), 16 * K)
    b2 = u(ks[3], (32,), 16 * K)
    wfc1 = u(ks[4], (128, 32 * P2), 32 * P2)
    bfc1 = u(ks[5], (128,), 32 * P2)
    wfc2 = u(ks[6], (num_classes, 128), 128)
    bfc2 = u(ks[7], (num_classes,), 128)
    return (w1, b1, w2, b2, wfc1, bfc1, wfc2, bfc2)


if __name__ == "__main__":
    INPUT_SIZE = 64
    NUM_CLASSES = 8
    BATCH = 2

    key = jax.random.PRNGKey(0)
    kx, kp = jax.random.split(key)
    x = jax.random.normal(kx, (BATCH, 4, INPUT_SIZE), jnp.float32)
    params = init_params(kp, INPUT_SIZE, NUM_CLASSES)

    forward = make_onedcnn_forward(params)
    out = jax.block_until_ready(forward(x))
    ref = jax.block_until_ready(reference_forward(x, params))

    assert out.shape == (BATCH, NUM_CLASSES)
    assert jnp.allclose(out, ref, rtol=1e-3, atol=1e-3)
    print("KERNEL_OK")
</pallas_src>

<mosaic_0001>
module attributes {stable_mosaic.version = 11 : i64} {
  func.func @onedcnn_kernel(%arg0: memref<128x4xf32, #tpu.memory_space<vmem>>, %arg1: memref<5x4x16xf32, #tpu.memory_space<vmem>>, %arg2: memref<5x16x32xf32, #tpu.memory_space<vmem>>, %arg3: memref<13x32x128xf32, #tpu.memory_space<vmem>>, %arg4: memref<128x128xf32, #tpu.memory_space<vmem>>, %arg5: memref<8x128xf32, #tpu.memory_space<vmem>>, %arg6: memref<2x128xf32, #tpu.memory_space<vmem>>, %arg7: memref<128x16xf32, #tpu.memory_space<vmem>>, %arg8: memref<64x32xf32, #tpu.memory_space<vmem>>) attributes {dimension_semantics = [], scalar_prefetch = 0 : i64, scratch_operands = 2 : i64, tpu.core_type = #tpu.core_type<tc>} {
    %c0 = arith.constant 0 : index
    %c0_0 = arith.constant 0 : index
    %0 = vector.load %arg5[%c0, %c0_0] : memref<8x128xf32, #tpu.memory_space<vmem>>, vector<8x128xf32>
    %1 = vector.extract_strided_slice %0 {offsets = [0, 0], sizes = [1, 16], strides = [1, 1]} : vector<8x128xf32> to vector<1x16xf32>
    %2 = vector.extract_strided_slice %0 {offsets = [1, 0], sizes = [1, 32], strides = [1, 1]} : vector<8x128xf32> to vector<1x32xf32>
    %3 = vector.extract_strided_slice %0 {offsets = [2, 0], sizes = [1, 128], strides = [1, 1]} : vector<8x128xf32> to vector<1x128xf32>
    %4 = vector.extract_strided_slice %0 {offsets = [3, 0], sizes = [1, 128], strides = [1, 1]} : vector<8x128xf32> to vector<1x128xf32>
    %cst = arith.constant 0.000000e+00 : f32
    %5 = vector.broadcast %cst : f32 to vector<60x16xf32>
    %c0_1 = arith.constant 0 : index
    %c0_2 = arith.constant 0 : index
    %6 = vector.load %arg0[%c0_1, %c0_2] : memref<128x4xf32, #tpu.memory_space<vmem>>, vector<60x4xf32>
    %c0_3 = arith.constant 0 : index
    %c0_4 = arith.constant 0 : index
    %c0_5 = arith.constant 0 : index
    %7 = vector.load %arg1[%c0_3, %c0_4, %c0_5] : memref<5x4x16xf32, #tpu.memory_space<vmem>>, vector<1x4x16xf32>
    %8 = vector.shape_cast %7 : vector<1x4x16xf32> to vector<4x16xf32>
    %cst_6 = arith.constant dense<0.000000e+00> : vector<60x16xf32>
    %9 = tpu.matmul %6, %8, %cst_6 {dimension_numbers = #tpu.dot_dimension_numbers<[1], [0], [0], [1], [0, 0, 1, 1], [], []>} : vector<60x4xf32>, vector<4x16xf32>, vector<60x16xf32> -> vector<60x16xf32>
    %10 = arith.addf %5, %9 : vector<60x16xf32>
    %c1 = arith.constant 1 : index
    %c0_7 = arith.constant 0 : index
    %11 = vector.load %arg0[%c1, %c0_7] : memref<128x4xf32, #tpu.memory_space<vmem>>, vector<60x4xf32>
    %c1_8 = arith.constant 1 : index
    %c0_9 = arith.constant 0 : index
    %c0_10 = arith.constant 0 : index
    %12 = vector.load %arg1[%c1_8, %c0_9, %c0_10] : memref<5x4x16xf32, #tpu.memory_space<vmem>>, vector<1x4x16xf32>
    %13 = vector.shape_cast %12 : vector<1x4x16xf32> to vector<4x16xf32>
    %cst_11 = arith.constant dense<0.000000e+00> : vector<60x16xf32>
    %14 = tpu.matmul %11, %13, %cst_11 {dimension_numbers = #tpu.dot_dimension_numbers<[1], [0], [0], [1], [0, 0, 1, 1], [], []>} : vector<60x4xf32>, vector<4x16xf32>, vector<60x16xf32> -> vector<60x16xf32>
    %15 = arith.addf %10, %14 : vector<60x16xf32>
    %c2 = arith.constant 2 : index
    %c0_12 = arith.constant 0 : index
    %16 = vector.load %arg0[%c2, %c0_12] : memref<128x4xf32, #tpu.memory_space<vmem>>, vector<60x4xf32>
    %c2_13 = arith.constant 2 : index
    %c0_14 = arith.constant 0 : index
    %c0_15 = arith.constant 0 : index
    %17 = vector.load %arg1[%c2_13, %c0_14, %c0_15] : memref<5x4x16xf32, #tpu.memory_space<vmem>>, vector<1x4x16xf32>
    %18 = vector.shape_cast %17 : vector<1x4x16xf32> to vector<4x16xf32>
    %cst_16 = arith.constant dense<0.000000e+00> : vector<60x16xf32>
    %19 = tpu.matmul %16, %18, %cst_16 {dimension_numbers = #tpu.dot_dimension_numbers<[1], [0], [0], [1], [0, 0, 1, 1], [], []>} : vector<60x4xf32>, vector<4x16xf32>, vector<60x16xf32> -> vector<60x16xf32>
    %20 = arith.addf %15, %19 : vector<60x16xf32>
    %c3 = arith.constant 3 : index
    %c0_17 = arith.constant 0 : index
    %21 = vector.load %arg0[%c3, %c0_17] : memref<128x4xf32, #tpu.memory_space<vmem>>, vector<60x4xf32>
    %c3_18 = arith.constant 3 : index
    %c0_19 = arith.constant 0 : index
    %c0_20 = arith.constant 0 : index
    %22 = vector.load %arg1[%c3_18, %c0_19, %c0_20] : memref<5x4x16xf32, #tpu.memory_space<vmem>>, vector<1x4x16xf32>
    %23 = vector.shape_cast %22 : vector<1x4x16xf32> to vector<4x16xf32>
    %cst_21 = arith.constant dense<0.000000e+00> : vector<60x16xf32>
    %24 = tpu.matmul %21, %23, %cst_21 {dimension_numbers = #tpu.dot_dimension_numbers<[1], [0], [0], [1], [0, 0, 1, 1], [], []>} : vector<60x4xf32>, vector<4x16xf32>, vector<60x16xf32> -> vector<60x16xf32>
    %25 = arith.addf %20, %24 : vector<60x16xf32>
    %c4 = arith.constant 4 : index
    %c0_22 = arith.constant 0 : index
    %26 = vector.load %arg0[%c4, %c0_22] : memref<128x4xf32, #tpu.memory_space<vmem>>, vector<60x4xf32>
    %c4_23 = arith.constant 4 : index
    %c0_24 = arith.constant 0 : index
    %c0_25 = arith.constant 0 : index
    %27 = vector.load %arg1[%c4_23, %c0_24, %c0_25] : memref<5x4x16xf32, #tpu.memory_space<vmem>>, vector<1x4x16xf32>
    %28 = vector.shape_cast %27 : vector<1x4x16xf32> to vector<4x16xf32>
    %cst_26 = arith.constant dense<0.000000e+00> : vector<60x16xf32>
    %29 = tpu.matmul %26, %28, %cst_26 {dimension_numbers = #tpu.dot_dimension_numbers<[1], [0], [0], [1], [0, 0, 1, 1], [], []>} : vector<60x4xf32>, vector<4x16xf32>, vector<60x16xf32> -> vector<60x16xf32>
    %30 = arith.addf %25, %29 : vector<60x16xf32>
    %31 = vector.broadcast %1 : vector<1x16xf32> to vector<60x16xf32>
    %32 = arith.addf %30, %31 : vector<60x16xf32>
    %cst_27 = arith.constant 0.000000e+00 : f32
    %33 = vector.broadcast %cst_27 : f32 to vector<60x16xf32>
    %34 = arith.maximumf %32, %33 : vector<60x16xf32>
    %c0_28 = arith.constant 0 : index
    %c0_29 = arith.constant 0 : index
    %35 = vector.load %arg7[%c0_28, %c0_29] : memref<128x16xf32, #tpu.memory_space<vmem>>, vector<60x16xf32>
    tpu.vector_store %arg7[%c0_28, %c0_29], %34 {strides = array<i32>} : memref<128x16xf32, #tpu.memory_space<vmem>>, vector<60x16xf32>,
    %cst_30 = arith.constant 0.000000e+00 : f32
    %36 = vector.broadcast %cst_30 : f32 to vector<60x16xf32>
    %c64 = arith.constant 64 : index
    %c0_31 = arith.constant 0 : index
    %37 = vector.load %arg0[%c64, %c0_31] : memref<128x4xf32, #tpu.memory_space<vmem>>, vector<60x4xf32>
    %c0_32 = arith.constant 0 : index
    %c0_33 = arith.constant 0 : index
    %c0_34 = arith.constant 0 : index
    %38 = vector.load %arg1[%c0_32, %c0_33, %c0_34] : memref<5x4x16xf32, #tpu.memory_space<vmem>>, vector<1x4x16xf32>
    %39 = vector.shape_cast %38 : vector<1x4x16xf32> to vector<4x16xf32>
    %cst_35 = arith.constant dense<0.000000e+00> : vector<60x16xf32>
    %40 = tpu.matmul %37, %39, %cst_35 {dimension_numbers = #tpu.dot_dimension_numbers<[1], [0], [0], [1], [0, 0, 1, 1], [], []>} : vector<60x4xf32>, vector<4x16xf32>, vector<60x16xf32> -> vector<60x16xf32>
    %41 = arith.addf %36, %40 : vector<60x16xf32>
    %c65 = arith.constant 65 : index
    %c0_36 = arith.constant 0 : index
    %42 = vector.load %arg0[%c65, %c0_36] : memref<128x4xf32, #tpu.memory_space<vmem>>, vector<60x4xf32>
    %c1_37 = arith.constant 1 : index
    %c0_38 = arith.constant 0 : index
    %c0_39 = arith.constant 0 : index
    %43 = vector.load %arg1[%c1_37, %c0_38, %c0_39] : memref<5x4x16xf32, #tpu.memory_space<vmem>>, vector<1x4x16xf32>
    %44 = vector.shape_cast %43 : vector<1x4x16xf32> to vector<4x16xf32>
    %cst_40 = arith.constant dense<0.000000e+00> : vector<60x16xf32>
    %45 = tpu.matmul %42, %44, %cst_40 {dimension_numbers = #tpu.dot_dimension_numbers<[1], [0], [0], [1], [0, 0, 1, 1], [], []>} : vector<60x4xf32>, vector<4x16xf32>, vector<60x16xf32> -> vector<60x16xf32>
    %46 = arith.addf %41, %45 : vector<60x16xf32>
    %c66 = arith.constant 66 : index
    %c0_41 = arith.constant 0 : index
    %47 = vector.load %arg0[%c66, %c0_41] : memref<128x4xf32, #tpu.memory_space<vmem>>, vector<60x4xf32>
    %c2_42 = arith.constant 2 : index
    %c0_43 = arith.constant 0 : index
    %c0_44 = arith.constant 0 : index
    %48 = vector.load %arg1[%c2_42, %c0_43, %c0_44] : memref<5x4x16xf32, #tpu.memory_space<vmem>>, vector<1x4x16xf32>
    %49 = vector.shape_cast %48 : vector<1x4x16xf32> to vector<4x16xf32>
    %cst_45 = arith.constant dense<0.000000e+00> : vector<60x16xf32>
    %50 = tpu.matmul %47, %49, %cst_45 {dimension_numbers = #tpu.dot_dimension_numbers<[1], [0], [0], [1], [0, 0, 1, 1], [], []>} : vector<60x4xf32>, vector<4x16xf32>, vector<60x16xf32> -> vector<60x16xf32>
    %51 = arith.addf %46, %50 : vector<60x16xf32>
    %c67 = arith.constant 67 : index
    %c0_46 = arith.constant 0 : index
    %52 = vector.load %arg0[%c67, %c0_46] : memref<128x4xf32, #tpu.memory_space<vmem>>, vector<60x4xf32>
    %c3_47 = arith.constant 3 : index
    %c0_48 = arith.constant 0 : index
    %c0_49 = arith.constant 0 : index
    %53 = vector.load %arg1[%c3_47, %c0_48, %c0_49] : memref<5x4x16xf32, #tpu.memory_space<vmem>>, vector<1x4x16xf32>
    %54 = vector.shape_cast %53 : vector<1x4x16xf32> to vector<4x16xf32>
    %cst_50 = arith.constant dense<0.000000e+00> : vector<60x16xf32>
    %55 = tpu.matmul %52, %54, %cst_50 {dimension_numbers = #tpu.dot_dimension_numbers<[1], [0], [0], [1], [0, 0, 1, 1], [], []>} : vector<60x4xf32>, vector<4x16xf32>, vector<60x16xf32> -> vector<60x16xf32>
    %56 = arith.addf %51, %55 : vector<60x16xf32>
    %c68 = arith.constant 68 : index
    %c0_51 = arith.constant 0 : index
    %57 = vector.load %arg0[%c68, %c0_51] : memref<128x4xf32, #tpu.memory_space<vmem>>, vector<60x4xf32>
    %c4_52 = arith.constant 4 : index
    %c0_53 = arith.constant 0 : index
    %c0_54 = arith.constant 0 : index
    %58 = vector.load %arg1[%c4_52, %c0_53, %c0_54] : memref<5x4x16xf32, #tpu.memory_space<vmem>>, vector<1x4x16xf32>
    %59 = vector.shape_cast %58 : vector<1x4x16xf32> to vector<4x16xf32>
    %cst_55 = arith.constant dense<0.000000e+00> : vector<60x16xf32>
    %60 = tpu.matmul %57, %59, %cst_55 {dimension_numbers = #tpu.dot_dimension_numbers<[1], [0], [0], [1], [0, 0, 1, 1], [], []>} : vector<60x4xf32>, vector<4x16xf32>, vector<60x16xf32> -> vector<60x16xf32>
    %61 = arith.addf %56, %60 : vector<60x16xf32>
    %62 = vector.broadcast %1 : vector<1x16xf32> to vector<60x16xf32>
    %63 = arith.addf %61, %62 : vector<60x16xf32>
    %cst_56 = arith.constant 0.000000e+00 : f32
    %64 = vector.broadcast %cst_56 : f32 to vector<60x16xf32>
    %65 = arith.maximumf %63, %64 : vector<60x16xf32>
    %c64_57 = arith.constant 64 : index
    %c0_58 = arith.constant 0 : index
    %66 = vector.load %arg7[%c64_57, %c0_58] : memref<128x16xf32, #tpu.memory_space<vmem>>, vector<60x16xf32>
    tpu.vector_store %arg7[%c64_57, %c0_58], %65 {strides = array<i32>} : memref<128x16xf32, #tpu.memory_space<vmem>>, vector<60x16xf32>,
    %cst_59 = arith.constant 0.000000e+00 : f32
    %67 = vector.broadcast %cst_59 : f32 to vector<26x32xf32>
    %c0_60 = arith.constant 0 : index
    %c0_61 = arith.constant 0 : index
    %68 = tpu.strided_load %arg7[%c0_60, %c0_61] {strides = array<i32: 2, 1>} : memref<128x16xf32, #tpu.memory_space<vmem>>, vector<26x16xf32>
    %c1_62 = arith.constant 1 : index
    %c0_63 = arith.constant 0 : index
    %69 = tpu.strided_load %arg7[%c1_62, %c0_63] {strides = array<i32: 2, 1>} : memref<128x16xf32, #tpu.memory_space<vmem>>, vector<26x16xf32>
    %70 = arith.maximumf %68, %69 : vector<26x16xf32>
    %c0_64 = arith.constant 0 : index
    %c0_65 = arith.constant 0 : index
    %c0_66 = arith.constant 0 : index
    %71 = vector.load %arg2[%c0_64, %c0_65, %c0_66] : memref<5x16x32xf32, #tpu.memory_space<vmem>>, vector<1x16x32xf32>
    %72 = vector.shape_cast %71 : vector<1x16x32xf32> to vector<16x32xf32>
    %cst_67 = arith.constant dense<0.000000e+00> : vector<26x32xf32>
    %73 = tpu.matmul %70, %72, %cst_67 {dimension_numbers = #tpu.dot_dimension_numbers<[1], [0], [0], [1], [0, 0, 1, 1], [], []>} : vector<26x16xf32>, vector<16x32xf32>, vector<26x32xf32> -> vector<26x32xf32>
    %74 = arith.addf %67, %73 : vector<26x32xf32>
    %c2_68 = arith.constant 2 : index
    %c0_69 = arith.constant 0 : index
    %75 = tpu.strided_load %arg7[%c2_68, %c0_69] {strides = array<i32: 2, 1>} : memref<128x16xf32, #tpu.memory_space<vmem>>, vector<26x16xf32>
    %c3_70 = arith.constant 3 : index
    %c0_71 = arith.constant 0 : index
    %76 = tpu.strided_load %arg7[%c3_70, %c0_71] {strides = array<i32: 2, 1>} : memref<128x16xf32, #tpu.memory_space<vmem>>, vector<26x16xf32>
    %77 = arith.maximumf %75, %76 : vector<26x16xf32>
    %c1_72 = arith.constant 1 : index
    %c0_73 = arith.constant 0 : index
    %c0_74 = arith.constant 0 : index
    %78 = vector.load %arg2[%c1_72, %c0_73, %c0_74] : memref<5x16x32xf32, #tpu.memory_space<vmem>>, vector<1x16x32xf32>
    %79 = vector.shape_cast %78 : vector<1x16x32xf32> to vector<16x32xf32>
    %cst_75 = arith.constant dense<0.000000e+00> : vector<26x32xf32>
    %80 = tpu.matmul %77, %79, %cst_75 {dimension_numbers = #tpu.dot_dimension_numbers<[1], [0], [0], [1], [0, 0, 1, 1], [], []>} : vector<26x16xf32>, vector<16x32xf32>, vector<26x32xf32> -> vector<26x32xf32>
    %81 = arith.addf %74, %80 : vector<26x32xf32>
    %c4_76 = arith.constant 4 : index
    %c0_77 = arith.constant 0 : index
    %82 = tpu.strided_load %arg7[%c4_76, %c0_77] {strides = array<i32: 2, 1>} : memref<128x16xf32, #tpu.memory_space<vmem>>, vector<26x16xf32>
    %c5 = arith.constant 5 : index
    %c0_78 = arith.constant 0 : index
    %83 = tpu.strided_load %arg7[%c5, %c0_78] {strides = array<i32: 2, 1>} : memref<128x16xf32, #tpu.memory_space<vmem>>, vector<26x16xf32>
    %84 = arith.maximumf %82, %83 : vector<26x16xf32>
    %c2_79 = arith.constant 2 : index
    %c0_80 = arith.constant 0 : index
    %c0_81 = arith.constant 0 : index
    %85 = vector.load %arg2[%c2_79, %c0_80, %c0_81] : memref<5x16x32xf32, #tpu.memory_space<vmem>>, vector<1x16x32xf32>
    %86 = vector.shape_cast %85 : vector<1x16x32xf32> to vector<16x32xf32>
    %cst_82 = arith.constant dense<0.000000e+00> : vector<26x32xf32>
    %87 = tpu.matmul %84, %86, %cst_82 {dimension_numbers = #tpu.dot_dimension_numbers<[1], [0], [0], [1], [0, 0, 1, 1], [], []>} : vector<26x16xf32>, vector<16x32xf32>, vector<26x32xf32> -> vector<26x32xf32>
    %88 = arith.addf %81, %87 : vector<26x32xf32>
    %c6 = arith.constant 6 : index
    %c0_83 = arith.constant 0 : index
    %89 = tpu.strided_load %arg7[%c6, %c0_83] {strides = array<i32: 2, 1>} : memref<128x16xf32, #tpu.memory_space<vmem>>, vector<26x16xf32>
    %c7 = arith.constant 7 : index
    %c0_84 = arith.constant 0 : index
    %90 = tpu.strided_load %arg7[%c7, %c0_84] {strides = array<i32: 2, 1>} : memref<128x16xf32, #tpu.memory_space<vmem>>, vector<26x16xf32>
    %91 = arith.maximumf %89, %90 : vector<26x16xf32>
    %c3_85 = arith.constant 3 : index
    %c0_86 = arith.constant 0 : index
    %c0_87 = arith.constant 0 : index
    %92 = vector.load %arg2[%c3_85, %c0_86, %c0_87] : memref<5x16x32xf32, #tpu.memory_space<vmem>>, vector<1x16x32xf32>
    %93 = vector.shape_cast %92 : vector<1x16x32xf32> to vector<16x32xf32>
    %cst_88 = arith.constant dense<0.000000e+00> : vector<26x32xf32>
    %94 = tpu.matmul %91, %93, %cst_88 {dimension_numbers = #tpu.dot_dimension_numbers<[1], [0], [0], [1], [0, 0, 1, 1], [], []>} : vector<26x16xf32>, vector<16x32xf32>, vector<26x32xf32> -> vector<26x32xf32>
    %95 = arith.addf %88, %94 : vector<26x32xf32>
    %c8 = arith.constant 8 : index
    %c0_89 = arith.constant 0 : index
    %96 = tpu.strided_load %arg7[%c8, %c0_89] {strides = array<i32: 2, 1>} : memref<128x16xf32, #tpu.memory_space<vmem>>, vector<26x16xf32>
    %c9 = arith.constant 9 : index
    %c0_90 = arith.constant 0 : index
    %97 = tpu.strided_load %arg7[%c9, %c0_90] {strides = array<i32: 2, 1>} : memref<128x16xf32, #tpu.memory_space<vmem>>, vector<26x16xf32>
    %98 = arith.maximumf %96, %97 : vector<26x16xf32>
    %c4_91 = arith.constant 4 : index
    %c0_92 = arith.constant 0 : index
    %c0_93 = arith.constant 0 : index
    %99 = vector.load %arg2[%c4_91, %c0_92, %c0_93] : memref<5x16x32xf32, #tpu.memory_space<vmem>>, vector<1x16x32xf32>
    %100 = vector.shape_cast %99 : vector<1x16x32xf32> to vector<16x32xf32>
    %cst_94 = arith.constant dense<0.000000e+00> : vector<26x32xf32>
    %101 = tpu.matmul %98, %100, %cst_94 {dimension_numbers = #tpu.dot_dimension_numbers<[1], [0], [0], [1], [0, 0, 1, 1], [], []>} : vector<26x16xf32>, vector<16x32xf32>, vector<26x32xf32> -> vector<26x32xf32>
    %102 = arith.addf %95, %101 : vector<26x32xf32>
    %103 = vector.broadcast %2 : vector<1x32xf32> to vector<26x32xf32>
    %104 = arith.addf %102, %103 : vector<26x32xf32>
    %cst_95 = arith.constant 0.000000e+00 : f32
    %105 = vector.broadcast %cst_95 : f32 to vector<26x32xf32>
    %106 = arith.maximumf %104, %105 : vector<26x32xf32>
    %c0_96 = arith.constant 0 : index
    %c0_97 = arith.constant 0 : index
    %107 = vector.load %arg8[%c0_96, %c0_97] : memref<64x32xf32, #tpu.memory_space<vmem>>, vector<26x32xf32>
    tpu.vector_store %arg8[%c0_96, %c0_97], %106 {strides = array<i32>} : memref<64x32xf32, #tpu.memory_space<vmem>>, vector<26x32xf32>,
    %cst_98 = arith.constant 0.000000e+00 : f32
    %108 = vector.broadcast %cst_98 : f32 to vector<26x32xf32>
    %c64_99 = arith.constant 64 : index
    %c0_100 = arith.constant 0 : index
    %109 = tpu.strided_load %arg7[%c64_99, %c0_100] {strides = array<i32: 2, 1>} : memref<128x16xf32, #tpu.memory_space<vmem>>, vector<26x16xf32>
    %c65_101 = arith.constant 65 : index
    %c0_102 = arith.constant 0 : index
    %110 = tpu.strided_load %arg7[%c65_101, %c0_102] {strides = array<i32: 2, 1>} : memref<128x16xf32, #tpu.memory_space<vmem>>, vector<26x16xf32>
    %111 = arith.maximumf %109, %110 : vector<26x16xf32>
    %c0_103 = arith.constant 0 : index
    %c0_104 = arith.constant 0 : index
    %c0_105 = arith.constant 0 : index
    %112 = vector.load %arg2[%c0_103, %c0_104, %c0_105] : memref<5x16x32xf32, #tpu.memory_space<vmem>>, vector<1x16x32xf32>
    %113 = vector.shape_cast %112 : vector<1x16x32xf32> to vector<16x32xf32>
    %cst_106 = arith.constant dense<0.000000e+00> : vector<26x32xf32>
    %114 = tpu.matmul %111, %113, %cst_106 {dimension_numbers = #tpu.dot_dimension_numbers<[1], [0], [0], [1], [0, 0, 1, 1], [], []>} : vector<26x16xf32>, vector<16x32xf32>, vector<26x32xf32> -> vector<26x32xf32>
    %115 = arith.addf %108, %114 : vector<26x32xf32>
    %c66_107 = arith.constant 66 : index
    %c0_108 = arith.constant 0 : index
    %116 = tpu.strided_load %arg7[%c66_107, %c0_108] {strides = array<i32: 2, 1>} : memref<128x16xf32, #tpu.memory_space<vmem>>, vector<26x16xf32>
    %c67_109 = arith.constant 67 : index
    %c0_110 = arith.constant 0 : index
    %117 = tpu.strided_load %arg7[%c67_109, %c0_110] {strides = array<i32: 2, 1>} : memref<128x16xf32, #tpu.memory_space<vmem>>, vector<26x16xf32>
    %118 = arith.maximumf %116, %117 : vector<26x16xf32>
    %c1_111 = arith.constant 1 : index
    %c0_112 = arith.constant 0 : index
    %c0_113 = arith.constant 0 : index
    %119 = vector.load %arg2[%c1_111, %c0_112, %c0_113] : memref<5x16x32xf32, #tpu.memory_space<vmem>>, vector<1x16x32xf32>
    %120 = vector.shape_cast %119 : vector<1x16x32xf32> to vector<16x32xf32>
    %cst_114 = arith.constant dense<0.000000e+00> : vector<26x32xf32>
    %121 = tpu.matmul %118, %120, %cst_114 {dimension_numbers = #tpu.dot_dimension_numbers<[1], [0], [0], [1], [0, 0, 1, 1], [], []>} : vector<26x16xf32>, vector<16x32xf32>, vector<26x32xf32> -> vector<26x32xf32>
    %122 = arith.addf %115, %121 : vector<26x32xf32>
    %c68_115 = arith.constant 68 : index
    %c0_116 = arith.constant 0 : index
    %123 = tpu.strided_load %arg7[%c68_115, %c0_116] {strides = array<i32: 2, 1>} : memref<128x16xf32, #tpu.memory_space<vmem>>, vector<26x16xf32>
    %c69 = arith.constant 69 : index
    %c0_117 = arith.constant 0 : index
    %124 = tpu.strided_load %arg7[%c69, %c0_117] {strides = array<i32: 2, 1>} : memref<128x16xf32, #tpu.memory_space<vmem>>, vector<26x16xf32>
    %125 = arith.maximumf %123, %124 : vector<26x16xf32>
    %c2_118 = arith.constant 2 : index
    %c0_119 = arith.constant 0 : index
    %c0_120 = arith.constant 0 : index
    %126 = vector.load %arg2[%c2_118, %c0_119, %c0_120] : memref<5x16x32xf32, #tpu.memory_space<vmem>>, vector<1x16x32xf32>
    %127 = vector.shape_cast %126 : vector<1x16x32xf32> to vector<16x32xf32>
    %cst_121 = arith.constant dense<0.000000e+00> : vector<26x32xf32>
    %128 = tpu.matmul %125, %127, %cst_121 {dimension_numbers = #tpu.dot_dimension_numbers<[1], [0], [0], [1], [0, 0, 1, 1], [], []>} : vector<26x16xf32>, vector<16x32xf32>, vector<26x32xf32> -> vector<26x32xf32>
    %129 = arith.addf %122, %128 : vector<26x32xf32>
    %c70 = arith.constant 70 : index
    %c0_122 = arith.constant 0 : index
    %130 = tpu.strided_load %arg7[%c70, %c0_122] {strides = array<i32: 2, 1>} : memref<128x16xf32, #tpu.memory_space<vmem>>, vector<26x16xf32>
    %c71 = arith.constant 71 : index
    %c0_123 = arith.constant 0 : index
    %131 = tpu.strided_load %arg7[%c71, %c0_123] {strides = array<i32: 2, 1>} : memref<128x16xf32, #tpu.memory_space<vmem>>, vector<26x16xf32>
    %132 = arith.maximumf %130, %131 : vector<26x16xf32>
    %c3_124 = arith.constant 3 : index
    %c0_125 = arith.constant 0 : index
    %c0_126 = arith.constant 0 : index
    %133 = vector.load %arg2[%c3_124, %c0_125, %c0_126] : memref<5x16x32xf32, #tpu.memory_space<vmem>>, vector<1x16x32xf32>
    %134 = vector.shape_cast %133 : vector<1x16x32xf32> to vector<16x32xf32>
    %cst_127 = arith.constant dense<0.000000e+00> : vector<26x32xf32>
    %135 = tpu.matmul %132, %134, %cst_127 {dimension_numbers = #tpu.dot_dimension_numbers<[1], [0], [0], [1], [0, 0, 1, 1], [], []>} : vector<26x16xf32>, vector<16x32xf32>, vector<26x32xf32> -> vector<26x32xf32>
    %136 = arith.addf %129, %135 : vector<26x32xf32>
    %c72 = arith.constant 72 : index
    %c0_128 = arith.constant 0 : index
    %137 = tpu.strided_load %arg7[%c72, %c0_128] {strides = array<i32: 2, 1>} : memref<128x16xf32, #tpu.memory_space<vmem>>, vector<26x16xf32>
    %c73 = arith.constant 73 : index
    %c0_129 = arith.constant 0 : index
    %138 = tpu.strided_load %arg7[%c73, %c0_129] {strides = array<i32: 2, 1>} : memref<128x16xf32, #tpu.memory_space<vmem>>, vector<26x16xf32>
    %139 = arith.maximumf %137, %138 : vector<26x16xf32>
    %c4_130 = arith.constant 4 : index
    %c0_131 = arith.constant 0 : index
    %c0_132 = arith.constant 0 : index
    %140 = vector.load %arg2[%c4_130, %c0_131, %c0_132] : memref<5x16x32xf32, #tpu.memory_space<vmem>>, vector<1x16x32xf32>
    %141 = vector.shape_cast %140 : vector<1x16x32xf32> to vector<16x32xf32>
    %cst_133 = arith.constant dense<0.000000e+00> : vector<26x32xf32>
    %142 = tpu.matmul %139, %141, %cst_133 {dimension_numbers = #tpu.dot_dimension_numbers<[1], [0], [0], [1], [0, 0, 1, 1], [], []>} : vector<26x16xf32>, vector<16x32xf32>, vector<26x32xf32> -> vector<26x32xf32>
    %143 = arith.addf %136, %142 : vector<26x32xf32>
    %144 = vector.broadcast %2 : vector<1x32xf32> to vector<26x32xf32>
    %145 = arith.addf %143, %144 : vector<26x32xf32>
    %cst_134 = arith.constant 0.000000e+00 : f32
    %146 = vector.broadcast %cst_134 : f32 to vector<26x32xf32>
    %147 = arith.maximumf %145, %146 : vector<26x32xf32>
    %c32 = arith.constant 32 : index
    %c0_135 = arith.constant 0 : index
    %148 = vector.load %arg8[%c32, %c0_135] : memref<64x32xf32, #tpu.memory_space<vmem>>, vector<26x32xf32>
    tpu.vector_store %arg8[%c32, %c0_135], %147 {strides = array<i32>} : memref<64x32xf32, #tpu.memory_space<vmem>>, vector<26x32xf32>,
    %cst_136 = arith.constant 0.000000e+00 : f32
    %149 = vector.broadcast %cst_136 : f32 to vector<2x128xf32>
    %c0_137 = arith.constant 0 : index
    %c0_138 = arith.constant 0 : index
    %150 = tpu.strided_load %arg8[%c0_137, %c0_138] {strides = array<i32: 32, 1>} : memref<64x32xf32, #tpu.memory_space<vmem>>, vector<2x32xf32>
    %c1_139 = arith.constant 1 : index
    %c0_140 = arith.constant 0 : index
    %151 = tpu.strided_load %arg8[%c1_139, %c0_140] {strides = array<i32: 32, 1>} : memref<64x32xf32, #tpu.memory_space<vmem>>, vector<2x32xf32>
    %152 = arith.maximumf %150, %151 : vector<2x32xf32>
    %c0_141 = arith.constant 0 : index
    %c0_142 = arith.constant 0 : index
    %c0_143 = arith.constant 0 : index
    %153 = vector.load %arg3[%c0_141, %c0_142, %c0_143] : memref<13x32x128xf32, #tpu.memory_space<vmem>>, vector<1x32x128xf32>
    %154 = vector.shape_cast %153 : vector<1x32x128xf32> to vector<32x128xf32>
    %cst_144 = arith.constant dense<0.000000e+00> : vector<2x128xf32>
    %155 = tpu.matmul %152, %154, %cst_144 {dimension_numbers = #tpu.dot_dimension_numbers<[1], [0], [0], [1], [0, 0, 1, 1], [], []>} : vector<2x32xf32>, vector<32x128xf32>, vector<2x128xf32> -> vector<2x128xf32>
    %156 = arith.addf %149, %155 : vector<2x128xf32>
    %c2_145 = arith.constant 2 : index
    %c0_146 = arith.constant 0 : index
    %157 = tpu.strided_load %arg8[%c2_145, %c0_146] {strides = array<i32: 32, 1>} : memref<64x32xf32, #tpu.memory_space<vmem>>, vector<2x32xf32>
    %c3_147 = arith.constant 3 : index
    %c0_148 = arith.constant 0 : index
    %158 = tpu.strided_load %arg8[%c3_147, %c0_148] {strides = array<i32: 32, 1>} : memref<64x32xf32, #tpu.memory_space<vmem>>, vector<2x32xf32>
    %159 = arith.maximumf %157, %158 : vector<2x32xf32>
    %c1_149 = arith.constant 1 : index
    %c0_150 = arith.constant 0 : index
    %c0_151 = arith.constant 0 : index
    %160 = vector.load %arg3[%c1_149, %c0_150, %c0_151] : memref<13x32x128xf32, #tpu.memory_space<vmem>>, vector<1x32x128xf32>
    %161 = vector.shape_cast %160 : vector<1x32x128xf32> to vector<32x128xf32>
    %cst_152 = arith.constant dense<0.000000e+00> : vector<2x128xf32>
    %162 = tpu.matmul %159, %161, %cst_152 {dimension_numbers = #tpu.dot_dimension_numbers<[1], [0], [0], [1], [0, 0, 1, 1], [], []>} : vector<2x32xf32>, vector<32x128xf32>, vector<2x128xf32> -> vector<2x128xf32>
    %163 = arith.addf %156, %162 : vector<2x128xf32>
    %c4_153 = arith.constant 4 : index
    %c0_154 = arith.constant 0 : index
    %164 = tpu.strided_load %arg8[%c4_153, %c0_154] {strides = array<i32: 32, 1>} : memref<64x32xf32, #tpu.memory_space<vmem>>, vector<2x32xf32>
    %c5_155 = arith.constant 5 : index
    %c0_156 = arith.constant 0 : index
    %165 = tpu.strided_load %arg8[%c5_155, %c0_156] {strides = array<i32: 32, 1>} : memref<64x32xf32, #tpu.memory_space<vmem>>, vector<2x32xf32>
    %166 = arith.maximumf %164, %165 : vector<2x32xf32>
    %c2_157 = arith.constant 2 : index
    %c0_158 = arith.constant 0 : index
    %c0_159 = arith.constant 0 : index
    %167 = vector.load %arg3[%c2_157, %c0_158, %c0_159] : memref<13x32x128xf32, #tpu.memory_space<vmem>>, vector<1x32x128xf32>
    %168 = vector.shape_cast %167 : vector<1x32x128xf32> to vector<32x128xf32>
    %cst_160 = arith.constant dense<0.000000e+00> : vector<2x128xf32>
    %169 = tpu.matmul %166, %168, %cst_160 {dimension_numbers = #tpu.dot_dimension_numbers<[1], [0], [0], [1], [0, 0, 1, 1], [], []>} : vector<2x32xf32>, vector<32x128xf32>, vector<2x128xf32> -> vector<2x128xf32>
    %170 = arith.addf %163, %169 : vector<2x128xf32>
    %c6_161 = arith.constant 6 : index
    %c0_162 = arith.constant 0 : index
    %171 = tpu.strided_load %arg8[%c6_161, %c0_162] {strides = array<i32: 32, 1>} : memref<64x32xf32, #tpu.memory_space<vmem>>, vector<2x32xf32>
    %c7_163 = arith.constant 7 : index
    %c0_164 = arith.constant 0 : index
    %172 = tpu.strided_load %arg8[%c7_163, %c0_164] {strides = array<i32: 32, 1>} : memref<64x32xf32, #tpu.memory_space<vmem>>, vector<2x32xf32>
    %173 = arith.maximumf %171, %172 : vector<2x32xf32>
    %c3_165 = arith.constant 3 : index
    %c0_166 = arith.constant 0 : index
    %c0_167 = arith.constant 0 : index
    %174 = vector.load %arg3[%c3_165, %c0_166, %c0_167] : memref<13x32x128xf32, #tpu.memory_space<vmem>>, vector<1x32x128xf32>
    %175 = vector.shape_cast %174 : vector<1x32x128xf32> to vector<32x128xf32>
    %cst_168 = arith.constant dense<0.000000e+00> : vector<2x128xf32>
    %176 = tpu.matmul %173, %175, %cst_168 {dimension_numbers = #tpu.dot_dimension_numbers<[1], [0], [0], [1], [0, 0, 1, 1], [], []>} : vector<2x32xf32>, vector<32x128xf32>, vector<2x128xf32> -> vector<2x128xf32>
    %177 = arith.addf %170, %176 : vector<2x128xf32>
    %c8_169 = arith.constant 8 : index
    %c0_170 = arith.constant 0 : index
    %178 = tpu.strided_load %arg8[%c8_169, %c0_170] {strides = array<i32: 32, 1>} : memref<64x32xf32, #tpu.memory_space<vmem>>, vector<2x32xf32>
    %c9_171 = arith.constant 9 : index
    %c0_172 = arith.constant 0 : index
    %179 = tpu.strided_load %arg8[%c9_171, %c0_172] {strides = array<i32: 32, 1>} : memref<64x32xf32, #tpu.memory_space<vmem>>, vector<2x32xf32>
    %180 = arith.maximumf %178, %179 : vector<2x32xf32>
    %c4_173 = arith.constant 4 : index
    %c0_174 = arith.constant 0 : index
    %c0_175 = arith.constant 0 : index
    %181 = vector.load %arg3[%c4_173, %c0_174, %c0_175] : memref<13x32x128xf32, #tpu.memory_space<vmem>>, vector<1x32x128xf32>
    %182 = vector.shape_cast %181 : vector<1x32x128xf32> to vector<32x128xf32>
    %cst_176 = arith.constant dense<0.000000e+00> : vector<2x128xf32>
    %183 = tpu.matmul %180, %182, %cst_176 {dimension_numbers = #tpu.dot_dimension_numbers<[1], [0], [0], [1], [0, 0, 1, 1], [], []>} : vector<2x32xf32>, vector<32x128xf32>, vector<2x128xf32> -> vector<2x128xf32>
    %184 = arith.addf %177, %183 : vector<2x128xf32>
    %c10 = arith.constant 10 : index
    %c0_177 = arith.constant 0 : index
    %185 = tpu.strided_load %arg8[%c10, %c0_177] {strides = array<i32: 32, 1>} : memref<64x32xf32, #tpu.memory_space<vmem>>, vector<2x32xf32>
    %c11 = arith.constant 11 : index
    %c0_178 = arith.constant 0 : index
    %186 = tpu.strided_load %arg8[%c11, %c0_178] {strides = array<i32: 32, 1>} : memref<64x32xf32, #tpu.memory_space<vmem>>, vector<2x32xf32>
    %187 = arith.maximumf %185, %186 : vector<2x32xf32>
    %c5_179 = arith.constant 5 : index
    %c0_180 = arith.constant 0 : index
    %c0_181 = arith.constant 0 : index
    %188 = vector.load %arg3[%c5_179, %c0_180, %c0_181] : memref<13x32x128xf32, #tpu.memory_space<vmem>>, vector<1x32x128xf32>
    %189 = vector.shape_cast %188 : vector<1x32x128xf32> to vector<32x128xf32>
    %cst_182 = arith.constant dense<0.000000e+00> : vector<2x128xf32>
    %190 = tpu.matmul %187, %189, %cst_182 {dimension_numbers = #tpu.dot_dimension_numbers<[1], [0], [0], [1], [0, 0, 1, 1], [], []>} : vector<2x32xf32>, vector<32x128xf32>, vector<2x128xf32> -> vector<2x128xf32>
    %191 = arith.addf %184, %190 : vector<2x128xf32>
    %c12 = arith.constant 12 : index
    %c0_183 = arith.constant 0 : index
    %192 = tpu.strided_load %arg8[%c12, %c0_183] {strides = array<i32: 32, 1>} : memref<64x32xf32, #tpu.memory_space<vmem>>, vector<2x32xf32>
    %c13 = arith.constant 13 : index
    %c0_184 = arith.constant 0 : index
    %193 = tpu.strided_load %arg8[%c13, %c0_184] {strides = array<i32: 32, 1>} : memref<64x32xf32, #tpu.memory_space<vmem>>, vector<2x32xf32>
    %194 = arith.maximumf %192, %193 : vector<2x32xf32>
    %c6_185 = arith.constant 6 : index
    %c0_186 = arith.constant 0 : index
    %c0_187 = arith.constant 0 : index
    %195 = vector.load %arg3[%c6_185, %c0_186, %c0_187] : memref<13x32x128xf32, #tpu.memory_space<vmem>>, vector<1x32x128xf32>
    %196 = vector.shape_cast %195 : vector<1x32x128xf32> to vector<32x128xf32>
    %cst_188 = arith.constant dense<0.000000e+00> : vector<2x128xf32>
    %197 = tpu.matmul %194, %196, %cst_188 {dimension_numbers = #tpu.dot_dimension_numbers<[1], [0], [0], [1], [0, 0, 1, 1], [], []>} : vector<2x32xf32>, vector<32x128xf32>, vector<2x128xf32> -> vector<2x128xf32>
    %198 = arith.addf %191, %197 : vector<2x128xf32>
    %c14 = arith.constant 14 : index
    %c0_189 = arith.constant 0 : index
    %199 = tpu.strided_load %arg8[%c14, %c0_189] {strides = array<i32: 32, 1>} : memref<64x32xf32, #tpu.memory_space<vmem>>, vector<2x32xf32>
    %c15 = arith.constant 15 : index
    %c0_190 = arith.constant 0 : index
    %200 = tpu.strided_load %arg8[%c15, %c0_190] {strides = array<i32: 32, 1>} : memref<64x32xf32, #tpu.memory_space<vmem>>, vector<2x32xf32>
    %201 = arith.maximumf %199, %200 : vector<2x32xf32>
    %c7_191 = arith.constant 7 : index
    %c0_192 = arith.constant 0 : index
    %c0_193 = arith.constant 0 : index
    %202 = vector.load %arg3[%c7_191, %c0_192, %c0_193] : memref<13x32x128xf32, #tpu.memory_space<vmem>>, vector<1x32x128xf32>
    %203 = vector.shape_cast %202 : vector<1x32x128xf32> to vector<32x128xf32>
    %cst_194 = arith.constant dense<0.000000e+00> : vector<2x128xf32>
    %204 = tpu.matmul %201, %203, %cst_194 {dimension_numbers = #tpu.dot_dimension_numbers<[1], [0], [0], [1], [0, 0, 1, 1], [], []>} : vector<2x32xf32>, vector<32x128xf32>, vector<2x128xf32> -> vector<2x128xf32>
    %205 = arith.addf %198, %204 : vector<2x128xf32>
    %c16 = arith.constant 16 : index
    %c0_195 = arith.constant 0 : index
    %206 = tpu.strided_load %arg8[%c16, %c0_195] {strides = array<i32: 32, 1>} : memref<64x32xf32, #tpu.memory_space<vmem>>, vector<2x32xf32>
    %c17 = arith.constant 17 : index
    %c0_196 = arith.constant 0 : index
    %207 = tpu.strided_load %arg8[%c17, %c0_196] {strides = array<i32: 32, 1>} : memref<64x32xf32, #tpu.memory_space<vmem>>, vector<2x32xf32>
    %208 = arith.maximumf %206, %207 : vector<2x32xf32>
    %c8_197 = arith.constant 8 : index
    %c0_198 = arith.constant 0 : index
    %c0_199 = arith.constant 0 : index
    %209 = vector.load %arg3[%c8_197, %c0_198, %c0_199] : memref<13x32x128xf32, #tpu.memory_space<vmem>>, vector<1x32x128xf32>
    %210 = vector.shape_cast %209 : vector<1x32x128xf32> to vector<32x128xf32>
    %cst_200 = arith.constant dense<0.000000e+00> : vector<2x128xf32>
    %211 = tpu.matmul %208, %210, %cst_200 {dimension_numbers = #tpu.dot_dimension_numbers<[1], [0], [0], [1], [0, 0, 1, 1], [], []>} : vector<2x32xf32>, vector<32x128xf32>, vector<2x128xf32> -> vector<2x128xf32>
    %212 = arith.addf %205, %211 : vector<2x128xf32>
    %c18 = arith.constant 18 : index
    %c0_201 = arith.constant 0 : index
    %213 = tpu.strided_load %arg8[%c18, %c0_201] {strides = array<i32: 32, 1>} : memref<64x32xf32, #tpu.memory_space<vmem>>, vector<2x32xf32>
    %c19 = arith.constant 19 : index
    %c0_202 = arith.constant 0 : index
    %214 = tpu.strided_load %arg8[%c19, %c0_202] {strides = array<i32: 32, 1>} : memref<64x32xf32, #tpu.memory_space<vmem>>, vector<2x32xf32>
    %215 = arith.maximumf %213, %214 : vector<2x32xf32>
    %c9_203 = arith.constant 9 : index
    %c0_204 = arith.constant 0 : index
    %c0_205 = arith.constant 0 : index
    %216 = vector.load %arg3[%c9_203, %c0_204, %c0_205] : memref<13x32x128xf32, #tpu.memory_space<vmem>>, vector<1x32x128xf32>
    %217 = vector.shape_cast %216 : vector<1x32x128xf32> to vector<32x128xf32>
    %cst_206 = arith.constant dense<0.000000e+00> : vector<2x128xf32>
    %218 = tpu.matmul %215, %217, %cst_206 {dimension_numbers = #tpu.dot_dimension_numbers<[1], [0], [0], [1], [0, 0, 1, 1], [], []>} : vector<2x32xf32>, vector<32x128xf32>, vector<2x128xf32> -> vector<2x128xf32>
    %219 = arith.addf %212, %218 : vector<2x128xf32>
    %c20 = arith.constant 20 : index
    %c0_207 = arith.constant 0 : index
    %220 = tpu.strided_load %arg8[%c20, %c0_207] {strides = array<i32: 32, 1>} : memref<64x32xf32, #tpu.memory_space<vmem>>, vector<2x32xf32>
    %c21 = arith.constant 21 : index
    %c0_208 = arith.constant 0 : index
    %221 = tpu.strided_load %arg8[%c21, %c0_208] {strides = array<i32: 32, 1>} : memref<64x32xf32, #tpu.memory_space<vmem>>, vector<2x32xf32>
    %222 = arith.maximumf %220, %221 : vector<2x32xf32>
    %c10_209 = arith.constant 10 : index
    %c0_210 = arith.constant 0 : index
    %c0_211 = arith.constant 0 : index
    %223 = vector.load %arg3[%c10_209, %c0_210, %c0_211] : memref<13x32x128xf32, #tpu.memory_space<vmem>>, vector<1x32x128xf32>
    %224 = vector.shape_cast %223 : vector<1x32x128xf32> to vector<32x128xf32>
    %cst_212 = arith.constant dense<0.000000e+00> : vector<2x128xf32>
    %225 = tpu.matmul %222, %224, %cst_212 {dimension_numbers = #tpu.dot_dimension_numbers<[1], [0], [0], [1], [0, 0, 1, 1], [], []>} : vector<2x32xf32>, vector<32x128xf32>, vector<2x128xf32> -> vector<2x128xf32>
    %226 = arith.addf %219, %225 : vector<2x128xf32>
    %c22 = arith.constant 22 : index
    %c0_213 = arith.constant 0 : index
    %227 = tpu.strided_load %arg8[%c22, %c0_213] {strides = array<i32: 32, 1>} : memref<64x32xf32, #tpu.memory_space<vmem>>, vector<2x32xf32>
    %c23 = arith.constant 23 : index
    %c0_214 = arith.constant 0 : index
    %228 = tpu.strided_load %arg8[%c23, %c0_214] {strides = array<i32: 32, 1>} : memref<64x32xf32, #tpu.memory_space<vmem>>, vector<2x32xf32>
    %229 = arith.maximumf %227, %228 : vector<2x32xf32>
    %c11_215 = arith.constant 11 : index
    %c0_216 = arith.constant 0 : index
    %c0_217 = arith.constant 0 : index
    %230 = vector.load %arg3[%c11_215, %c0_216, %c0_217] : memref<13x32x128xf32, #tpu.memory_space<vmem>>, vector<1x32x128xf32>
    %231 = vector.shape_cast %230 : vector<1x32x128xf32> to vector<32x128xf32>
    %cst_218 = arith.constant dense<0.000000e+00> : vector<2x128xf32>
    %232 = tpu.matmul %229, %231, %cst_218 {dimension_numbers = #tpu.dot_dimension_numbers<[1], [0], [0], [1], [0, 0, 1, 1], [], []>} : vector<2x32xf32>, vector<32x128xf32>, vector<2x128xf32> -> vector<2x128xf32>
    %233 = arith.addf %226, %232 : vector<2x128xf32>
    %c24 = arith.constant 24 : index
    %c0_219 = arith.constant 0 : index
    %234 = tpu.strided_load %arg8[%c24, %c0_219] {strides = array<i32: 32, 1>} : memref<64x32xf32, #tpu.memory_space<vmem>>, vector<2x32xf32>
    %c25 = arith.constant 25 : index
    %c0_220 = arith.constant 0 : index
    %235 = tpu.strided_load %arg8[%c25, %c0_220] {strides = array<i32: 32, 1>} : memref<64x32xf32, #tpu.memory_space<vmem>>, vector<2x32xf32>
    %236 = arith.maximumf %234, %235 : vector<2x32xf32>
    %c12_221 = arith.constant 12 : index
    %c0_222 = arith.constant 0 : index
    %c0_223 = arith.constant 0 : index
    %237 = vector.load %arg3[%c12_221, %c0_222, %c0_223] : memref<13x32x128xf32, #tpu.memory_space<vmem>>, vector<1x32x128xf32>
    %238 = vector.shape_cast %237 : vector<1x32x128xf32> to vector<32x128xf32>
    %cst_224 = arith.constant dense<0.000000e+00> : vector<2x128xf32>
    %239 = tpu.matmul %236, %238, %cst_224 {dimension_numbers = #tpu.dot_dimension_numbers<[1], [0], [0], [1], [0, 0, 1, 1], [], []>} : vector<2x32xf32>, vector<32x128xf32>, vector<2x128xf32> -> vector<2x128xf32>
    %240 = arith.addf %233, %239 : vector<2x128xf32>
    %241 = vector.broadcast %3 : vector<1x128xf32> to vector<2x128xf32>
    %242 = arith.addf %240, %241 : vector<2x128xf32>
    %cst_225 = arith.constant 0.000000e+00 : f32
    %243 = vector.broadcast %cst_225 : f32 to vector<2x128xf32>
    %244 = arith.maximumf %242, %243 : vector<2x128xf32>
    %c0_226 = arith.constant 0 : index
    %c0_227 = arith.constant 0 : index
    %245 = vector.load %arg4[%c0_226, %c0_227] : memref<128x128xf32, #tpu.memory_space<vmem>>, vector<128x128xf32>
    %cst_228 = arith.constant dense<0.000000e+00> : vector<2x128xf32>
    %246 = tpu.matmul %244, %245, %cst_228 {dimension_numbers = #tpu.dot_dimension_numbers<[1], [0], [0], [1], [0, 0, 1, 1], [], []>} : vector<2x128xf32>, vector<128x128xf32>, vector<2x128xf32> -> vector<2x128xf32>
    %247 = vector.broadcast %4 : vector<1x128xf32> to vector<2x128xf32>
    %248 = arith.addf %246, %247 : vector<2x128xf32>
    %c0_229 = arith.constant 0 : index
    %c0_230 = arith.constant 0 : index
    %249 = vector.load %arg6[%c0_229, %c0_230] : memref<2x128xf32, #tpu.memory_space<vmem>>, vector<2x128xf32>
    tpu.vector_store %arg6[%c0_229, %c0_230], %248 {strides = array<i32>} : memref<2x128xf32, #tpu.memory_space<vmem>>, vector<2x128xf32>,
    return
  }
}

</mosaic_0001>

<llo_original>
// kernel: forward.1
$region0: #{forward.1}
  #allocation0 [shape = 'u32[]', space=smem, size = 0x4, offset = 0x4, fixed_abs, tag = 'smem constant byte address 0x4 - core index']
  #allocation1 [shape = 'u32[144,128]{1,0:T(1,128)}', space=vmem, size = 0x12000, scoped, tag = 'internal scratch']
  #allocation2 [shape = 'f32[128,16]{1,0:T(8,128)}', space=vmem, size = 0x10000, scoped, tag = 'scratch operand']
  #allocation3 [shape = 'f32[64,32]{1,0:T(8,128)}', space=vmem, size = 0x8000, scoped, tag = 'scratch operand']
  %s0 = inlined_call_operand.vmem [shape: f32[128,4], index: 0, kind: input, shape index: {}]
  %s1 = inlined_call_operand.vmem [shape: f32[5,4,16], index: 1, kind: input, shape index: {}]
  %s2 = inlined_call_operand.hbm [shape: f32[5,16,32], index: 2, kind: input, shape index: {}]
  %s3 = inlined_call_operand.hbm [shape: f32[13,32,128], index: 3, kind: input, shape index: {}]
  %s4 = inlined_call_operand.vmem [shape: f32[128,128], index: 4, kind: input, shape index: {}]
  %s5 = inlined_call_operand.vmem [shape: f32[8,128], index: 5, kind: input, shape index: {}]
  %s6 = inlined_call_operand.hbm [shape: f32[2,128], index: 6, kind: output, shape index: {}]
  %s7 = sld [smem:[#allocation0]]
  $region42: #{forward.1} parent=0
    _
  %s9 = ssub.s32 1, %s7
  %s10 = scalar_select 0, %s9, %s7
  $region1: #{forward.1} parent=0
    #allocation4 [shape = 'u8[40960]{0}', space=vmem, size = 0xa000, scoped, tag = 'input window, operand 2, single buffered']
    #allocation5 [shape = 's32[1]{0}', space=sflag, size = 0x4, scoped, tag = 'scoped memory for forward.1']
    #allocation6 [shape = 's32[1]{0}', space=sflag, size = 0x4, scoped, tag = 'scoped memory for forward.1']
    #allocation7 [shape = 'u8[212992]{0}', space=vmem, size = 0x34000, scoped, tag = 'input window, operand 3, single buffered']
    #allocation8 [shape = 's32[1]{0}', space=sflag, size = 0x4, scoped, tag = 'scoped memory for forward.1']
    #allocation9 [shape = 'u8[1024]{0}', space=vmem, size = 0x400, scoped, tag = 'output window, operand 0, single buffered']
    %11 = vsyncpa [#allocation5], 0
    %12 = vsyncpa [#allocation8], 0
    %13 = vsyncpa [#allocation6], 0
    // Predicated region
    $region2: #{forward.1} parent=1 // pred_check
      _
    $region3: #{forward.1} parent=1 // pred_check_branch
      %15 = sbr.rel (0) target = $region5
    $region4: #{forward.1} parent=1 // pred_region
      _
    $region5: #{forward.1} parent=1 // pred_fallthru
      _
    // Predicated region
    $region6: #{forward.1} parent=1 // pred_check
      _
    $region7: #{forward.1} parent=1 // pred_check_branch
      %17 = sbr.rel (0) target = $region9
    $region8: #{forward.1} parent=1 // pred_region
      _
    $region9: #{forward.1} parent=1 // pred_fallthru
      _
    // Predicated region
    $region10: #{forward.1} parent=1 // pred_check
      _
    $region11: #{forward.1} parent=1 // pred_check_branch
      %19 = sbr.rel (0) target = $region13
    $region12: #{forward.1} parent=1 // pred_region
      %s21 = ssub.s32 1280, 1280
      %22 = vsyncadd [#allocation5], %s21
      %s23 = sshll.u32 [#allocation4], 4
      %s24 = int_to_ptr.vmem [resolvable:$true] %s23
      %29 = dma.hbm_to_vmem [thread:$0]  %s2, 1280, %s24, [#allocation5], 128, 128, 8
    $region13: #{forward.1} parent=1 // pred_fallthru
      _
    // Predicated region
    $region14: #{forward.1} parent=1 // pred_check
      _
    $region15: #{forward.1} parent=1 // pred_check_branch
      %31 = sbr.rel (0) target = $region17
    $region16: #{forward.1} parent=1 // pred_region
      %s33 = ssub.s32 6656, 6656
      %34 = vsyncadd [#allocation8], %s33
      %s35 = sshll.u32 [#allocation7], 4
      %s36 = int_to_ptr.vmem [resolvable:$true] %s35
      %41 = dma.hbm_to_vmem [thread:$0]  %s3, 6656, %s36, [#allocation8], 128, 128, 8
    $region17: #{forward.1} parent=1 // pred_fallthru
      _
    // Predicated region
    $region18: #{forward.1} parent=1 // pred_check
      _
    $region19: #{forward.1} parent=1 // pred_check_branch
      %43 = sbr.rel (0) target = $region21
    $region20: #{forward.1} parent=1 // pred_region
      _
    $region21: #{forward.1} parent=1 // pred_fallthru
      _
    // Predicated region
    $region22: #{forward.1} parent=1 // pred_check
      _
    $region23: #{forward.1} parent=1 // pred_check_branch
      %45 = sbr.rel (0) target = $region25
    $region24: #{forward.1} parent=1 // pred_region
      _
    $region25: #{forward.1} parent=1 // pred_fallthru
      _
    // Predicated region
    $region26: #{forward.1} parent=1 // pred_check
      _
    $region27: #{forward.1} parent=1 // pred_check_branch
      %47 = sbr.rel (0) target = $region29
    $region28: #{forward.1} parent=1 // pred_region
      %48 = dma.done [#allocation5], 1280
    $region29: #{forward.1} parent=1 // pred_fallthru
      _
    // Predicated region
    $region30: #{forward.1} parent=1 // pred_check
      _
    $region31: #{forward.1} parent=1 // pred_check_branch
      %50 = sbr.rel (0) target = $region33
    $region32: #{forward.1} parent=1 // pred_region
      %51 = dma.done [#allocation8], 6656
    $region33: #{forward.1} parent=1 // pred_fallthru
      _
    %v52 = vld [vmem:[%s5] sm:$0xff]
    %v53 = vld [vmem:[%s0] sm:$0xff]
    %v54 = vld [vmem:[%s0 + $0x8] sm:$0xff]
    %v55 = vld [vmem:[%s0 + $0x10] sm:$0xff]
    %v56 = vld [vmem:[%s0 + $0x18] sm:$0xff]
    %v57 = vld [vmem:[%s0 + $0x20] sm:$0xff]
    %v58 = vld [vmem:[%s0 + $0x28] sm:$0xff]
    %v59 = vld [vmem:[%s0 + $0x30] sm:$0xff]
    %v60 = vld [vmem:[%s0 + $0x38] sm:$0xf]
    %v61 = vld [vmem:[%s1] sm:$0xf]
    %v62 = vld [vmem:[%s0 + $0x1] sm:$0xff]
    %v63 = vld [vmem:[%s0 + $0x9] sm:$0xff]
    %v64 = vld [vmem:[%s0 + $0x11] sm:$0xff]
    %v65 = vld [vmem:[%s0 + $0x19] sm:$0xff]
    %v66 = vld [vmem:[%s0 + $0x21] sm:$0xff]
    %v67 = vld [vmem:[%s0 + $0x29] sm:$0xff]
    %v68 = vld [vmem:[%s0 + $0x31] sm:$0xff]
    %v69 = vld [vmem:[%s0 + $0x39] sm:$0xf]
    %s70 = scalar_lea.vmem %s1, 4
    %v71 = vld [vmem:[%s70] sm:$0xf]
    %vm72 = vcmask 31744
    %v74 = vsel %vm72, %v62, 0
    %v77 = vsel %vm72, %v63, 0
    %v80 = vsel %vm72, %v64, 0
    %v83 = vsel %vm72, %v65, 0
    %v86 = vsel %vm72, %v66, 0
    %v89 = vsel %vm72, %v67, 0
    %v92 = vsel %vm72, %v68, 0
    %v95 = vsel %vm72, %v69, 0
    %vm97 = vcmask 1043456
    %v99 = vsel %vm97, %v71, 0
    %101 = vmatprep.subr.mxu0 0.0
    %102 = vmatpush1.msra.mxu0 %v99
    %103 = vmatprep.subr.mxu0 0.0
    %104 = vmatpush1.msra.mxu0 0.0
    %105 = vmatprep.subr.mxu0 0.0
    %106 = vmatpush1.msra.mxu0 0.0
    %107 = vmatprep.subr.mxu0 0.0
    %108 = vmatpush1.msra.mxu0 0.0
    %109 = vmatprep.subr.mxu0 0.0
    %110 = vmatpush1.msra.mxu0 0.0
    %111 = vmatprep.subr.mxu0 0.0
    %112 = vmatpush1.msra.mxu0 0.0
    %113 = vmatprep.subr.mxu0 0.0
    %114 = vmatpush1.msra.mxu0 0.0
    %115 = vmatprep.subr.mxu0 0.0
    %116 = vmatpush1.msra.mxu0 0.0
    %117 = vmatprep.subr.mxu0 0.0
    %118 = vmatpush1.msra.mxu0 0.0
    %119 = vmatprep.subr.mxu0 0.0
    %120 = vmatpush1.msra.mxu0 0.0
    %121 = vmatprep.subr.mxu0 0.0
    %122 = vmatpush1.msra.mxu0 0.0
    %123 = vmatprep.subr.mxu0 0.0
    %124 = vmatpush1.msra.mxu0 0.0
    %125 = vmatprep.subr.mxu0 0.0
    %126 = vmatpush1.msra.mxu0 0.0
    %127 = vmatprep.subr.mxu0 0.0
    %128 = vmatpush1.msra.mxu0 0.0
    %129 = vmatprep.subr.mxu0 0.0
    %130 = vmatpush1.msra.mxu0 0.0
    %131 = vmatprep.subr.mxu0 0.0
    %132 = vmatpush1.msra.mxu0 0.0
    %133 = vmatprep.subr.mxu0 0.0
    %134 = vmatpush1.msra.mxu0 0.0
    %135 = vmatprep.subr.mxu0 0.0
    %136 = vmatpush1.msra.mxu0 0.0
    %137 = vmatprep.subr.mxu0 0.0
    %138 = vmatpush1.msra.mxu0 0.0
    %139 = vmatprep.subr.mxu0 0.0
    %140 = vmatpush1.msra.mxu0 0.0
    %141 = vmatprep.subr.mxu0 0.0
    %142 = vmatpush1.msra.mxu0 0.0
    %143 = vmatprep.subr.mxu0 0.0
    %144 = vmatpush1.msra.mxu0 0.0
    %145 = vmatprep.subr.mxu0 0.0
    %146 = vmatpush1.msra.mxu0 0.0
    %147 = vmatprep.subr.mxu0 0.0
    %148 = vmatpush1.msra.mxu0 0.0
    %149 = vmatprep.subr.mxu0 0.0
    %150 = vmatpush1.msra.mxu0 0.0
    %151 = vmatprep.subr.mxu0 0.0
    %152 = vmatpush1.msra.mxu0 0.0
    %153 = vmatprep.subr.mxu0 0.0
    %154 = vmatpush1.msra.mxu0 0.0
    %155 = vmatprep.subr.mxu0 0.0
    %156 = vmatpush1.msra.mxu0 0.0
    %157 = vmatprep.subr.mxu0 0.0
    %158 = vmatpush1.msra.mxu0 0.0
    %159 = vmatprep.subr.mxu0 0.0
    %160 = vmatpush1.msra.mxu0 0.0
    %161 = vmatprep.subr.mxu0 0.0
    %162 = vmatpush1.msra.mxu0 0.0
    %163 = vmatprep.subr.mxu0 0.0
    %164 = vmatpush1.msra.mxu0 0.0
    %165 = vmatprep.mubr.f32.mxu0 0.0
    %166 = vmatmul.mubr.f32.gmra.mrb[0].mxu0 %v74
    %v167 = vpop.f32.mrb[0].mxu0
    %v168 = vadd.f32 0.0, %v167
    %v169 = vpop.f32.mrb[0].mxu0
    %170 = vmatprep.mubr.f32.mxu0 0.0
    %171 = vmatmul.mubr.f32.gmra.mrb[0].mxu0 %v77
    %v172 = vpop.f32.mrb[0].mxu0
    %v173 = vadd.f32 0.0, %v172
    %v174 = vpop.f32.mrb[0].mxu0
    %175 = vmatprep.mubr.f32.mxu0 0.0
    %176 = vmatmul.mubr.f32.gmra.mrb[0].mxu0 %v80
    %v177 = vpop.f32.mrb[0].mxu0
    %v178 = vadd.f32 0.0, %v177
    %v179 = vpop.f32.mrb[0].mxu0
    %180 = vmatprep.mubr.f32.mxu0 0.0
    %181 = vmatmul.mubr.f32.gmra.mrb[0].mxu0 %v83
    %v182 = vpop.f32.mrb[0].mxu0
    %v183 = vadd.f32 0.0, %v182
    %v184 = vpop.f32.mrb[0].mxu0
    %185 = vmatprep.mubr.f32.mxu0 0.0
    %186 = vmatmul.mubr.f32.gmra.mrb[0].mxu0 %v86
    %v187 = vpop.f32.mrb[0].mxu0
    %v188 = vadd.f32 0.0, %v187
    %v189 = vpop.f32.mrb[0].mxu0
    %190 = vmatprep.mubr.f32.mxu0 0.0
    %191 = vmatmul.mubr.f32.gmra.mrb[0].mxu0 %v89
    %v192 = vpop.f32.mrb[0].mxu0
    %v193 = vadd.f32 0.0, %v192
    %v194 = vpop.f32.mrb[0].mxu0
    %195 = vmatprep.mubr.f32.mxu0 0.0
    %196 = vmatmul.mubr.f32.gmra.mrb[0].mxu0 %v92
    %v197 = vpop.f32.mrb[0].mxu0
    %v198 = vadd.f32 0.0, %v197
    %v199 = vpop.f32.mrb[0].mxu0
    %200 = vmatprep.mubr.f32.mxu0 0.0
    %201 = vmatmul.mubr.f32.gmra.mrb[0].mxu0 %v95
    %v202 = vpop.f32.mrb[0].mxu0
    %v203 = vadd.f32 0.0, %v202
    %v204 = vpop.f32.mrb[0].mxu0
    %205 = vdwg.mxu0
    %v207 = vsel %vm72, %v53, 0
    %v210 = vsel %vm72, %v54, 0
    %v213 = vsel %vm72, %v55, 0
    %v216 = vsel %vm72, %v56, 0
    %v219 = vsel %vm72, %v57, 0
    %v222 = vsel %vm72, %v58, 0
    %v225 = vsel %vm72, %v59, 0
    %v228 = vsel %vm72, %v60, 0
    %v231 = vsel %vm97, %v61, 0
    %233 = vmatprep.subr.mxu0 0.0
    %234 = vmatpush1.msra.mxu0 %v231
    %235 = vmatprep.subr.mxu0 0.0
    %236 = vmatpush1.msra.mxu0 0.0
    %237 = vmatprep.subr.mxu0 0.0
    %238 = vmatpush1.msra.mxu0 0.0
    %239 = vmatprep.subr.mxu0 0.0
    %240 = vmatpush1.msra.mxu0 0.0
    %241 = vmatprep.subr.mxu0 0.0
    %242 = vmatpush1.msra.mxu0 0.0
    %243 = vmatprep.subr.mxu0 0.0
    %244 = vmatpush1.msra.mxu0 0.0
    %245 = vmatprep.subr.mxu0 0.0
    %246 = vmatpush1.msra.mxu0 0.0
    %247 = vmatprep.subr.mxu0 0.0
    %248 = vmatpush1.msra.mxu0 0.0
    %249 = vmatprep.subr.mxu0 0.0
    %250 = vmatpush1.msra.mxu0 0.0
    %251 = vmatprep.subr.mxu0 0.0
    %252 = vmatpush1.msra.mxu0 0.0
    %253 = vmatprep.subr.mxu0 0.0
    %254 = vmatpush1.msra.mxu0 0.0
    %255 = vmatprep.subr.mxu0 0.0
    %256 = vmatpush1.msra.mxu0 0.0
    %257 = vmatprep.subr.mxu0 0.0
    %258 = vmatpush1.msra.mxu0 0.0
    %259 = vmatprep.subr.mxu0 0.0
    %260 = vmatpush1.msra.mxu0 0.0
    %261 = vmatprep.subr.mxu0 0.0
    %262 = vmatpush1.msra.mxu0 0.0
    %263 = vmatprep.subr.mxu0 0.0
    %264 = vmatpush1.msra.mxu0 0.0
    %265 = vmatprep.subr.mxu0 0.0
    %266 = vmatpush1.msra.mxu0 0.0
    %267 = vmatprep.subr.mxu0 0.0
    %268 = vmatpush1.msra.mxu0 0.0
    %269 = vmatprep.subr.mxu0 0.0
    %270 = vmatpush1.msra.mxu0 0.0
    %271 = vmatprep.subr.mxu0 0.0
    %272 = vmatpush1.msra.mxu0 0.0
    %273 = vmatprep.subr.mxu0 0.0
    %274 = vmatpush1.msra.mxu0 0.0
    %275 = vmatprep.subr.mxu0 0.0
    %276 = vmatpush1.msra.mxu0 0.0
    %277 = vmatprep.subr.mxu0 0.0
    %278 = vmatpush1.msra.mxu0 0.0
    %279 = vmatprep.subr.mxu0 0.0
    %280 = vmatpush1.msra.mxu0 0.0
    %281 = vmatprep.subr.mxu0 0.0
    %282 = vmatpush1.msra.mxu0 0.0
    %283 = vmatprep.subr.mxu0 0.0
    %284 = vmatpush1.msra.mxu0 0.0
    %285 = vmatprep.subr.mxu0 0.0
    %286 = vmatpush1.msra.mxu0 0.0
    %287 = vmatprep.subr.mxu0 0.0
    %288 = vmatpush1.msra.mxu0 0.0
    %289 = vmatprep.subr.mxu0 0.0
    %290 = vmatpush1.msra.mxu0 0.0
    %291 = vmatprep.subr.mxu0 0.0
    %292 = vmatpush1.msra.mxu0 0.0
    %293 = vmatprep.subr.mxu0 0.0
    %294 = vmatpush1.msra.mxu0 0.0
    %295 = vmatprep.subr.mxu0 0.0
    %296 = vmatpush1.msra.mxu0 0.0
    %297 = vmatprep.mubr.f32.mxu0 0.0
    %298 = vmatmul.mubr.f32.gmra.mrb[0].mxu0 %v207
    %v299 = vpop.f32.mrb[0].mxu0
    %v300 = vadd.f32 %v168, %v299
    %v301 = vpop.f32.mrb[0].mxu0
    %302 = vmatprep.mubr.f32.mxu0 0.0
    %303 = vmatmul.mubr.f32.gmra.mrb[0].mxu0 %v210
    %v304 = vpop.f32.mrb[0].mxu0
    %v305 = vadd.f32 %v173, %v304
    %v306 = vpop.f32.mrb[0].mxu0
    %307 = vmatprep.mubr.f32.mxu0 0.0
    %308 = vmatmul.mubr.f32.gmra.mrb[0].mxu0 %v213
    %v309 = vpop.f32.mrb[0].mxu0
    %v310 = vadd.f32 %v178, %v309
    %v311 = vpop.f32.mrb[0].mxu0
    %312 = vmatprep.mubr.f32.mxu0 0.0
    %313 = vmatmul.mubr.f32.gmra.mrb[0].mxu0 %v216
    %v314 = vpop.f32.mrb[0].mxu0
    %v315 = vadd.f32 %v183, %v314
    %v316 = vpop.f32.mrb[0].mxu0
    %317 = vmatprep.mubr.f32.mxu0 0.0
    %318 = vmatmul.mubr.f32.gmra.mrb[0].mxu0 %v219
    %v319 = vpop.f32.mrb[0].mxu0
    %v320 = vadd.f32 %v188, %v319
    %v321 = vpop.f32.mrb[0].mxu0
    %322 = vmatprep.mubr.f32.mxu0 0.0
    %323 = vmatmul.mubr.f32.gmra.mrb[0].mxu0 %v222
    %v324 = vpop.f32.mrb[0].mxu0
    %v325 = vadd.f32 %v193, %v324
    %v326 = vpop.f32.mrb[0].mxu0
    %327 = vmatprep.mubr.f32.mxu0 0.0
    %328 = vmatmul.mubr.f32.gmra.mrb[0].mxu0 %v225
    %v329 = vpop.f32.mrb[0].mxu0
    %v330 = vadd.f32 %v198, %v329
    %v331 = vpop.f32.mrb[0].mxu0
    %332 = vmatprep.mubr.f32.mxu0 0.0
    %333 = vmatmul.mubr.f32.gmra.mrb[0].mxu0 %v228
    %v334 = vpop.f32.mrb[0].mxu0
    %v335 = vadd.f32 %v203, %v334
    %v336 = vpop.f32.mrb[0].mxu0
    %337 = vdwg.mxu0
    %v338 = vld [vmem:[%s0 + $0x2] sm:$0xff]
    %v339 = vld [vmem:[%s0 + $0xa] sm:$0xff]
    %v340 = vld [vmem:[%s0 + $0x12] sm:$0xff]
    %v341 = vld [vmem:[%s0 + $0x1a] sm:$0xff]
    %v342 = vld [vmem:[%s0 + $0x22] sm:$0xff]
    %v343 = vld [vmem:[%s0 + $0x2a] sm:$0xff]
    %v344 = vld [vmem:[%s0 + $0x32] sm:$0xff]
    %v345 = vld [vmem:[%s0 + $0x3a] sm:$0xf]
    %s346 = scalar_lea.vmem %s1, 8
    %v347 = vld [vmem:[%s346] sm:$0xf]
    %v349 = vsel %vm72, %v338, 0
    %v352 = vsel %vm72, %v339, 0
    %v355 = vsel %vm72, %v340, 0
    %v358 = vsel %vm72, %v341, 0
    %v361 = vsel %vm72, %v342, 0
    %v364 = vsel %vm72, %v343, 0
    %v367 = vsel %vm72, %v344, 0
    %v370 = vsel %vm72, %v345, 0
    %v373 = vsel %vm97, %v347, 0
    %375 = vmatprep.subr.mxu0 0.0
    %376 = vmatpush1.msra.mxu0 %v373
    %377 = vmatprep.subr.mxu0 0.0
    %378 = vmatpush1.msra.mxu0 0.0
    %379 = vmatprep.subr.mxu0 0.0
    %380 = vmatpush1.msra.mxu0 0.0
    %381 = vmatprep.subr.mxu0 0.0
    %382 = vmatpush1.msra.mxu0 0.0
    %383 = vmatprep.subr.mxu0 0.0
    %384 = vmatpush1.msra.mxu0 0.0
    %385 = vmatprep.subr.mxu0 0.0
    %386 = vmatpush1.msra.mxu0 0.0
    %387 = vmatprep.subr.mxu0 0.0
    %388 = vmatpush1.msra.mxu0 0.0
    %389 = vmatprep.subr.mxu0 0.0
    %390 = vmatpush1.msra.mxu0 0.0
    %391 = vmatprep.subr.mxu0 0.0
    %392 = vmatpush1.msra.mxu0 0.0
    %393 = vmatprep.subr.mxu0 0.0
    %394 = vmatpush1.msra.mxu0 0.0
    %395 = vmatprep.subr.mxu0 0.0
    %396 = vmatpush1.msra.mxu0 0.0
    %397 = vmatprep.subr.mxu0 0.0
    %398 = vmatpush1.msra.mxu0 0.0
    %399 = vmatprep.subr.mxu0 0.0
    %400 = vmatpush1.msra.mxu0 0.0
    %401 = vmatprep.subr.mxu0 0.0
    %402 = vmatpush1.msra.mxu0 0.0
    %403 = vmatprep.subr.mxu0 0.0
    %404 = vmatpush1.msra.mxu0 0.0
    %405 = vmatprep.subr.mxu0 0.0
    %406 = vmatpush1.msra.mxu0 0.0
    %407 = vmatprep.subr.mxu0 0.0
    %408 = vmatpush1.msra.mxu0 0.0
    %409 = vmatprep.subr.mxu0 0.0
    %410 = vmatpush1.msra.mxu0 0.0
    %411 = vmatprep.subr.mxu0 0.0
    %412 = vmatpush1.msra.mxu0 0.0
    %413 = vmatprep.subr.mxu0 0.0
    %414 = vmatpush1.msra.mxu0 0.0
    %415 = vmatprep.subr.mxu0 0.0
    %416 = vmatpush1.msra.mxu0 0.0
    %417 = vmatprep.subr.mxu0 0.0
    %418 = vmatpush1.msra.mxu0 0.0
    %419 = vmatprep.subr.mxu0 0.0
    %420 = vmatpush1.msra.mxu0 0.0
    %421 = vmatprep.subr.mxu0 0.0
    %422 = vmatpush1.msra.mxu0 0.0
    %423 = vmatprep.subr.mxu0 0.0
    %424 = vmatpush1.msra.mxu0 0.0
    %425 = vmatprep.subr.mxu0 0.0
    %426 = vmatpush1.msra.mxu0 0.0
    %427 = vmatprep.subr.mxu0 0.0
    %428 = vmatpush1.msra.mxu0 0.0
    %429 = vmatprep.subr.mxu0 0.0
    %430 = vmatpush1.msra.mxu0 0.0
    %431 = vmatprep.subr.mxu0 0.0
    %432 = vmatpush1.msra.mxu0 0.0
    %433 = vmatprep.subr.mxu0 0.0
    %434 = vmatpush1.msra.mxu0 0.0
    %435 = vmatprep.subr.mxu0 0.0
    %436 = vmatpush1.msra.mxu0 0.0
    %437 = vmatprep.subr.mxu0 0.0
    %438 = vmatpush1.msra.mxu0 0.0
    %439 = vmatprep.mubr.f32.mxu0 0.0
    %440 = vmatmul.mubr.f32.gmra.mrb[0].mxu0 %v349
    %v441 = vpop.f32.mrb[0].mxu0
    %v442 = vadd.f32 0.0, %v441
    %v443 = vpop.f32.mrb[0].mxu0
    %444 = vmatprep.mubr.f32.mxu0 0.0
    %445 = vmatmul.mubr.f32.gmra.mrb[0].mxu0 %v352
    %v446 = vpop.f32.mrb[0].mxu0
    %v447 = vadd.f32 0.0, %v446
    %v448 = vpop.f32.mrb[0].mxu0
    %449 = vmatprep.mubr.f32.mxu0 0.0
    %450 = vmatmul.mubr.f32.gmra.mrb[0].mxu0 %v355
    %v451 = vpop.f32.mrb[0].mxu0
    %v452 = vadd.f32 0.0, %v451
    %v453 = vpop.f32.mrb[0].mxu0
    %454 = vmatprep.mubr.f32.mxu0 0.0
    %455 = vmatmul.mubr.f32.gmra.mrb[0].mxu0 %v358
    %v456 = vpop.f32.mrb[0].mxu0
    %v457 = vadd.f32 0.0, %v456
    %v458 = vpop.f32.mrb[0].mxu0
    %459 = vmatprep.mubr.f32.mxu0 0.0
    %460 = vmatmul.mubr.f32.gmra.mrb[0].mxu0 %v361
    %v461 = vpop.f32.mrb[0].mxu0
    %v462 = vadd.f32 0.0, %v461
    %v463 = vpop.f32.mrb[0].mxu0
    %464 = vmatprep.mubr.f32.mxu0 0.0
    %465 = vmatmul.mubr.f32.gmra.mrb[0].mxu0 %v364
    %v466 = vpop.f32.mrb[0].mxu0
    %v467 = vadd.f32 0.0, %v466
    %v468 = vpop.f32.mrb[0].mxu0
    %469 = vmatprep.mubr.f32.mxu0 0.0
    %470 = vmatmul.mubr.f32.gmra.mrb[0].mxu0 %v367
    %v471 = vpop.f32.mrb[0].mxu0
    %v472 = vadd.f32 0.0, %v471
    %v473 = vpop.f32.mrb[0].mxu0
    %474 = vmatprep.mubr.f32.mxu0 0.0
    %475 = vmatmul.mubr.f32.gmra.mrb[0].mxu0 %v370
    %v476 = vpop.f32.mrb[0].mxu0
    %v477 = vadd.f32 0.0, %v476
    %v478 = vpop.f32.mrb[0].mxu0
    %479 = vdwg.mxu0
    %v480 = vadd.f32 %v300, %v442
    %v481 = vadd.f32 %v305, %v447
    %v482 = vadd.f32 %v310, %v452
    %v483 = vadd.f32 %v315, %v457
    %v484 = vadd.f32 %v320, %v462
    %v485 = vadd.f32 %v325, %v467
    %v486 = vadd.f32 %v330, %v472
    %v487 = vadd.f32 %v335, %v477
    %v488 = vld [vmem:[%s0 + $0x3] sm:$0xff]
    %v489 = vld [vmem:[%s0 + $0xb] sm:$0xff]
    %v490 = vld [vmem:[%s0 + $0x13] sm:$0xff]
    %v491 = vld [vmem:[%s0 + $0x1b] sm:$0xff]
    %v492 = vld [vmem:[%s0 + $0x23] sm:$0xff]
    %v493 = vld [vmem:[%s0 + $0x2b] sm:$0xff]
    %v494 = vld [vmem:[%s0 + $0x33] sm:$0xff]
    %v495 = vld [vmem:[%s0 + $0x3b] sm:$0xf]
    %s496 = scalar_lea.vmem %s1, 12
    %v497 = vld [vmem:[%s496] sm:$0xf]
    %v499 = vsel %vm72, %v488, 0
    %v502 = vsel %vm72, %v489, 0
    %v505 = vsel %vm72, %v490, 0
    %v508 = vsel %vm72, %v491, 0
    %v511 = vsel %vm72, %v492, 0
    %v514 = vsel %vm72, %v493, 0
    %v517 = vsel %vm72, %v494, 0
    %v520 = vsel %vm72, %v495, 0
    %v523 = vsel %vm97, %v497, 0
    %525 = vmatprep.subr.mxu0 0.0
    %526 = vmatpush1.msra.mxu0 %v523
    %527 = vmatprep.subr.mxu0 0.0
    %528 = vmatpush1.msra.mxu0 0.0
    %529 = vmatprep.subr.mxu0 0.0
    %530 = vmatpush1.msra.mxu0 0.0
    %531 = vmatprep.subr.mxu0 0.0
    %532 = vmatpush1.msra.mxu0 0.0
    %533 = vmatprep.subr.mxu0 0.0
    %534 = vmatpush1.msra.mxu0 0.0
    %535 = vmatprep.subr.mxu0 0.0
    %536 = vmatpush1.msra.mxu0 0.0
    %537 = vmatprep.subr.mxu0 0.0
    %538 = vmatpush1.msra.mxu0 0.0
    %539 = vmatprep.subr.mxu0 0.0
    %540 = vmatpush1.msra.mxu0 0.0
    %541 = vmatprep.subr.mxu0 0.0
    %542 = vmatpush1.msra.mxu0 0.0
    %543 = vmatprep.subr.mxu0 0.0
    %544 = vmatpush1.msra.mxu0 0.0
    %545 = vmatprep.subr.mxu0 0.0
    %546 = vmatpush1.msra.mxu0 0.0
    %547 = vmatprep.subr.mxu0 0.0
    %548 = vmatpush1.msra.mxu0 0.0
    %549 = vmatprep.subr.mxu0 0.0
    %550 = vmatpush1.msra.mxu0 0.0
    %551 = vmatprep.subr.mxu0 0.0
    %552 = vmatpush1.msra.mxu0 0.0
    %553 = vmatprep.subr.mxu0 0.0
    %554 = vmatpush1.msra.mxu0 0.0
    %555 = vmatprep.subr.mxu0 0.0
    %556 = vmatpush1.msra.mxu0 0.0
    %557 = vmatprep.subr.mxu0 0.0
    %558 = vmatpush1.msra.mxu0 0.0
    %559 = vmatprep.subr.mxu0 0.0
    %560 = vmatpush1.msra.mxu0 0.0
    %561 = vmatprep.subr.mxu0 0.0
    %562 = vmatpush1.msra.mxu0 0.0
    %563 = vmatprep.subr.mxu0 0.0
    %564 = vmatpush1.msra.mxu0 0.0
    %565 = vmatprep.subr.mxu0 0.0
    %566 = vmatpush1.msra.mxu0 0.0
    %567 = vmatprep.subr.mxu0 0.0
    %568 = vmatpush1.msra.mxu0 0.0
    %569 = vmatprep.subr.mxu0 0.0
    %570 = vmatpush1.msra.mxu0 0.0
    %571 = vmatprep.subr.mxu0 0.0
    %572 = vmatpush1.msra.mxu0 0.0
    %573 = vmatprep.subr.mxu0 0.0
    %574 = vmatpush1.msra.mxu0 0.0
    %575 = vmatprep.subr.mxu0 0.0
    %576 = vmatpush1.msra.mxu0 0.0
    %577 = vmatprep.subr.mxu0 0.0
    %578 = vmatpush1.msra.mxu0 0.0
    %579 = vmatprep.subr.mxu0 0.0
    %580 = vmatpush1.msra.mxu0 0.0
    %581 = vmatprep.subr.mxu0 0.0
    %582 = vmatpush1.msra.mxu0 0.0
    %583 = vmatprep.subr.mxu0 0.0
    %584 = vmatpush1.msra.mxu0 0.0
    %585 = vmatprep.subr.mxu0 0.0
    %586 = vmatpush1.msra.mxu0 0.0
    %587 = vmatprep.subr.mxu0 0.0
    %588 = vmatpush1.msra.mxu0 0.0
    %589 = vmatprep.mubr.f32.mxu0 0.0
    %590 = vmatmul.mubr.f32.gmra.mrb[0].mxu0 %v499
    %v591 = vpop.f32.mrb[0].mxu0
    %v592 = vadd.f32 0.0, %v591
    %v593 = vpop.f32.mrb[0].mxu0
    %594 = vmatprep.mubr.f32.mxu0 0.0
    %595 = vmatmul.mubr.f32.gmra.mrb[0].mxu0 %v502
    %v596 = vpop.f32.mrb[0].mxu0
    %v597 = vadd.f32 0.0, %v596
    %v598 = vpop.f32.mrb[0].mxu0
    %599 = vmatprep.mubr.f32.mxu0 0.0
    %600 = vmatmul.mubr.f32.gmra.mrb[0].mxu0 %v505
    %v601 = vpop.f32.mrb[0].mxu0
    %v602 = vadd.f32 0.0, %v601
    %v603 = vpop.f32.mrb[0].mxu0
    %604 = vmatprep.mubr.f32.mxu0 0.0
    %605 = vmatmul.mubr.f32.gmra.mrb[0].mxu0 %v508
    %v606 = vpop.f32.mrb[0].mxu0
    %v607 = vadd.f32 0.0, %v606
    %v608 = vpop.f32.mrb[0].mxu0
    %609 = vmatprep.mubr.f32.mxu0 0.0
    %610 = vmatmul.mubr.f32.gmra.mrb[0].mxu0 %v511
    %v611 = vpop.f32.mrb[0].mxu0
    %v612 = vadd.f32 0.0, %v611
    %v613 = vpop.f32.mrb[0].mxu0
    %614 = vmatprep.mubr.f32.mxu0 0.0
    %615 = vmatmul.mubr.f32.gmra.mrb[0].mxu0 %v514
    %v616 = vpop.f32.mrb[0].mxu0
    %v617 = vadd.f32 0.0, %v616
    %v618 = vpop.f32.mrb[0].mxu0
    %619 = vmatprep.mubr.f32.mxu0 0.0
    %620 = vmatmul.mubr.f32.gmra.mrb[0].mxu0 %v517
    %v621 = vpop.f32.mrb[0].mxu0
    %v622 = vadd.f32 0.0, %v621
    %v623 = vpop.f32.mrb[0].mxu0
    %624 = vmatprep.mubr.f32.mxu0 0.0
    %625 = vmatmul.mubr.f32.gmra.mrb[0].mxu0 %v520
    %v626 = vpop.f32.mrb[0].mxu0
    %v627 = vadd.f32 0.0, %v626
    %v628 = vpop.f32.mrb[0].mxu0
    %629 = vdwg.mxu0
    %v630 = vadd.f32 %v480, %v592
    %v631 = vadd.f32 %v481, %v597
    %v632 = vadd.f32 %v482, %v602
    %v633 = vadd.f32 %v483, %v607
    %v634 = vadd.f32 %v484, %v612
    %v635 = vadd.f32 %v485, %v617
    %v636 = vadd.f32 %v486, %v622
    %v637 = vadd.f32 %v487, %v627
    %v638 = vld [vmem:[%s0 + $0x4] sm:$0xff]
    %v639 = vld [vmem:[%s0 + $0xc] sm:$0xff]
    %v640 = vld [vmem:[%s0 + $0x14] sm:$0xff]
    %v641 = vld [vmem:[%s0 + $0x1c] sm:$0xff]
    %v642 = vld [vmem:[%s0 + $0x24] sm:$0xff]
    %v643 = vld [vmem:[%s0 + $0x2c] sm:$0xff]
    %v644 = vld [vmem:[%s0 + $0x34] sm:$0xff]
    %v645 = vld [vmem:[%s0 + $0x3c] sm:$0xf]
    %s646 = scalar_lea.vmem %s1, 16
    %v647 = vld [vmem:[%s646] sm:$0xf]
    %v649 = vsel %vm72, %v638, 0
    %v652 = vsel %vm72, %v639, 0
    %v655 = vsel %vm72, %v640, 0
    %v658 = vsel %vm72, %v641, 0
    %v661 = vsel %vm72, %v642, 0
    %v664 = vsel %vm72, %v643, 0
    %v667 = vsel %vm72, %v644, 0
    %v670 = vsel %vm72, %v645, 0
    %v673 = vsel %vm97, %v647, 0
    %675 = vmatprep.subr.mxu0 0.0
    %676 = vmatpush1.msra.mxu0 %v673
    %677 = vmatprep.subr.mxu0 0.0
    %678 = vmatpush1.msra.mxu0 0.0
    %679 = vmatprep.subr.mxu0 0.0
    %680 = vmatpush1.msra.mxu0 0.0
    %681 = vmatprep.subr.mxu0 0.0
    %682 = vmatpush1.msra.mxu0 0.0
    %683 = vmatprep.subr.mxu0 0.0
    %684 = vmatpush1.msra.mxu0 0.0
    %685 = vmatprep.subr.mxu0 0.0
    %686 = vmatpush1.msra.mxu0 0.0
    %687 = vmatprep.subr.mxu0 0.0
    %688 = vmatpush1.msra.mxu0 0.0
    %689 = vmatprep.subr.mxu0 0.0
    %690 = vmatpush1.msra.mxu0 0.0
    %691 = vmatprep.subr.mxu0 0.0
    %692 = vmatpush1.msra.mxu0 0.0
    %693 = vmatprep.subr.mxu0 0.0
    %694 = vmatpush1.msra.mxu0 0.0
    %695 = vmatprep.subr.mxu0 0.0
    %696 = vmatpush1.msra.mxu0 0.0
    %697 = vmatprep.subr.mxu0 0.0
    %698 = vmatpush1.msra.mxu0 0.0
    %699 = vmatprep.subr.mxu0 0.0
    %700 = vmatpush1.msra.mxu0 0.0
    %701 = vmatprep.subr.mxu0 0.0
    %702 = vmatpush1.msra.mxu0 0.0
    %703 = vmatprep.subr.mxu0 0.0
    %704 = vmatpush1.msra.mxu0 0.0
    %705 = vmatprep.subr.mxu0 0.0
    %706 = vmatpush1.msra.mxu0 0.0
    %707 = vmatprep.subr.mxu0 0.0
    %708 = vmatpush1.msra.mxu0 0.0
    %709 = vmatprep.subr.mxu0 0.0
    %710 = vmatpush1.msra.mxu0 0.0
    %711 = vmatprep.subr.mxu0 0.0
    %712 = vmatpush1.msra.mxu0 0.0
    %713 = vmatprep.subr.mxu0 0.0
    %714 = vmatpush1.msra.mxu0 0.0
    %715 = vmatprep.subr.mxu0 0.0
    %716 = vmatpush1.msra.mxu0 0.0
    %717 = vmatprep.subr.mxu0 0.0
    %718 = vmatpush1.msra.mxu0 0.0
    %719 = vmatprep.subr.mxu0 0.0
    %720 = vmatpush1.msra.mxu0 0.0
    %721 = vmatprep.subr.mxu0 0.0
    %722 = vmatpush1.msra.mxu0 0.0
    %723 = vmatprep.subr.mxu0 0.0
    %724 = vmatpush1.msra.mxu0 0.0
    %725 = vmatprep.subr.mxu0 0.0
    %726 = vmatpush1.msra.mxu0 0.0
    %727 = vmatprep.subr.mxu0 0.0
    %728 = vmatpush1.msra.mxu0 0.0
    %729 = vmatprep.subr.mxu0 0.0
    %730 = vmatpush1.msra.mxu0 0.0
    %731 = vmatprep.subr.mxu0 0.0
    %732 = vmatpush1.msra.mxu0 0.0
    %733 = vmatprep.subr.mxu0 0.0
    %734 = vmatpush1.msra.mxu0 0.0
    %735 = vmatprep.subr.mxu0 0.0
    %736 = vmatpush1.msra.mxu0 0.0
    %737 = vmatprep.subr.mxu0 0.0
    %738 = vmatpush1.msra.mxu0 0.0
    %739 = vmatprep.mubr.f32.mxu0 0.0
    %740 = vmatmul.mubr.f32.gmra.mrb[0].mxu0 %v649
    %v741 = vpop.f32.mrb[0].mxu0
    %v742 = vadd.f32 0.0, %v741
    %v743 = vpop.f32.mrb[0].mxu0
    %744 = vmatprep.mubr.f32.mxu0 0.0
    %745 = vmatmul.mubr.f32.gmra.mrb[0].mxu0 %v652
    %v746 = vpop.f32.mrb[0].mxu0
    %v747 = vadd.f32 0.0, %v746
    %v748 = vpop.f32.mrb[0].mxu0
    %749 = vmatprep.mubr.f32.mxu0 0.0
    %750 = vmatmul.mubr.f32.gmra.mrb[0].mxu0 %v655
    %v751 = vpop.f32.mrb[0].mxu0
    %v752 = vadd.f32 0.0, %v751
    %v753 = vpop.f32.mrb[0].mxu0
    %754 = vmatprep.mubr.f32.mxu0 0.0
    %755 = vmatmul.mubr.f32.gmra.mrb[0].mxu0 %v658
    %v756 = vpop.f32.mrb[0].mxu0
    %v757 = vadd.f32 0.0, %v756
    %v758 = vpop.f32.mrb[0].mxu0
    %759 = vmatprep.mubr.f32.mxu0 0.0
    %760 = vmatmul.mubr.f32.gmra.mrb[0].mxu0 %v661
    %v761 = vpop.f32.mrb[0].mxu0
    %v762 = vadd.f32 0.0, %v761
    %v763 = vpop.f32.mrb[0].mxu0
    %764 = vmatprep.mubr.f32.mxu0 0.0
    %765 = vmatmul.mubr.f32.gmra.mrb[0].mxu0 %v664
    %v766 = vpop.f32.mrb[0].mxu0
    %v767 = vadd.f32 0.0, %v766
    %v768 = vpop.f32.mrb[0].mxu0
    %769 = vmatprep.mubr.f32.mxu0 0.0
    %770 = vmatmul.mubr.f32.gmra.mrb[0].mxu0 %v667
    %v771 = vpop.f32.mrb[0].mxu0
    %v772 = vadd.f32 0.0, %v771
    %v773 = vpop.f32.mrb[0].mxu0
    %774 = vmatprep.mubr.f32.mxu0 0.0
    %775 = vmatmul.mubr.f32.gmra.mrb[0].mxu0 %v670
    %v776 = vpop.f32.mrb[0].mxu0
    %v777 = vadd.f32 0.0, %v776
    %v778 = vpop.f32.mrb[0].mxu0
    %779 = vdwg.mxu0
    %v780 = vadd.f32 %v630, %v742
    %v781 = vadd.f32 %v631, %v747
    %v782 = vadd.f32 %v632, %v752
    %v783 = vadd.f32 %v633, %v757
    %v784 = vadd.f32 %v634, %v762
    %v785 = vadd.f32 %v635, %v767
    %v786 = vadd.f32 %v636, %v772
    %v787 = vadd.f32 %v637, %v777
    %v788 = vlaneseq
    %v789 = vshrl.u32 %v788, 7
    %v790 = vsub.s32 0, %v789
    %v791 = vrot.slane %v52, %v790
    %v792 = vadd.f32 %v780, %v791
    %v793 = vadd.f32 %v781, %v791
    %v794 = vadd.f32 %v782, %v791
    %v795 = vadd.f32 %v783, %v791
    %v796 = vadd.f32 %v784, %v791
    %v797 = vadd.f32 %v785, %v791
    %v798 = vadd.f32 %v786, %v791
    %v799 = vadd.f32 %v787, %v791
    %v800 = vmax.f32 %v792, 0.0
    %v801 = vmax.f32 %v793, 0.0
    %v802 = vmax.f32 %v794, 0.0
    %v803 = vmax.f32 %v795, 0.0
    %v804 = vmax.f32 %v796, 0.0
    %v805 = vmax.f32 %v797, 0.0
    %v806 = vmax.f32 %v798, 0.0
    %v807 = vmax.f32 %v799, 0.0
    %vm808 = vcmask 130048
    %809 = vst.msk [vmem:[#allocation2] sm:$0xff] %vm808, %v800
    %810 = vst.msk [vmem:[#allocation2 + $0x8] sm:$0xff] %vm808, %v801
    %811 = vst.msk [vmem:[#allocation2 + $0x10] sm:$0xff] %vm808, %v802
    %812 = vst.msk [vmem:[#allocation2 + $0x18] sm:$0xff] %vm808, %v803
    %813 = vst.msk [vmem:[#allocation2 + $0x20] sm:$0xff] %vm808, %v804
    %814 = vst.msk [vmem:[#allocation2 + $0x28] sm:$0xff] %vm808, %v805
    %815 = vst.msk [vmem:[#allocation2 + $0x30] sm:$0xff] %vm808, %v806
    %vm816 = vcmask 125952
    %817 = vst.msk [vmem:[#allocation2 + $0x38] sm:$0xf] %vm816, %v807
    %v818 = vld [vmem:[%s0 + $0x40] sm:$0xff]
    %v819 = vld [vmem:[%s0 + $0x48] sm:$0xff]
    %v820 = vld [vmem:[%s0 + $0x50] sm:$0xff]
    %v821 = vld [vmem:[%s0 + $0x58] sm:$0xff]
    %v822 = vld [vmem:[%s0 + $0x60] sm:$0xff]
    %v823 = vld [vmem:[%s0 + $0x68] sm:$0xff]
    %v824 = vld [vmem:[%s0 + $0x70] sm:$0xff]
    %v825 = vld [vmem:[%s0 + $0x78] sm:$0xf]
    %v826 = vld [vmem:[%s1] sm:$0xf]
    %v827 = vld [vmem:[%s0 + $0x41] sm:$0xff]
    %v828 = vld [vmem:[%s0 + $0x49] sm:$0xff]
    %v829 = vld [vmem:[%s0 + $0x51] sm:$0xff]
    %v830 = vld [vmem:[%s0 + $0x59] sm:$0xff]
    %v831 = vld [vmem:[%s0 + $0x61] sm:$0xff]
    %v832 = vld [vmem:[%s0 + $0x69] sm:$0xff]
    %v833 = vld [vmem:[%s0 + $0x71] sm:$0xff]
    %v834 = vld [vmem:[%s0 + $0x79] sm:$0xf]
    %v835 = vld [vmem:[%s70] sm:$0xf]
    %v837 = vsel %vm72, %v827, 0
    %v840 = vsel %vm72, %v828, 0
    %v843 = vsel %vm72, %v829, 0
    %v846 = vsel %vm72, %v830, 0
    %v849 = vsel %vm72, %v831, 0
    %v852 = vsel %vm72, %v832, 0
    %v855 = vsel %vm72, %v833, 0
    %v858 = vsel %vm72, %v834, 0
    %v861 = vsel %vm97, %v835, 0
    %863 = vmatprep.subr.mxu0 0.0
    %864 = vmatpush1.msra.mxu0 %v861
    %865 = vmatprep.subr.mxu0 0.0
    %866 = vmatpush1.msra.mxu0 0.0
    %867 = vmatprep.subr.mxu0 0.0
    %868 = vmatpush1.msra.mxu0 0.0
    %869 = vmatprep.subr.mxu0 0.0
    %870 = vmatpush1.msra.mxu0 0.0
    %871 = vmatprep.subr.mxu0 0.0
    %872 = vmatpush1.msra.mxu0 0.0
    %873 = vmatprep.subr.mxu0 0.0
    %874 = vmatpush1.msra.mxu0 0.0
    %875 = vmatprep.subr.mxu0 0.0
    %876 = vmatpush1.msra.mxu0 0.0
    %877 = vmatprep.subr.mxu0 0.0
    %878 = vmatpush1.msra.mxu0 0.0
    %879 = vmatprep.subr.mxu0 0.0
    %880 = vmatpush1.msra.mxu0 0.0
    %881 = vmatprep.subr.mxu0 0.0
    %882 = vmatpush1.msra.mxu0 0.0
    %883 = vmatprep.subr.mxu0 0.0
    %884 = vmatpush1.msra.mxu0 0.0
    %885 = vmatprep.subr.mxu0 0.0
    %886 = vmatpush1.msra.mxu0 0.0
    %887 = vmatprep.subr.mxu0 0.0
    %888 = vmatpush1.msra.mxu0 0.0
    %889 = vmatprep.subr.mxu0 0.0
    %890 = vmatpush1.msra.mxu0 0.0
    %891 = vmatprep.subr.mxu0 0.0
    %892 = vmatpush1.msra.mxu0 0.0
    %893 = vmatprep.subr.mxu0 0.0
    %894 = vmatpush1.msra.mxu0 0.0
    %895 = vmatprep.subr.mxu0 0.0
    %896 = vmatpush1.msra.mxu0 0.0
    %897 = vmatprep.subr.mxu0 0.0
    %898 = vmatpush1.msra.mxu0 0.0
    %899 = vmatprep.subr.mxu0 0.0
    %900 = vmatpush1.msra.mxu0 0.0
    %901 = vmatprep.subr.mxu0 0.0
    %902 = vmatpush1.msra.mxu0 0.0
    %903 = vmatprep.subr.mxu0 0.0
    %904 = vmatpush1.msra.mxu0 0.0
    %905 = vmatprep.subr.mxu0 0.0
    %906 = vmatpush1.msra.mxu0 0.0
    %907 = vmatprep.subr.mxu0 0.0
    %908 = vmatpush1.msra.mxu0 0.0
    %909 = vmatprep.subr.mxu0 0.0
    %910 = vmatpush1.msra.mxu0 0.0
    %911 = vmatprep.subr.mxu0 0.0
    %912 = vmatpush1.msra.mxu0 0.0
    %913 = vmatprep.subr.mxu0 0.0
    %914 = vmatpush1.msra.mxu0 0.0
    %915 = vmatprep.subr.mxu0 0.0
    %916 = vmatpush1.msra.mxu0 0.0
    %917 = vmatprep.subr.mxu0 0.0
    %918 = vmatpush1.msra.mxu0 0.0
    %919 = vmatprep.subr.mxu0 0.0
    %920 = vmatpush1.msra.mxu0 0.0
    %921 = vmatprep.subr.mxu0 0.0
    %922 = vmatpush1.msra.mxu0 0.0
    %923 = vmatprep.subr.mxu0 0.0
    %924 = vmatpush1.msra.mxu0 0.0
    %925 = vmatprep.subr.mxu0 0.0
    %926 = vmatpush1.msra.mxu0 0.0
    %927 = vmatprep.mubr.f32.mxu0 0.0
    %928 = vmatmul.mubr.f32.gmra.mrb[0].mxu0 %v837
    %v929 = vpop.f32.mrb[0].mxu0
    %v930 = vadd.f32 0.0, %v929
    %v931 = vpop.f32.mrb[0].mxu0
    %932 = vmatprep.mubr.f32.mxu0 0.0
    %933 = vmatmul.mubr.f32.gmra.mrb[0].mxu0 %v840
    %v934 = vpop.f32.mrb[0].mxu0
    %v935 = vadd.f32 0.0, %v934
    %v936 = vpop.f32.mrb[0].mxu0
    %937 = vmatprep.mubr.f32.mxu0 0.0
    %938 = vmatmul.mubr.f32.gmra.mrb[0].mxu0 %v843
    %v939 = vpop.f32.mrb[0].mxu0
    %v940 = vadd.f32 0.0, %v939
    %v941 = vpop.f32.mrb[0].mxu0
    %942 = vmatprep.mubr.f32.mxu0 0.0
    %943 = vmatmul.mubr.f32.gmra.mrb[0].mxu0 %v846
    %v944 = vpop.f32.mrb[0].mxu0
    %v945 = vadd.f32 0.0, %v944
    %v946 = vpop.f32.mrb[0].mxu0
    %947 = vmatprep.mubr.f32.mxu0 0.0
    %948 = vmatmul.mubr.f32.gmra.mrb[0].mxu0 %v849
    %v949 = vpop.f32.mrb[0].mxu0
    %v950 = vadd.f32 0.0, %v949
    %v951 = vpop.f32.mrb[0].mxu0
    %952 = vmatprep.mubr.f32.mxu0 0.0
    %953 = vmatmul.mubr.f32.gmra.mrb[0].mxu0 %v852
    %v954 = vpop.f32.mrb[0].mxu0
    %v955 = vadd.f32 0.0, %v954
    %v956 = vpop.f32.mrb[0].mxu0
    %957 = vmatprep.mubr.f32.mxu0 0.0
    %958 = vmatmul.mubr.f32.gmra.mrb[0].mxu0 %v855
    %v959 = vpop.f32.mrb[0].mxu0
    %v960 = vadd.f32 0.0, %v959
    %v961 = vpop.f32.mrb[0].mxu0
    %962 = vmatprep.mubr.f32.mxu0 0.0
    %963 = vmatmul.mubr.f32.gmra.mrb[0].mxu0 %v858
    %v964 = vpop.f32.mrb[0].mxu0
    %v965 = vadd.f32 0.0, %v964
    %v966 = vpop.f32.mrb[0].mxu0
    %967 = vdwg.mxu0
    %v969 = vsel %vm72, %v818, 0
    %v972 = vsel %vm72, %v819, 0
    %v975 = vsel %vm72, %v820, 0
    %v978 = vsel %vm72, %v821, 0
    %v981 = vsel %vm72, %v822, 0
    %v984 = vsel %vm72, %v823, 0
    %v987 = vsel %vm72, %v824, 0
    %v990 = vsel %vm72, %v825, 0
    %v993 = vsel %vm97, %v826, 0
    %995 = vmatprep.subr.mxu0 0.0
    %996 = vmatpush1.msra.mxu0 %v993
    %997 = vmatprep.subr.mxu0 0.0
    %998 = vmatpush1.msra.mxu0 0.0
    %999 = vmatprep.subr.mxu0 0.0
    %1000 = vmatpush1.msra.mxu0 0.0
    %1001 = vmatprep.subr.mxu0 0.0
    %1002 = vmatpush1.msra.mxu0 0.0
    %1003 = vmatprep.subr.mxu0 0.0
    %1004 = vmatpush1.msra.mxu0 0.0
    %1005 = vmatprep.subr.mxu0 0.0
    %1006 = vmatpush1.msra.mxu0 0.0
    %1007 = vmatprep.subr.mxu0 0.0
    %1008 = vmatpush1.msra.mxu0 0.0
    %1009 = vmatprep.subr.mxu0 0.0
    %1010 = vmatpush1.msra.mxu0 0.0
    %1011 = vmatprep.subr.mxu0 0.0
    %1012 = vmatpush1.msra.mxu0 0.0
    %1013 = vmatprep.subr.mxu0 0.0
    %1014 = vmatpush1.msra.mxu0 0.0
    %1015 = vmatprep.subr.mxu0 0.0
    %1016 = vmatpush1.msra.mxu0 0.0
    %1017 = vmatprep.subr.mxu0 0.0
    %1018 = vmatpush1.msra.mxu0 0.0
    %1019 = vmatprep.subr.mxu0 0.0
    %1020 = vmatpush1.msra.mxu0 0.0
    %1021 = vmatprep.subr.mxu0 0.0
    %1022 = vmatpush1.msra.mxu0 0.0
    %1023 = vmatprep.subr.mxu0 0.0
    %1024 = vmatpush1.msra.mxu0 0.0
    %1025 = vmatprep.subr.mxu0 0.0
    %1026 = vmatpush1.msra.mxu0 0.0
    %1027 = vmatprep.subr.mxu0 0.0
    %1028 = vmatpush1.msra.mxu0 0.0
    %1029 = vmatprep.subr.mxu0 0.0
    %1030 = vmatpush1.msra.mxu0 0.0
    %1031 = vmatprep.subr.mxu0 0.0
    %1032 = vmatpush1.msra.mxu0 0.0
    %1033 = vmatprep.subr.mxu0 0.0
    %1034 = vmatpush1.msra.mxu0 0.0
    %1035 = vmatprep.subr.mxu0 0.0
    %1036 = vmatpush1.msra.mxu0 0.0
    %1037 = vmatprep.subr.mxu0 0.0
    %1038 = vmatpush1.msra.mxu0 0.0
    %1039 = vmatprep.subr.mxu0 0.0
    %1040 = vmatpush1.msra.mxu0 0.0
    %1041 = vmatprep.subr.mxu0 0.0
    %1042 = vmatpush1.msra.mxu0 0.0
    %1043 = vmatprep.subr.mxu0 0.0
    %1044 = vmatpush1.msra.mxu0 0.0
    %1045 = vmatprep.subr.mxu0 0.0
    %1046 = vmatpush1.msra.mxu0 0.0
    %1047 = vmatprep.subr.mxu0 0.0
    %1048 = vmatpush1.msra.mxu0 0.0
    %1049 = vmatprep.subr.mxu0 0.0
    %1050 = vmatpush1.msra.mxu0 0.0
    %1051 = vmatprep.subr.mxu0 0.0
    %1052 = vmatpush1.msra.mxu0 0.0
    %1053 = vmatprep.subr.mxu0 0.0
    %1054 = vmatpush1.msra.mxu0 0.0
    %1055 = vmatprep.subr.mxu0 0.0
    %1056 = vmatpush1.msra.mxu0 0.0
    %1057 = vmatprep.subr.mxu0 0.0
    %1058 = vmatpush1.msra.mxu0 0.0
    %1059 = vmatprep.mubr.f32.mxu0 0.0
    %1060 = vmatmul.mubr.f32.gmra.mrb[0].mxu0 %v969
    %v1061 = vpop.f32.mrb[0].mxu0
    %v1062 = vadd.f32 %v930, %v1061
    %v1063 = vpop.f32.mrb[0].mxu0
    %1064 = vmatprep.mubr.f32.mxu0 0.0
    %1065 = vmatmul.mubr.f32.gmra.mrb[0].mxu0 %v972
    %v1066 = vpop.f32.mrb[0].mxu0
    %v1067 = vadd.f32 %v935, %v1066
    %v1068 = vpop.f32.mrb[0].mxu0
    %1069 = vmatprep.mubr.f32.mxu0 0.0
    %1070 = vmatmul.mubr.f32.gmra.mrb[0].mxu0 %v975
    %v1071 = vpop.f32.mrb[0].mxu0
    %v1072 = vadd.f32 %v940, %v1071
    %v1073 = vpop.f32.mrb[0].mxu0
    %1074 = vmatprep.mubr.f32.mxu0 0.0
    %1075 = vmatmul.mubr.f32.gmra.mrb[0].mxu0 %v978
    %v1076 = vpop.f32.mrb[0].mxu0
    %v1077 = vadd.f32 %v945, %v1076
    %v1078 = vpop.f32.mrb[0].mxu0
    %1079 = vmatprep.mubr.f32.mxu0 0.0
    %1080 = vmatmul.mubr.f32.gmra.mrb[0].mxu0 %v981
    %v1081 = vpop.f32.mrb[0].mxu0
    %v1082 = vadd.f32 %v950, %v1081
    %v1083 = vpop.f32.mrb[0].mxu0
    %1084 = vmatprep.mubr.f32.mxu0 0.0
    %1085 = vmatmul.mubr.f32.gmra.mrb[0].mxu0 %v984
    %v1086 = vpop.f32.mrb[0].mxu0
    %v1087 = vadd.f32 %v955, %v1086
    %v1088 = vpop.f32.mrb[0].mxu0
    %1089 = vmatprep.mubr.f32.mxu0 0.0
    %1090 = vmatmul.mubr.f32.gmra.mrb[0].mxu0 %v987
    %v1091 = vpop.f32.mrb[0].mxu0
    %v1092 = vadd.f32 %v960, %v1091
    %v1093 = vpop.f32.mrb[0].mxu0
    %1094 = vmatprep.mubr.f32.mxu0 0.0
    %1095 = vmatmul.mubr.f32.gmra.mrb[0].mxu0 %v990
    %v1096 = vpop.f32.mrb[0].mxu0
    %v1097 = vadd.f32 %v965, %v1096
    %v1098 = vpop.f32.mrb[0].mxu0
    %1099 = vdwg.mxu0
    %v1100 = vld [vmem:[%s0 + $0x42] sm:$0xff]
    %v1101 = vld [vmem:[%s0 + $0x4a] sm:$0xff]
    %v1102 = vld [vmem:[%s0 + $0x52] sm:$0xff]
    %v1103 = vld [vmem:[%s0 + $0x5a] sm:$0xff]
    %v1104 = vld [vmem:[%s0 + $0x62] sm:$0xff]
    %v1105 = vld [vmem:[%s0 + $0x6a] sm:$0xff]
    %v1106 = vld [vmem:[%s0 + $0x72] sm:$0xff]
    %v1107 = vld [vmem:[%s0 + $0x7a] sm:$0xf]
    %v1108 = vld [vmem:[%s346] sm:$0xf]
    %v1110 = vsel %vm72, %v1100, 0
    %v1113 = vsel %vm72, %v1101, 0
    %v1116 = vsel %vm72, %v1102, 0
    %v1119 = vsel %vm72, %v1103, 0
    %v1122 = vsel %vm72, %v1104, 0
    %v1125 = vsel %vm72, %v1105, 0
    %v1128 = vsel %vm72, %v1106, 0
    %v1131 = vsel %vm72, %v1107, 0
    %v1134 = vsel %vm97, %v1108, 0
    %1136 = vmatprep.subr.mxu0 0.0
    %1137 = vmatpush1.msra.mxu0 %v1134
    %1138 = vmatprep.subr.mxu0 0.0
    %1139 = vmatpush1.msra.mxu0 0.0
    %1140 = vmatprep.subr.mxu0 0.0
    %1141 = vmatpush1.msra.mxu0 0.0
    %1142 = vmatprep.subr.mxu0 0.0
    %1143 = vmatpush1.msra.mxu0 0.0
    %1144 = vmatprep.subr.mxu0 0.0
    %1145 = vmatpush1.msra.mxu0 0.0
    %1146 = vmatprep.subr.mxu0 0.0
    %1147 = vmatpush1.msra.mxu0 0.0
    %1148 = vmatprep.subr.mxu0 0.0
    %1149 = vmatpush1.msra.mxu0 0.0
    %1150 = vmatprep.subr.mxu0 0.0
    %1151 = vmatpush1.msra.mxu0 0.0
    %1152 = vmatprep.subr.mxu0 0.0
    %1153 = vmatpush1.msra.mxu0 0.0
    %1154 = vmatprep.subr.mxu0 0.0
    %1155 = vmatpush1.msra.mxu0 0.0
    %1156 = vmatprep.subr.mxu0 0.0
    %1157 = vmatpush1.msra.mxu0 0.0
    %1158 = vmatprep.subr.mxu0 0.0
    %1159 = vmatpush1.msra.mxu0 0.0
    %1160 = vmatprep.subr.mxu0 0.0
    %1161 = vmatpush1.msra.mxu0 0.0
    %1162 = vmatprep.subr.mxu0 0.0
    %1163 = vmatpush1.msra.mxu0 0.0
    %1164 = vmatprep.subr.mxu0 0.0
    %1165 = vmatpush1.msra.mxu0 0.0
    %1166 = vmatprep.subr.mxu0 0.0
    %1167 = vmatpush1.msra.mxu0 0.0
    %1168 = vmatprep.subr.mxu0 0.0
    %1169 = vmatpush1.msra.mxu0 0.0
    %1170 = vmatprep.subr.mxu0 0.0
    %1171 = vmatpush1.msra.mxu0 0.0
    %1172 = vmatprep.subr.mxu0 0.0
    %1173 = vmatpush1.msra.mxu0 0.0
    %1174 = vmatprep.subr.mxu0 0.0
    %1175 = vmatpush1.msra.mxu0 0.0
    %1176 = vmatprep.subr.mxu0 0.0
    %1177 = vmatpush1.msra.mxu0 0.0
    %1178 = vmatprep.subr.mxu0 0.0
    %1179 = vmatpush1.msra.mxu0 0.0
    %1180 = vmatprep.subr.mxu0 0.0
    %1181 = vmatpush1.msra.mxu0 0.0
    %1182 = vmatprep.subr.mxu0 0.0
    %1183 = vmatpush1.msra.mxu0 0.0
    %1184 = vmatprep.subr.mxu0 0.0
    %1185 = vmatpush1.msra.mxu0 0.0
    %1186 = vmatprep.subr.mxu0 0.0
    %1187 = vmatpush1.msra.mxu0 0.0
    %1188 = vmatprep.subr.mxu0 0.0
    %1189 = vmatpush1.msra.mxu0 0.0
    %1190 = vmatprep.subr.mxu0 0.0
    %1191 = vmatpush1.msra.mxu0 0.0
    %1192 = vmatprep.subr.mxu0 0.0
    %1193 = vmatpush1.msra.mxu0 0.0
    %1194 = vmatprep.subr.mxu0 0.0
    %1195 = vmatpush1.msra.mxu0 0.0
    %1196 = vmatprep.subr.mxu0 0.0
    %1197 = vmatpush1.msra.mxu0 0.0
    %1198 = vmatprep.subr.mxu0 0.0
    %1199 = vmatpush1.msra.mxu0 0.0
    %1200 = vmatprep.mubr.f32.mxu0 0.0
    %1201 = vmatmul.mubr.f32.gmra.mrb[0].mxu0 %v1110
    %v1202 = vpop.f32.mrb[0].mxu0
    %v1203 = vadd.f32 0.0, %v1202
    %v1204 = vpop.f32.mrb[0].mxu0
    %1205 = vmatprep.mubr.f32.mxu0 0.0
    %1206 = vmatmul.mubr.f32.gmra.mrb[0].mxu0 %v1113
    %v1207 = vpop.f32.mrb[0].mxu0
    %v1208 = vadd.f32 0.0, %v1207
    %v1209 = vpop.f32.mrb[0].mxu0
    %1210 = vmatprep.mubr.f32.mxu0 0.0
    %1211 = vmatmul.mubr.f32.gmra.mrb[0].mxu0 %v1116
    %v1212 = vpop.f32.mrb[0].mxu0
    %v1213 = vadd.f32 0.0, %v1212
    %v1214 = vpop.f32.mrb[0].mxu0
    %1215 = vmatprep.mubr.f32.mxu0 0.0
    %1216 = vmatmul.mubr.f32.gmra.mrb[0].mxu0 %v1119
    %v1217 = vpop.f32.mrb[0].mxu0
    %v1218 = vadd.f32 0.0, %v1217
    %v1219 = vpop.f32.mrb[0].mxu0
    %1220 = vmatprep.mubr.f32.mxu0 0.0
    %1221 = vmatmul.mubr.f32.gmra.mrb[0].mxu0 %v1122
    %v1222 = vpop.f32.mrb[0].mxu0
    %v1223 = vadd.f32 0.0, %v1222
    %v1224 = vpop.f32.mrb[0].mxu0
    %1225 = vmatprep.mubr.f32.mxu0 0.0
    %1226 = vmatmul.mubr.f32.gmra.mrb[0].mxu0 %v1125
    %v1227 = vpop.f32.mrb[0].mxu0
    %v1228 = vadd.f32 0.0, %v1227
    %v1229 = vpop.f32.mrb[0].mxu0
    %1230 = vmatprep.mubr.f32.mxu0 0.0
    %1231 = vmatmul.mubr.f32.gmra.mrb[0].mxu0 %v1128
    %v1232 = vpop.f32.mrb[0].mxu0
    %v1233 = vadd.f32 0.0, %v1232
    %v1234 = vpop.f32.mrb[0].mxu0
    %1235 = vmatprep.mubr.f32.mxu0 0.0
    %1236 = vmatmul.mubr.f32.gmra.mrb[0].mxu0 %v1131
    %v1237 = vpop.f32.mrb[0].mxu0
    %v1238 = vadd.f32 0.0, %v1237
    %v1239 = vpop.f32.mrb[0].mxu0
    %1240 = vdwg.mxu0
    %v1241 = vadd.f32 %v1062, %v1203
    %v1242 = vadd.f32 %v1067, %v1208
    %v1243 = vadd.f32 %v1072, %v1213
    %v1244 = vadd.f32 %v1077, %v1218
    %v1245 = vadd.f32 %v1082, %v1223
    %v1246 = vadd.f32 %v1087, %v1228
    %v1247 = vadd.f32 %v1092, %v1233
    %v1248 = vadd.f32 %v1097, %v1238
    %v1249 = vld [vmem:[%s0 + $0x43] sm:$0xff]
    %v1250 = vld [vmem:[%s0 + $0x4b] sm:$0xff]
    %v1251 = vld [vmem:[%s0 + $0x53] sm:$0xff]
    %v1252 = vld [vmem:[%s0 + $0x5b] sm:$0xff]
    %v1253 = vld [vmem:[%s0 + $0x63] sm:$0xff]
    %v1254 = vld [vmem:[%s0 + $0x6b] sm:$0xff]
    %v1255 = vld [vmem:[%s0 + $0x73] sm:$0xff]
    %v1256 = vld [vmem:[%s0 + $0x7b] sm:$0xf]
    %v1257 = vld [vmem:[%s496] sm:$0xf]
    %v1259 = vsel %vm72, %v1249, 0
    %v1262 = vsel %vm72, %v1250, 0
    %v1265 = vsel %vm72, %v1251, 0
    %v1268 = vsel %vm72, %v1252, 0
    %v1271 = vsel %vm72, %v1253, 0
    %v1274 = vsel %vm72, %v1254, 0
    %v1277 = vsel %vm72, %v1255, 0
    %v1280 = vsel %vm72, %v1256, 0
    %v1283 = vsel %vm97, %v1257, 0
    %1285 = vmatprep.subr.mxu0 0.0
    %1286 = vmatpush1.msra.mxu0 %v1283
    %1287 = vmatprep.subr.mxu0 0.0
    %1288 = vmatpush1.msra.mxu0 0.0
    %1289 = vmatprep.subr.mxu0 0.0
    %1290 = vmatpush1.msra.mxu0 0.0
    %1291 = vmatprep.subr.mxu0 0.0
    %1292 = vmatpush1.msra.mxu0 0.0
    %1293 = vmatprep.subr.mxu0 0.0
    %1294 = vmatpush1.msra.mxu0 0.0
    %1295 = vmatprep.subr.mxu0 0.0
    %1296 = vmatpush1.msra.mxu0 0.0
    %1297 = vmatprep.subr.mxu0 0.0
    %1298 = vmatpush1.msra.mxu0 0.0
    %1299 = vmatprep.subr.mxu0 0.0
    %1300 = vmatpush1.msra.mxu0 0.0
    %1301 = vmatprep.subr.mxu0 0.0
    %1302 = vmatpush1.msra.mxu0 0.0
    %1303 = vmatprep.subr.mxu0 0.0
    %1304 = vmatpush1.msra.mxu0 0.0
    %1305 = vmatprep.subr.mxu0 0.0
    %1306 = vmatpush1.msra.mxu0 0.0
    %1307 = vmatprep.subr.mxu0 0.0
    %1308 = vmatpush1.msra.mxu0 0.0
    %1309 = vmatprep.subr.mxu0 0.0
    %1310 = vmatpush1.msra.mxu0 0.0
    %1311 = vmatprep.subr.mxu0 0.0
    %1312 = vmatpush1.msra.mxu0 0.0
    %1313 = vmatprep.subr.mxu0 0.0
    %1314 = vmatpush1.msra.mxu0 0.0
    %1315 = vmatprep.subr.mxu0 0.0
    %1316 = vmatpush1.msra.mxu0 0.0
    %1317 = vmatprep.subr.mxu0 0.0
    %1318 = vmatpush1.msra.mxu0 0.0
    %1319 = vmatprep.subr.mxu0 0.0
    %1320 = vmatpush1.msra.mxu0 0.0
    %1321 = vmatprep.subr.mxu0 0.0
    %1322 = vmatpush1.msra.mxu0 0.0
    %1323 = vmatprep.subr.mxu0 0.0
    %1324 = vmatpush1.msra.mxu0 0.0
    %1325 = vmatprep.subr.mxu0 0.0
    %1326 = vmatpush1.msra.mxu0 0.0
    %1327 = vmatprep.subr.mxu0 0.0
    %1328 = vmatpush1.msra.mxu0 0.0
    %1329 = vmatprep.subr.mxu0 0.0
    %1330 = vmatpush1.msra.mxu0 0.0
    %1331 = vmatprep.subr.mxu0 0.0
    %1332 = vmatpush1.msra.mxu0 0.0
    %1333 = vmatprep.subr.mxu0 0.0
    %1334 = vmatpush1.msra.mxu0 0.0
    %1335 = vmatprep.subr.mxu0 0.0
    %1336 = vmatpush1.msra.mxu0 0.0
    %1337 = vmatprep.subr.mxu0 0.0
    %1338 = vmatpush1.msra.mxu0 0.0
    %1339 = vmatprep.subr.mxu0 0.0
    %1340 = vmatpush1.msra.mxu0 0.0
    %1341 = vmatprep.subr.mxu0 0.0
    %1342 = vmatpush1.msra.mxu0 0.0
    %1343 = vmatprep.subr.mxu0 0.0
    %1344 = vmatpush1.msra.mxu0 0.0
    %1345 = vmatprep.subr.mxu0 0.0
    %1346 = vmatpush1.msra.mxu0 0.0
    %1347 = vmatprep.subr.mxu0 0.0
    %1348 = vmatpush1.msra.mxu0 0.0
    %1349 = vmatprep.mubr.f32.mxu0 0.0
    %1350 = vmatmul.mubr.f32.gmra.mrb[0].mxu0 %v1259
    %v1351 = vpop.f32.mrb[0].mxu0
    %v1352 = vadd.f32 0.0, %v1351
    %v1353 = vpop.f32.mrb[0].mxu0
    %1354 = vmatprep.mubr.f32.mxu0 0.0
    %1355 = vmatmul.mubr.f32.gmra.mrb[0].mxu0 %v1262
    %v1356 = vpop.f32.mrb[0].mxu0
    %v1357 = vadd.f32 0.0, %v1356
    %v1358 = vpop.f32.mrb[0].mxu0
    %1359 = vmatprep.mubr.f32.mxu0 0.0
    %1360 = vmatmul.mubr.f32.gmra.mrb[0].mxu0 %v1265
    %v1361 = vpop.f32.mrb[0].mxu0
    %v1362 = vadd.f32 0.0, %v1361
    %v1363 = vpop.f32.mrb[0].mxu0
    %1364 = vmatprep.mubr.f32.mxu0 0.0
    %1365 = vmatmul.mubr.f32.gmra.mrb[0].mxu0 %v1268
    %v1366 = vpop.f32.mrb[0].mxu0
    %v1367 = vadd.f32 0.0, %v1366
    %v1368 = vpop.f32.mrb[0].mxu0
    %1369 = vmatprep.mubr.f32.mxu0 0.0
    %1370 = vmatmul.mubr.f32.gmra.mrb[0].mxu0 %v1271
    %v1371 = vpop.f32.mrb[0].mxu0
    %v1372 = vadd.f32 0.0, %v1371
    %v1373 = vpop.f32.mrb[0].mxu0
    %1374 = vmatprep.mubr.f32.mxu0 0.0
    %1375 = vmatmul.mubr.f32.gmra.mrb[0].mxu0 %v1274
    %v1376 = vpop.f32.mrb[0].mxu0
    %v1377 = vadd.f32 0.0, %v1376
    %v1378 = vpop.f32.mrb[0].mxu0
    %1379 = vmatprep.mubr.f32.mxu0 0.0
    %1380 = vmatmul.mubr.f32.gmra.mrb[0].mxu0 %v1277
    %v1381 = vpop.f32.mrb[0].mxu0
    %v1382 = vadd.f32 0.0, %v1381
    %v1383 = vpop.f32.mrb[0].mxu0
    %1384 = vmatprep.mubr.f32.mxu0 0.0
    %1385 = vmatmul.mubr.f32.gmra.mrb[0].mxu0 %v1280
    %v1386 = vpop.f32.mrb[0].mxu0
    %v1387 = vadd.f32 0.0, %v1386
    %v1388 = vpop.f32.mrb[0].mxu0
    %1389 = vdwg.mxu0
    %v1390 = vadd.f32 %v1241, %v1352
    %v1391 = vadd.f32 %v1242, %v1357
    %v1392 = vadd.f32 %v1243, %v1362
    %v1393 = vadd.f32 %v1244, %v1367
    %v1394 = vadd.f32 %v1245, %v1372
    %v1395 = vadd.f32 %v1246, %v1377
    %v1396 = vadd.f32 %v1247, %v1382
    %v1397 = vadd.f32 %v1248, %v1387
    %v1398 = vld [vmem:[%s0 + $0x44] sm:$0xff]
    %v1399 = vld [vmem:[%s0 + $0x4c] sm:$0xff]
    %v1400 = vld [vmem:[%s0 + $0x54] sm:$0xff]
    %v1401 = vld [vmem:[%s0 + $0x5c] sm:$0xff]
    %v1402 = vld [vmem:[%s0 + $0x64] sm:$0xff]
    %v1403 = vld [vmem:[%s0 + $0x6c] sm:$0xff]
    %v1404 = vld [vmem:[%s0 + $0x74] sm:$0xff]
    %v1405 = vld [vmem:[%s0 + $0x7c] sm:$0xf]
    %v1406 = vld [vmem:[%s646] sm:$0xf]
    %v1408 = vsel %vm72, %v1398, 0
    %v1411 = vsel %vm72, %v1399, 0
    %v1414 = vsel %vm72, %v1400, 0
    %v1417 = vsel %vm72, %v1401, 0
    %v1420 = vsel %vm72, %v1402, 0
    %v1423 = vsel %vm72, %v1403, 0
    %v1426 = vsel %vm72, %v1404, 0
    %v1429 = vsel %vm72, %v1405, 0
    %v1432 = vsel %vm97, %v1406, 0
    %1434 = vmatprep.subr.mxu0 0.0
    %1435 = vmatpush1.msra.mxu0 %v1432
    %1436 = vmatprep.subr.mxu0 0.0
    %1437 = vmatpush1.msra.mxu0 0.0
    %1438 = vmatprep.subr.mxu0 0.0
    %1439 = vmatpush1.msra.mxu0 0.0
    %1440 = vmatprep.subr.mxu0 0.0
    %1441 = vmatpush1.msra.mxu0 0.0
    %1442 = vmatprep.subr.mxu0 0.0
    %1443 = vmatpush1.msra.mxu0 0.0
    %1444 = vmatprep.subr.mxu0 0.0
    %1445 = vmatpush1.msra.mxu0 0.0
    %1446 = vmatprep.subr.mxu0 0.0
    %1447 = vmatpush1.msra.mxu0 0.0
    %1448 = vmatprep.subr.mxu0 0.0
    %1449 = vmatpush1.msra.mxu0 0.0
    %1450 = vmatprep.subr.mxu0 0.0
    %1451 = vmatpush1.msra.mxu0 0.0
    %1452 = vmatprep.subr.mxu0 0.0
    %1453 = vmatpush1.msra.mxu0 0.0
    %1454 = vmatprep.subr.mxu0 0.0
    %1455 = vmatpush1.msra.mxu0 0.0
    %1456 = vmatprep.subr.mxu0 0.0
    %1457 = vmatpush1.msra.mxu0 0.0
    %1458 = vmatprep.subr.mxu0 0.0
    %1459 = vmatpush1.msra.mxu0 0.0
    %1460 = vmatprep.subr.mxu0 0.0
    %1461 = vmatpush1.msra.mxu0 0.0
    %1462 = vmatprep.subr.mxu0 0.0
    %1463 = vmatpush1.msra.mxu0 0.0
    %1464 = vmatprep.subr.mxu0 0.0
    %1465 = vmatpush1.msra.mxu0 0.0
    %1466 = vmatprep.subr.mxu0 0.0
    %1467 = vmatpush1.msra.mxu0 0.0
    %1468 = vmatprep.subr.mxu0 0.0
    %1469 = vmatpush1.msra.mxu0 0.0
    %1470 = vmatprep.subr.mxu0 0.0
    %1471 = vmatpush1.msra.mxu0 0.0
    %1472 = vmatprep.subr.mxu0 0.0
    %1473 = vmatpush1.msra.mxu0 0.0
    %1474 = vmatprep.subr.mxu0 0.0
    %1475 = vmatpush1.msra.mxu0 0.0
    %1476 = vmatprep.subr.mxu0 0.0
    %1477 = vmatpush1.msra.mxu0 0.0
    %1478 = vmatprep.subr.mxu0 0.0
    %1479 = vmatpush1.msra.mxu0 0.0
    %1480 = vmatprep.subr.mxu0 0.0
    %1481 = vmatpush1.msra.mxu0 0.0
    %1482 = vmatprep.subr.mxu0 0.0
    %1483 = vmatpush1.msra.mxu0 0.0
    %1484 = vmatprep.subr.mxu0 0.0
    %1485 = vmatpush1.msra.mxu0 0.0
    %1486 = vmatprep.subr.mxu0 0.0
    %1487 = vmatpush1.msra.mxu0 0.0
    %1488 = vmatprep.subr.mxu0 0.0
    %1489 = vmatpush1.msra.mxu0 0.0
    %1490 = vmatprep.subr.mxu0 0.0
    %1491 = vmatpush1.msra.mxu0 0.0
    %1492 = vmatprep.subr.mxu0 0.0
    %1493 = vmatpush1.msra.mxu0 0.0
    %1494 = vmatprep.subr.mxu0 0.0
    %1495 = vmatpush1.msra.mxu0 0.0
    %1496 = vmatprep.subr.mxu0 0.0
    %1497 = vmatpush1.msra.mxu0 0.0
    %1498 = vmatprep.mubr.f32.mxu0 0.0
    %1499 = vmatmul.mubr.f32.gmra.mrb[0].mxu0 %v1408
    %v1500 = vpop.f32.mrb[0].mxu0
    %v1501 = vadd.f32 0.0, %v1500
    %v1502 = vpop.f32.mrb[0].mxu0
    %1503 = vmatprep.mubr.f32.mxu0 0.0
    %1504 = vmatmul.mubr.f32.gmra.mrb[0].mxu0 %v1411
    %v1505 = vpop.f32.mrb[0].mxu0
    %v1506 = vadd.f32 0.0, %v1505
    %v1507 = vpop.f32.mrb[0].mxu0
    %1508 = vmatprep.mubr.f32.mxu0 0.0
    %1509 = vmatmul.mubr.f32.gmra.mrb[0].mxu0 %v1414
    %v1510 = vpop.f32.mrb[0].mxu0
    %v1511 = vadd.f32 0.0, %v1510
    %v1512 = vpop.f32.mrb[0].mxu0
    %1513 = vmatprep.mubr.f32.mxu0 0.0
    %1514 = vmatmul.mubr.f32.gmra.mrb[0].mxu0 %v1417
    %v1515 = vpop.f32.mrb[0].mxu0
    %v1516 = vadd.f32 0.0, %v1515
    %v1517 = vpop.f32.mrb[0].mxu0
    %1518 = vmatprep.mubr.f32.mxu0 0.0
    %1519 = vmatmul.mubr.f32.gmra.mrb[0].mxu0 %v1420
    %v1520 = vpop.f32.mrb[0].mxu0
    %v1521 = vadd.f32 0.0, %v1520
    %v1522 = vpop.f32.mrb[0].mxu0
    %1523 = vmatprep.mubr.f32.mxu0 0.0
    %1524 = vmatmul.mubr.f32.gmra.mrb[0].mxu0 %v1423
    %v1525 = vpop.f32.mrb[0].mxu0
    %v1526 = vadd.f32 0.0, %v1525
    %v1527 = vpop.f32.mrb[0].mxu0
    %1528 = vmatprep.mubr.f32.mxu0 0.0
    %1529 = vmatmul.mubr.f32.gmra.mrb[0].mxu0 %v1426
    %v1530 = vpop.f32.mrb[0].mxu0
    %v1531 = vadd.f32 0.0, %v1530
    %v1532 = vpop.f32.mrb[0].mxu0
    %1533 = vmatprep.mubr.f32.mxu0 0.0
    %1534 = vmatmul.mubr.f32.gmra.mrb[0].mxu0 %v1429
    %v1535 = vpop.f32.mrb[0].mxu0
    %v1536 = vadd.f32 0.0, %v1535
    %v1537 = vpop.f32.mrb[0].mxu0
    %1538 = vdwg.mxu0
    %v1539 = vadd.f32 %v1390, %v1501
    %v1540 = vadd.f32 %v1391, %v1506
    %v1541 = vadd.f32 %v1392, %v1511
    %v1542 = vadd.f32 %v1393, %v1516
    %v1543 = vadd.f32 %v1394, %v1521
    %v1544 = vadd.f32 %v1395, %v1526
    %v1545 = vadd.f32 %v1396, %v1531
    %v1546 = vadd.f32 %v1397, %v1536
    %v1547 = vadd.f32 %v1539, %v791
    %v1548 = vadd.f32 %v1540, %v791
    %v1549 = vadd.f32 %v1541, %v791
    %v1550 = vadd.f32 %v1542, %v791
    %v1551 = vadd.f32 %v1543, %v791
    %v1552 = vadd.f32 %v1544, %v791
    %v1553 = vadd.f32 %v1545, %v791
    %v1554 = vadd.f32 %v1546, %v791
    %v1555 = vmax.f32 %v1547, 0.0
    %v1556 = vmax.f32 %v1548, 0.0
    %v1557 = vmax.f32 %v1549, 0.0
    %v1558 = vmax.f32 %v1550, 0.0
    %v1559 = vmax.f32 %v1551, 0.0
    %v1560 = vmax.f32 %v1552, 0.0
    %v1561 = vmax.f32 %v1553, 0.0
    %v1562 = vmax.f32 %v1554, 0.0
    %1563 = vst.msk [vmem:[#allocation2 + $0x40] sm:$0xff] %vm808, %v1555
    %1564 = vst.msk [vmem:[#allocation2 + $0x48] sm:$0xff] %vm808, %v1556
    %1565 = vst.msk [vmem:[#allocation2 + $0x50] sm:$0xff] %vm808, %v1557
    %1566 = vst.msk [vmem:[#allocation2 + $0x58] sm:$0xff] %vm808, %v1558
    %1567 = vst.msk [vmem:[#allocation2 + $0x60] sm:$0xff] %vm808, %v1559
    %1568 = vst.msk [vmem:[#allocation2 + $0x68] sm:$0xff] %vm808, %v1560
    %1569 = vst.msk [vmem:[#allocation2 + $0x70] sm:$0xff] %vm808, %v1561
    %1570 = vst.msk [vmem:[#allocation2 + $0x78] sm:$0xf] %vm816, %v1562
    %v1571 = vld [vmem:[#allocation2] ss:$2 sm:$0xff]
    %s1572 = scalar_lea.vmem [#allocation2], 16
    %v1573 = vld [vmem:[%s1572] ss:$2 sm:$0xff]
    %s1574 = scalar_lea.vmem [#allocation2], 32
    %v1575 = vld [vmem:[%s1574] ss:$2 sm:$0xff]
    %s1576 = scalar_lea.vmem [#allocation2], 48
    %v1577 = vld [vmem:[%s1576] ss:$2 sm:$0x3]
    %s1578 = scalar_lea.vmem [#allocation2], 1
    %v1579 = vld [vmem:[%s1578] ss:$2 sm:$0xff]
    %s1580 = scalar_lea.vmem [#allocation2], 17
    %v1581 = vld [vmem:[%s1580] ss:$2 sm:$0xff]
    %s1582 = scalar_lea.vmem [#allocation2], 33
    %v1583 = vld [vmem:[%s1582] ss:$2 sm:$0xff]
    %s1584 = scalar_lea.vmem [#allocation2], 49
    %v1585 = vld [vmem:[%s1584] ss:$2 sm:$0x3]
    %v1586 = vmax.f32 %v1571, %v1579
    %v1587 = vmax.f32 %v1573, %v1581
    %v1588 = vmax.f32 %v1575, %v1583
    %v1589 = vmax.f32 %v1577, %v1585
    %v1590 = vld [vmem:[#allocation4] sm:$0xff]
    %v1591 = vld [vmem:[#allocation4 + $0x8] sm:$0xff]
    %s1592 = scalar_lea.vmem [#allocation2], 2
    %v1593 = vld [vmem:[%s1592] ss:$2 sm:$0xff]
    %s1594 = scalar_lea.vmem [#allocation2], 18
    %v1595 = vld [vmem:[%s1594] ss:$2 sm:$0xff]
    %s1596 = scalar_lea.vmem [#allocation2], 34
    %v1597 = vld [vmem:[%s1596] ss:$2 sm:$0xff]
    %s1598 = scalar_lea.vmem [#allocation2], 50
    %v1599 = vld [vmem:[%s1598] ss:$2 sm:$0x3]
    %s1600 = scalar_lea.vmem [#allocation2], 3
    %v1601 = vld [vmem:[%s1600] ss:$2 sm:$0xff]
    %s1602 = scalar_lea.vmem [#allocation2], 19
    %v1603 = vld [vmem:[%s1602] ss:$2 sm:$0xff]
    %s1604 = scalar_lea.vmem [#allocation2], 35
    %v1605 = vld [vmem:[%s1604] ss:$2 sm:$0xff]
    %s1606 = scalar_lea.vmem [#allocation2], 51
    %v1607 = vld [vmem:[%s1606] ss:$2 sm:$0x3]
    %v1608 = vmax.f32 %v1593, %v1601
    %v1609 = vmax.f32 %v1595, %v1603
    %v1610 = vmax.f32 %v1597, %v1605
    %v1611 = vmax.f32 %v1599, %v1607
    %s1612 = scalar_lea.vmem [#allocation4], 16
    %v1613 = vld [vmem:[%s1612] sm:$0xff]
    %v1614 = vld [vmem:[%s1612 + $0x8] sm:$0xff]
    %v1616 = vsel %vm808, %v1608, 0
    %v1619 = vsel %vm808, %v1609, 0
    %v1622 = vsel %vm808, %v1610, 0
    %v1625 = vsel %vm808, %v1611, 0
    %1627 = vmatprep.subr.mxu0 0.0
    %1628 = vmatpush1.msra.mxu0 %v1613
    %1629 = vmatprep.subr.mxu0 0.0
    %1630 = vmatpush1.msra.mxu0 %v1614
    %1631 = vmatprep.subr.mxu0 0.0
    %1632 = vmatpush1.msra.mxu0 0.0
    %1633 = vmatprep.subr.mxu0 0.0
    %1634 = vmatpush1.msra.mxu0 0.0
    %1635 = vmatprep.subr.mxu0 0.0
    %1636 = vmatpush1.msra.mxu0 0.0
    %1637 = vmatprep.subr.mxu0 0.0
    %1638 = vmatpush1.msra.mxu0 0.0
    %1639 = vmatprep.subr.mxu0 0.0
    %1640 = vmatpush1.msra.mxu0 0.0
    %1641 = vmatprep.subr.mxu0 0.0
    %1642 = vmatpush1.msra.mxu0 0.0
    %1643 = vmatprep.subr.mxu0 0.0
    %1644 = vmatpush1.msra.mxu0 0.0
    %1645 = vmatprep.subr.mxu0 0.0
    %1646 = vmatpush1.msra.mxu0 0.0
    %1647 = vmatprep.subr.mxu0 0.0
    %1648 = vmatpush1.msra.mxu0 0.0
    %1649 = vmatprep.subr.mxu0 0.0
    %1650 = vmatpush1.msra.mxu0 0.0
    %1651 = vmatprep.subr.mxu0 0.0
    %1652 = vmatpush1.msra.mxu0 0.0
    %1653 = vmatprep.subr.mxu0 0.0
    %1654 = vmatpush1.msra.mxu0 0.0
    %1655 = vmatprep.subr.mxu0 0.0
    %1656 = vmatpush1.msra.mxu0 0.0
    %1657 = vmatprep.subr.mxu0 0.0
    %1658 = vmatpush1.msra.mxu0 0.0
    %1659 = vmatprep.subr.mxu0 0.0
    %1660 = vmatpush1.msra.mxu0 0.0
    %1661 = vmatprep.subr.mxu0 0.0
    %1662 = vmatpush1.msra.mxu0 0.0
    %1663 = vmatprep.subr.mxu0 0.0
    %1664 = vmatpush1.msra.mxu0 0.0
    %1665 = vmatprep.subr.mxu0 0.0
    %1666 = vmatpush1.msra.mxu0 0.0
    %1667 = vmatprep.subr.mxu0 0.0
    %1668 = vmatpush1.msra.mxu0 0.0
    %1669 = vmatprep.subr.mxu0 0.0
    %1670 = vmatpush1.msra.mxu0 0.0
    %1671 = vmatprep.subr.mxu0 0.0
    %1672 = vmatpush1.msra.mxu0 0.0
    %1673 = vmatprep.subr.mxu0 0.0
    %1674 = vmatpush1.msra.mxu0 0.0
    %1675 = vmatprep.subr.mxu0 0.0
    %1676 = vmatpush1.msra.mxu0 0.0
    %1677 = vmatprep.subr.mxu0 0.0
    %1678 = vmatpush1.msra.mxu0 0.0
    %1679 = vmatprep.subr.mxu0 0.0
    %1680 = vmatpush1.msra.mxu0 0.0
    %1681 = vmatprep.subr.mxu0 0.0
    %1682 = vmatpush1.msra.mxu0 0.0
    %1683 = vmatprep.subr.mxu0 0.0
    %1684 = vmatpush1.msra.mxu0 0.0
    %1685 = vmatprep.subr.mxu0 0.0
    %1686 = vmatpush1.msra.mxu0 0.0
    %1687 = vmatprep.subr.mxu0 0.0
    %1688 = vmatpush1.msra.mxu0 0.0
    %1689 = vmatprep.subr.mxu0 0.0
    %1690 = vmatpush1.msra.mxu0 0.0
    %1691 = vmatprep.mubr.f32.mxu0 0.0
    %1692 = vmatmul.mubr.f32.gmra.mrb[0].mxu0 %v1616
    %v1693 = vpop.f32.mrb[0].mxu0
    %v1694 = vadd.f32 0.0, %v1693
    %v1695 = vpop.f32.mrb[0].mxu0
    %1696 = vmatprep.mubr.f32.mxu0 0.0
    %1697 = vmatmul.mubr.f32.gmra.mrb[0].mxu0 %v1619
    %v1698 = vpop.f32.mrb[0].mxu0
    %v1699 = vadd.f32 0.0, %v1698
    %v1700 = vpop.f32.mrb[0].mxu0
    %1701 = vmatprep.mubr.f32.mxu0 0.0
    %1702 = vmatmul.mubr.f32.gmra.mrb[0].mxu0 %v1622
    %v1703 = vpop.f32.mrb[0].mxu0
    %v1704 = vadd.f32 0.0, %v1703
    %v1705 = vpop.f32.mrb[0].mxu0
    %1706 = vmatprep.mubr.f32.mxu0 0.0
    %1707 = vmatmul.mubr.f32.gmra.mrb[0].mxu0 %v1625
    %v1708 = vpop.f32.mrb[0].mxu0
    %v1709 = vadd.f32 0.0, %v1708
    %v1710 = vpop.f32.mrb[0].mxu0
    %1711 = vdwg.mxu0
    %v1713 = vsel %vm808, %v1586, 0
    %v1716 = vsel %vm808, %v1587, 0
    %v1719 = vsel %vm808, %v1588, 0
    %v1722 = vsel %vm808, %v1589, 0
    %1724 = vmatprep.subr.mxu0 0.0
    %1725 = vmatpush1.msra.mxu0 %v1590
    %1726 = vmatprep.subr.mxu0 0.0
    %1727 = vmatpush1.msra.mxu0 %v1591
    %1728 = vmatprep.subr.mxu0 0.0
    %1729 = vmatpush1.msra.mxu0 0.0
    %1730 = vmatprep.subr.mxu0 0.0
    %1731 = vmatpush1.msra.mxu0 0.0
    %1732 = vmatprep.subr.mxu0 0.0
    %1733 = vmatpush1.msra.mxu0 0.0
    %1734 = vmatprep.subr.mxu0 0.0
    %1735 = vmatpush1.msra.mxu0 0.0
    %1736 = vmatprep.subr.mxu0 0.0
    %1737 = vmatpush1.msra.mxu0 0.0
    %1738 = vmatprep.subr.mxu0 0.0
    %1739 = vmatpush1.msra.mxu0 0.0
    %1740 = vmatprep.subr.mxu0 0.0
    %1741 = vmatpush1.msra.mxu0 0.0
    %1742 = vmatprep.subr.mxu0 0.0
    %1743 = vmatpush1.msra.mxu0 0.0
    %1744 = vmatprep.subr.mxu0 0.0
    %1745 = vmatpush1.msra.mxu0 0.0
    %1746 = vmatprep.subr.mxu0 0.0
    %1747 = vmatpush1.msra.mxu0 0.0
    %1748 = vmatprep.subr.mxu0 0.0
    %1749 = vmatpush1.msra.mxu0 0.0
    %1750 = vmatprep.subr.mxu0 0.0
    %1751 = vmatpush1.msra.mxu0 0.0
    %1752 = vmatprep.subr.mxu0 0.0
    %1753 = vmatpush1.msra.mxu0 0.0
    %1754 = vmatprep.subr.mxu0 0.0
    %1755 = vmatpush1.msra.mxu0 0.0
    %1756 = vmatprep.subr.mxu0 0.0
    %1757 = vmatpush1.msra.mxu0 0.0
    %1758 = vmatprep.subr.mxu0 0.0
    %1759 = vmatpush1.msra.mxu0 0.0
    %1760 = vmatprep.subr.mxu0 0.0
    %1761 = vmatpush1.msra.mxu0 0.0
    %1762 = vmatprep.subr.mxu0 0.0
    %1763 = vmatpush1.msra.mxu0 0.0
    %1764 = vmatprep.subr.mxu0 0.0
    %1765 = vmatpush1.msra.mxu0 0.0
    %1766 = vmatprep.subr.mxu0 0.0
    %1767 = vmatpush1.msra.mxu0 0.0
    %1768 = vmatprep.subr.mxu0 0.0
    %1769 = vmatpush1.msra.mxu0 0.0
    %1770 = vmatprep.subr.mxu0 0.0
    %1771 = vmatpush1.msra.mxu0 0.0
    %1772 = vmatprep.subr.mxu0 0.0
    %1773 = vmatpush1.msra.mxu0 0.0
    %1774 = vmatprep.subr.mxu0 0.0
    %1775 = vmatpush1.msra.mxu0 0.0
    %1776 = vmatprep.subr.mxu0 0.0
    %1777 = vmatpush1.msra.mxu0 0.0
    %1778 = vmatprep.subr.mxu0 0.0
    %1779 = vmatpush1.msra.mxu0 0.0
    %1780 = vmatprep.subr.mxu0 0.0
    %1781 = vmatpush1.msra.mxu0 0.0
    %1782 = vmatprep.subr.mxu0 0.0
    %1783 = vmatpush1.msra.mxu0 0.0
    %1784 = vmatprep.subr.mxu0 0.0
    %1785 = vmatpush1.msra.mxu0 0.0
    %1786 = vmatprep.subr.mxu0 0.0
    %1787 = vmatpush1.msra.mxu0 0.0
    %1788 = vmatprep.mubr.f32.mxu0 0.0
    %1789 = vmatmul.mubr.f32.gmra.mrb[0].mxu0 %v1713
    %v1790 = vpop.f32.mrb[0].mxu0
    %v1791 = vadd.f32 %v1694, %v1790
    %v1792 = vpop.f32.mrb[0].mxu0
    %1793 = vmatprep.mubr.f32.mxu0 0.0
    %1794 = vmatmul.mubr.f32.gmra.mrb[0].mxu0 %v1716
    %v1795 = vpop.f32.mrb[0].mxu0
    %v1796 = vadd.f32 %v1699, %v1795
    %v1797 = vpop.f32.mrb[0].mxu0
    %1798 = vmatprep.mubr.f32.mxu0 0.0
    %1799 = vmatmul.mubr.f32.gmra.mrb[0].mxu0 %v1719
    %v1800 = vpop.f32.mrb[0].mxu0
    %v1801 = vadd.f32 %v1704, %v1800
    %v1802 = vpop.f32.mrb[0].mxu0
    %1803 = vmatprep.mubr.f32.mxu0 0.0
    %1804 = vmatmul.mubr.f32.gmra.mrb[0].mxu0 %v1722
    %v1805 = vpop.f32.mrb[0].mxu0
    %v1806 = vadd.f32 %v1709, %v1805
    %v1807 = vpop.f32.mrb[0].mxu0
    %1808 = vdwg.mxu0
    %s1809 = scalar_lea.vmem [#allocation2], 4
    %v1810 = vld [vmem:[%s1809] ss:$2 sm:$0xff]
    %s1811 = scalar_lea.vmem [#allocation2], 20
    %v1812 = vld [vmem:[%s1811] ss:$2 sm:$0xff]
    %s1813 = scalar_lea.vmem [#allocation2], 36
    %v1814 = vld [vmem:[%s1813] ss:$2 sm:$0xff]
    %s1815 = scalar_lea.vmem [#allocation2], 52
    %v1816 = vld [vmem:[%s1815] ss:$2 sm:$0x3]
    %s1817 = scalar_lea.vmem [#allocation2], 5
    %v1818 = vld [vmem:[%s1817] ss:$2 sm:$0xff]
    %s1819 = scalar_lea.vmem [#allocation2], 21
    %v1820 = vld [vmem:[%s1819] ss:$2 sm:$0xff]
    %s1821 = scalar_lea.vmem [#allocation2], 37
    %v1822 = vld [vmem:[%s1821] ss:$2 sm:$0xff]
    %s1823 = scalar_lea.vmem [#allocation2], 53
    %v1824 = vld [vmem:[%s1823] ss:$2 sm:$0x3]
    %v1825 = vmax.f32 %v1810, %v1818
    %v1826 = vmax.f32 %v1812, %v1820
    %v1827 = vmax.f32 %v1814, %v1822
    %v1828 = vmax.f32 %v1816, %v1824
    %s1829 = scalar_lea.vmem [#allocation4], 32
    %v1830 = vld [vmem:[%s1829] sm:$0xff]
    %v1831 = vld [vmem:[%s1829 + $0x8] sm:$0xff]
    %v1833 = vsel %vm808, %v1825, 0
    %v1836 = vsel %vm808, %v1826, 0
    %v1839 = vsel %vm808, %v1827, 0
    %v1842 = vsel %vm808, %v1828, 0
    %1844 = vmatprep.subr.mxu0 0.0
    %1845 = vmatpush1.msra.mxu0 %v1830
    %1846 = vmatprep.subr.mxu0 0.0
    %1847 = vmatpush1.msra.mxu0 %v1831
    %1848 = vmatprep.subr.mxu0 0.0
    %1849 = vmatpush1.msra.mxu0 0.0
    %1850 = vmatprep.subr.mxu0 0.0
    %1851 = vmatpush1.msra.mxu0 0.0
    %1852 = vmatprep.subr.mxu0 0.0
    %1853 = vmatpush1.msra.mxu0 0.0
    %1854 = vmatprep.subr.mxu0 0.0
    %1855 = vmatpush1.msra.mxu0 0.0
    %1856 = vmatprep.subr.mxu0 0.0
    %1857 = vmatpush1.msra.mxu0 0.0
    %1858 = vmatprep.subr.mxu0 0.0
    %1859 = vmatpush1.msra.mxu0 0.0
    %1860 = vmatprep.subr.mxu0 0.0
    %1861 = vmatpush1.msra.mxu0 0.0
    %1862 = vmatprep.subr.mxu0 0.0
    %1863 = vmatpush1.msra.mxu0 0.0
    %1864 = vmatprep.subr.mxu0 0.0
    %1865 = vmatpush1.msra.mxu0 0.0
    %1866 = vmatprep.subr.mxu0 0.0
    %1867 = vmatpush1.msra.mxu0 0.0
    %1868 = vmatprep.subr.mxu0 0.0
    %1869 = vmatpush1.msra.mxu0 0.0
    %1870 = vmatprep.subr.mxu0 0.0
    %1871 = vmatpush1.msra.mxu0 0.0
    %1872 = vmatprep.subr.mxu0 0.0
    %1873 = vmatpush1.msra.mxu0 0.0
    %1874 = vmatprep.subr.mxu0 0.0
    %1875 = vmatpush1.msra.mxu0 0.0
    %1876 = vmatprep.subr.mxu0 0.0
    %1877 = vmatpush1.msra.mxu0 0.0
    %1878 = vmatprep.subr.mxu0 0.0
    %1879 = vmatpush1.msra.mxu0 0.0
    %1880 = vmatprep.subr.mxu0 0.0
    %1881 = vmatpush1.msra.mxu0 0.0
    %1882 = vmatprep.subr.mxu0 0.0
    %1883 = vmatpush1.msra.mxu0 0.0
    %1884 = vmatprep.subr.mxu0 0.0
    %1885 = vmatpush1.msra.mxu0 0.0
    %1886 = vmatprep.subr.mxu0 0.0
    %1887 = vmatpush1.msra.mxu0 0.0
    %1888 = vmatprep.subr.mxu0 0.0
    %1889 = vmatpush1.msra.mxu0 0.0
    %1890 = vmatprep.subr.mxu0 0.0
    %1891 = vmatpush1.msra.mxu0 0.0
    %1892 = vmatprep.subr.mxu0 0.0
    %1893 = vmatpush1.msra.mxu0 0.0
    %1894 = vmatprep.subr.mxu0 0.0
    %1895 = vmatpush1.msra.mxu0 0.0
    %1896 = vmatprep.subr.mxu0 0.0
    %1897 = vmatpush1.msra.mxu0 0.0
    %1898 = vmatprep.subr.mxu0 0.0
    %1899 = vmatpush1.msra.mxu0 0.0
    %1900 = vmatprep.subr.mxu0 0.0
    %1901 = vmatpush1.msra.mxu0 0.0
    %1902 = vmatprep.subr.mxu0 0.0
    %1903 = vmatpush1.msra.mxu0 0.0
    %1904 = vmatprep.subr.mxu0 0.0
    %1905 = vmatpush1.msra.mxu0 0.0
    %1906 = vmatprep.subr.mxu0 0.0
    %1907 = vmatpush1.msra.mxu0 0.0
    %1908 = vmatprep.mubr.f32.mxu0 0.0
    %1909 = vmatmul.mubr.f32.gmra.mrb[0].mxu0 %v1833
    %v1910 = vpop.f32.mrb[0].mxu0
    %v1911 = vadd.f32 0.0, %v1910
    %v1912 = vpop.f32.mrb[0].mxu0
    %1913 = vmatprep.mubr.f32.mxu0 0.0
    %1914 = vmatmul.mubr.f32.gmra.mrb[0].mxu0 %v1836
    %v1915 = vpop.f32.mrb[0].mxu0
    %v1916 = vadd.f32 0.0, %v1915
    %v1917 = vpop.f32.mrb[0].mxu0
    %1918 = vmatprep.mubr.f32.mxu0 0.0
    %1919 = vmatmul.mubr.f32.gmra.mrb[0].mxu0 %v1839
    %v1920 = vpop.f32.mrb[0].mxu0
    %v1921 = vadd.f32 0.0, %v1920
    %v1922 = vpop.f32.mrb[0].mxu0
    %1923 = vmatprep.mubr.f32.mxu0 0.0
    %1924 = vmatmul.mubr.f32.gmra.mrb[0].mxu0 %v1842
    %v1925 = vpop.f32.mrb[0].mxu0
    %v1926 = vadd.f32 0.0, %v1925
    %v1927 = vpop.f32.mrb[0].mxu0
    %1928 = vdwg.mxu0
    %v1929 = vadd.f32 %v1791, %v1911
    %v1930 = vadd.f32 %v1796, %v1916
    %v1931 = vadd.f32 %v1801, %v1921
    %v1932 = vadd.f32 %v1806, %v1926
    %s1933 = scalar_lea.vmem [#allocation2], 6
    %v1934 = vld [vmem:[%s1933] ss:$2 sm:$0xff]
    %s1935 = scalar_lea.vmem [#allocation2], 22
    %v1936 = vld [vmem:[%s1935] ss:$2 sm:$0xff]
    %s1937 = scalar_lea.vmem [#allocation2], 38
    %v1938 = vld [vmem:[%s1937] ss:$2 sm:$0xff]
    %s1939 = scalar_lea.vmem [#allocation2], 54
    %v1940 = vld [vmem:[%s1939] ss:$2 sm:$0x3]
    %s1941 = scalar_lea.vmem [#allocation2], 7
    %v1942 = vld [vmem:[%s1941] ss:$2 sm:$0xff]
    %s1943 = scalar_lea.vmem [#allocation2], 23
    %v1944 = vld [vmem:[%s1943] ss:$2 sm:$0xff]
    %s1945 = scalar_lea.vmem [#allocation2], 39
    %v1946 = vld [vmem:[%s1945] ss:$2 sm:$0xff]
    %s1947 = scalar_lea.vmem [#allocation2], 55
    %v1948 = vld [vmem:[%s1947] ss:$2 sm:$0x3]
    %v1949 = vmax.f32 %v1934, %v1942
    %v1950 = vmax.f32 %v1936, %v1944
    %v1951 = vmax.f32 %v1938, %v1946
    %v1952 = vmax.f32 %v1940, %v1948
    %s1953 = scalar_lea.vmem [#allocation4], 48
    %v1954 = vld [vmem:[%s1953] sm:$0xff]
    %v1955 = vld [vmem:[%s1953 + $0x8] sm:$0xff]
    %v1957 = vsel %vm808, %v1949, 0
    %v1960 = vsel %vm808, %v1950, 0
    %v1963 = vsel %vm808, %v1951, 0
    %v1966 = vsel %vm808, %v1952, 0
    %1968 = vmatprep.subr.mxu0 0.0
    %1969 = vmatpush1.msra.mxu0 %v1954
    %1970 = vmatprep.subr.mxu0 0.0
    %1971 = vmatpush1.msra.mxu0 %v1955
    %1972 = vmatprep.subr.mxu0 0.0
    %1973 = vmatpush1.msra.mxu0 0.0
    %1974 = vmatprep.subr.mxu0 0.0
    %1975 = vmatpush1.msra.mxu0 0.0
    %1976 = vmatprep.subr.mxu0 0.0
    %1977 = vmatpush1.msra.mxu0 0.0
    %1978 = vmatprep.subr.mxu0 0.0
    %1979 = vmatpush1.msra.mxu0 0.0
    %1980 = vmatprep.subr.mxu0 0.0
    %1981 = vmatpush1.msra.mxu0 0.0
    %1982 = vmatprep.subr.mxu0 0.0
    %1983 = vmatpush1.msra.mxu0 0.0
    %1984 = vmatprep.subr.mxu0 0.0
    %1985 = vmatpush1.msra.mxu0 0.0
    %1986 = vmatprep.subr.mxu0 0.0
    %1987 = vmatpush1.msra.mxu0 0.0
    %1988 = vmatprep.subr.mxu0 0.0
    %1989 = vmatpush1.msra.mxu0 0.0
    %1990 = vmatprep.subr.mxu0 0.0
    %1991 = vmatpush1.msra.mxu0 0.0
    %1992 = vmatprep.subr.mxu0 0.0
    %1993 = vmatpush1.msra.mxu0 0.0
    %1994 = vmatprep.subr.mxu0 0.0
    %1995 = vmatpush1.msra.mxu0 0.0
    %1996 = vmatprep.subr.mxu0 0.0
    %1997 = vmatpush1.msra.mxu0 0.0
    %1998 = vmatprep.subr.mxu0 0.0
    %1999 = vmatpush1.msra.mxu0 0.0
    %2000 = vmatprep.subr.mxu0 0.0
    %2001 = vmatpush1.msra.mxu0 0.0
    %2002 = vmatprep.subr.mxu0 0.0
    %2003 = vmatpush1.msra.mxu0 0.0
    %2004 = vmatprep.subr.mxu0 0.0
    %2005 = vmatpush1.msra.mxu0 0.0
    %2006 = vmatprep.subr.mxu0 0.0
    %2007 = vmatpush1.msra.mxu0 0.0
    %2008 = vmatprep.subr.mxu0 0.0
    %2009 = vmatpush1.msra.mxu0 0.0
    %2010 = vmatprep.subr.mxu0 0.0
    %2011 = vmatpush1.msra.mxu0 0.0
    %2012 = vmatprep.subr.mxu0 0.0
    %2013 = vmatpush1.msra.mxu0 0.0
    %2014 = vmatprep.subr.mxu0 0.0
    %2015 = vmatpush1.msra.mxu0 0.0
    %2016 = vmatprep.subr.mxu0 0.0
    %2017 = vmatpush1.msra.mxu0 0.0
    %2018 = vmatprep.subr.mxu0 0.0
    %2019 = vmatpush1.msra.mxu0 0.0
    %2020 = vmatprep.subr.mxu0 0.0
    %2021 = vmatpush1.msra.mxu0 0.0
    %2022 = vmatprep.subr.mxu0 0.0
    %2023 = vmatpush1.msra.mxu0 0.0
    %2024 = vmatprep.subr.mxu0 0.0
    %2025 = vmatpush1.msra.mxu0 0.0
    %2026 = vmatprep.subr.mxu0 0.0
    %2027 = vmatpush1.msra.mxu0 0.0
    %2028 = vmatprep.subr.mxu0 0.0
    %2029 = vmatpush1.msra.mxu0 0.0
    %2030 = vmatprep.subr.mxu0 0.0
    %2031 = vmatpush1.msra.mxu0 0.0
    %2032 = vmatprep.mubr.f32.mxu0 0.0
    %2033 = vmatmul.mubr.f32.gmra.mrb[0].mxu0 %v1957
    %v2034 = vpop.f32.mrb[0].mxu0
    %v2035 = vadd.f32 0.0, %v2034
    %v2036 = vpop.f32.mrb[0].mxu0
    %2037 = vmatprep.mubr.f32.mxu0 0.0
    %2038 = vmatmul.mubr.f32.gmra.mrb[0].mxu0 %v1960
    %v2039 = vpop.f32.mrb[0].mxu0
    %v2040 = vadd.f32 0.0, %v2039
    %v2041 = vpop.f32.mrb[0].mxu0
    %2042 = vmatprep.mubr.f32.mxu0 0.0
    %2043 = vmatmul.mubr.f32.gmra.mrb[0].mxu0 %v1963
    %v2044 = vpop.f32.mrb[0].mxu0
    %v2045 = vadd.f32 0.0, %v2044
    %v2046 = vpop.f32.mrb[0].mxu0
    %2047 = vmatprep.mubr.f32.mxu0 0.0
    %2048 = vmatmul.mubr.f32.gmra.mrb[0].mxu0 %v1966
    %v2049 = vpop.f32.mrb[0].mxu0
    %v2050 = vadd.f32 0.0, %v2049
    %v2051 = vpop.f32.mrb[0].mxu0
    %2052 = vdwg.mxu0
    %v2053 = vadd.f32 %v1929, %v2035
    %v2054 = vadd.f32 %v1930, %v2040
    %v2055 = vadd.f32 %v1931, %v2045
    %v2056 = vadd.f32 %v1932, %v2050
    %s2057 = scalar_lea.vmem [#allocation2], 8
    %v2058 = vld [vmem:[%s2057] ss:$2 sm:$0xff]
    %s2059 = scalar_lea.vmem [#allocation2], 24
    %v2060 = vld [vmem:[%s2059] ss:$2 sm:$0xff]
    %s2061 = scalar_lea.vmem [#allocation2], 40
    %v2062 = vld [vmem:[%s2061] ss:$2 sm:$0xff]
    %s2063 = scalar_lea.vmem [#allocation2], 56
    %v2064 = vld [vmem:[%s2063] ss:$2 sm:$0x3]
    %s2065 = scalar_lea.vmem [#allocation2], 9
    %v2066 = vld [vmem:[%s2065] ss:$2 sm:$0xff]
    %s2067 = scalar_lea.vmem [#allocation2], 25
    %v2068 = vld [vmem:[%s2067] ss:$2 sm:$0xff]
    %s2069 = scalar_lea.vmem [#allocation2], 41
    %v2070 = vld [vmem:[%s2069] ss:$2 sm:$0xff]
    %s2071 = scalar_lea.vmem [#allocation2], 57
    %v2072 = vld [vmem:[%s2071] ss:$2 sm:$0x3]
    %v2073 = vmax.f32 %v2058, %v2066
    %v2074 = vmax.f32 %v2060, %v2068
    %v2075 = vmax.f32 %v2062, %v2070
    %v2076 = vmax.f32 %v2064, %v2072
    %s2077 = scalar_lea.vmem [#allocation4], 64
    %v2078 = vld [vmem:[%s2077] sm:$0xff]
    %v2079 = vld [vmem:[%s2077 + $0x8] sm:$0xff]
    %v2081 = vsel %vm808, %v2073, 0
    %v2084 = vsel %vm808, %v2074, 0
    %v2087 = vsel %vm808, %v2075, 0
    %v2090 = vsel %vm808, %v2076, 0
    %2092 = vmatprep.subr.mxu0 0.0
    %2093 = vmatpush1.msra.mxu0 %v2078
    %2094 = vmatprep.subr.mxu0 0.0
    %2095 = vmatpush1.msra.mxu0 %v2079
    %2096 = vmatprep.subr.mxu0 0.0
    %2097 = vmatpush1.msra.mxu0 0.0
    %2098 = vmatprep.subr.mxu0 0.0
    %2099 = vmatpush1.msra.mxu0 0.0
    %2100 = vmatprep.subr.mxu0 0.0
    %2101 = vmatpush1.msra.mxu0 0.0
    %2102 = vmatprep.subr.mxu0 0.0
    %2103 = vmatpush1.msra.mxu0 0.0
    %2104 = vmatprep.subr.mxu0 0.0
    %2105 = vmatpush1.msra.mxu0 0.0
    %2106 = vmatprep.subr.mxu0 0.0
    %2107 = vmatpush1.msra.mxu0 0.0
    %2108 = vmatprep.subr.mxu0 0.0
    %2109 = vmatpush1.msra.mxu0 0.0
    %2110 = vmatprep.subr.mxu0 0.0
    %2111 = vmatpush1.msra.mxu0 0.0
    %2112 = vmatprep.subr.mxu0 0.0
    %2113 = vmatpush1.msra.mxu0 0.0
    %2114 = vmatprep.subr.mxu0 0.0
    %2115 = vmatpush1.msra.mxu0 0.0
    %2116 = vmatprep.subr.mxu0 0.0
    %2117 = vmatpush1.msra.mxu0 0.0
    %2118 = vmatprep.subr.mxu0 0.0
    %2119 = vmatpush1.msra.mxu0 0.0
    %2120 = vmatprep.subr.mxu0 0.0
    %2121 = vmatpush1.msra.mxu0 0.0
    %2122 = vmatprep.subr.mxu0 0.0
    %2123 = vmatpush1.msra.mxu0 0.0
    %2124 = vmatprep.subr.mxu0 0.0
    %2125 = vmatpush1.msra.mxu0 0.0
    %2126 = vmatprep.subr.mxu0 0.0
    %2127 = vmatpush1.msra.mxu0 0.0
    %2128 = vmatprep.subr.mxu0 0.0
    %2129 = vmatpush1.msra.mxu0 0.0
    %2130 = vmatprep.subr.mxu0 0.0
    %2131 = vmatpush1.msra.mxu0 0.0
    %2132 = vmatprep.subr.mxu0 0.0
    %2133 = vmatpush1.msra.mxu0 0.0
    %2134 = vmatprep.subr.mxu0 0.0
    %2135 = vmatpush1.msra.mxu0 0.0
    %2136 = vmatprep.subr.mxu0 0.0
    %2137 = vmatpush1.msra.mxu0 0.0
    %2138 = vmatprep.subr.mxu0 0.0
    %2139 = vmatpush1.msra.mxu0 0.0
    %2140 = vmatprep.subr.mxu0 0.0
    %2141 = vmatpush1.msra.mxu0 0.0
    %2142 = vmatprep.subr.mxu0 0.0
    %2143 = vmatpush1.msra.mxu0 0.0
    %2144 = vmatprep.subr.mxu0 0.0
    %2145 = vmatpush1.msra.mxu0 0.0
    %2146 = vmatprep.subr.mxu0 0.0
    %2147 = vmatpush1.msra.mxu0 0.0
    %2148 = vmatprep.subr.mxu0 0.0
    %2149 = vmatpush1.msra.mxu0 0.0
    %2150 = vmatprep.subr.mxu0 0.0
    %2151 = vmatpush1.msra.mxu0 0.0
    %2152 = vmatprep.subr.mxu0 0.0
    %2153 = vmatpush1.msra.mxu0 0.0
    %2154 = vmatprep.subr.mxu0 0.0
    %2155 = vmatpush1.msra.mxu0 0.0
    %2156 = vmatprep.mubr.f32.mxu0 0.0
    %2157 = vmatmul.mubr.f32.gmra.mrb[0].mxu0 %v2081
    %v2158 = vpop.f32.mrb[0].mxu0
    %v2159 = vadd.f32 0.0, %v2158
    %v2160 = vpop.f32.mrb[0].mxu0
    %2161 = vmatprep.mubr.f32.mxu0 0.0
    %2162 = vmatmul.mubr.f32.gmra.mrb[0].mxu0 %v2084
    %v2163 = vpop.f32.mrb[0].mxu0
    %v2164 = vadd.f32 0.0, %v2163
    %v2165 = vpop.f32.mrb[0].mxu0
    %2166 = vmatprep.mubr.f32.mxu0 0.0
    %2167 = vmatmul.mubr.f32.gmra.mrb[0].mxu0 %v2087
    %v2168 = vpop.f32.mrb[0].mxu0
    %v2169 = vadd.f32 0.0, %v2168
    %v2170 = vpop.f32.mrb[0].mxu0
    %2171 = vmatprep.mubr.f32.mxu0 0.0
    %2172 = vmatmul.mubr.f32.gmra.mrb[0].mxu0 %v2090
    %v2173 = vpop.f32.mrb[0].mxu0
    %v2174 = vadd.f32 0.0, %v2173
    %v2175 = vpop.f32.mrb[0].mxu0
    %2176 = vdwg.mxu0
    %v2177 = vadd.f32 %v2053, %v2159
    %v2178 = vadd.f32 %v2054, %v2164
    %v2179 = vadd.f32 %v2055, %v2169
    %v2180 = vadd.f32 %v2056, %v2174
    %v2181 = vlaneseq
    %v2182 = vshrl.u32 %v2181, 7
    %v2183 = vsub.s32 1, %v2182
    %v2184 = vrot.slane %v52, %v2183
    %v2185 = vadd.f32 %v2177, %v2184
    %v2186 = vadd.f32 %v2178, %v2184
    %v2187 = vadd.f32 %v2179, %v2184
    %v2188 = vadd.f32 %v2180, %v2184
    %v2189 = vmax.f32 %v2185, 0.0
    %v2190 = vmax.f32 %v2186, 0.0
    %v2191 = vmax.f32 %v2187, 0.0
    %v2192 = vmax.f32 %v2188, 0.0
    %vm2193 = vcmask 261120
    %2194 = vst.msk [vmem:[#allocation3] sm:$0xff] %vm2193, %v2189
    %2195 = vst.msk [vmem:[#allocation3 + $0x8] sm:$0xff] %vm2193, %v2190
    %2196 = vst.msk [vmem:[#allocation3 + $0x10] sm:$0xff] %vm2193, %v2191
    %vm2197 = vcmask 254976
    %2198 = vst.msk [vmem:[#allocation3 + $0x18] sm:$0x3] %vm2197, %v2192
    %s2199 = scalar_lea.vmem [#allocation2], 64
    %v2200 = vld [vmem:[%s2199] ss:$2 sm:$0xff]
    %s2201 = scalar_lea.vmem [#allocation2], 80
    %v2202 = vld [vmem:[%s2201] ss:$2 sm:$0xff]
    %s2203 = scalar_lea.vmem [#allocation2], 96
    %v2204 = vld [vmem:[%s2203] ss:$2 sm:$0xff]
    %s2205 = scalar_lea.vmem [#allocation2], 112
    %v2206 = vld [vmem:[%s2205] ss:$2 sm:$0x3]
    %s2207 = scalar_lea.vmem [#allocation2], 65
    %v2208 = vld [vmem:[%s2207] ss:$2 sm:$0xff]
    %s2209 = scalar_lea.vmem [#allocation2], 81
    %v2210 = vld [vmem:[%s2209] ss:$2 sm:$0xff]
    %s2211 = scalar_lea.vmem [#allocation2], 97
    %v2212 = vld [vmem:[%s2211] ss:$2 sm:$0xff]
    %s2213 = scalar_lea.vmem [#allocation2], 113
    %v2214 = vld [vmem:[%s2213] ss:$2 sm:$0x3]
    %v2215 = vmax.f32 %v2200, %v2208
    %v2216 = vmax.f32 %v2202, %v2210
    %v2217 = vmax.f32 %v2204, %v2212
    %v2218 = vmax.f32 %v2206, %v2214
    %v2219 = vld [vmem:[#allocation4] sm:$0xff]
    %v2220 = vld [vmem:[#allocation4 + $0x8] sm:$0xff]
    %s2221 = scalar_lea.vmem [#allocation2], 66
    %v2222 = vld [vmem:[%s2221] ss:$2 sm:$0xff]
    %s2223 = scalar_lea.vmem [#allocation2], 82
    %v2224 = vld [vmem:[%s2223] ss:$2 sm:$0xff]
    %s2225 = scalar_lea.vmem [#allocation2], 98
    %v2226 = vld [vmem:[%s2225] ss:$2 sm:$0xff]
    %s2227 = scalar_lea.vmem [#allocation2], 114
    %v2228 = vld [vmem:[%s2227] ss:$2 sm:$0x3]
    %s2229 = scalar_lea.vmem [#allocation2], 67
    %v2230 = vld [vmem:[%s2229] ss:$2 sm:$0xff]
    %s2231 = scalar_lea.vmem [#allocation2], 83
    %v2232 = vld [vmem:[%s2231] ss:$2 sm:$0xff]
    %s2233 = scalar_lea.vmem [#allocation2], 99
    %v2234 = vld [vmem:[%s2233] ss:$2 sm:$0xff]
    %s2235 = scalar_lea.vmem [#allocation2], 115
    %v2236 = vld [vmem:[%s2235] ss:$2 sm:$0x3]
    %v2237 = vmax.f32 %v2222, %v2230
    %v2238 = vmax.f32 %v2224, %v2232
    %v2239 = vmax.f32 %v2226, %v2234
    %v2240 = vmax.f32 %v2228, %v2236
    %v2241 = vld [vmem:[%s1612] sm:$0xff]
    %v2242 = vld [vmem:[%s1612 + $0x8] sm:$0xff]
    %v2244 = vsel %vm808, %v2237, 0
    %v2247 = vsel %vm808, %v2238, 0
    %v2250 = vsel %vm808, %v2239, 0
    %v2253 = vsel %vm808, %v2240, 0
    %2255 = vmatprep.subr.mxu0 0.0
    %2256 = vmatpush1.msra.mxu0 %v2241
    %2257 = vmatprep.subr.mxu0 0.0
    %2258 = vmatpush1.msra.mxu0 %v2242
    %2259 = vmatprep.subr.mxu0 0.0
    %2260 = vmatpush1.msra.mxu0 0.0
    %2261 = vmatprep.subr.mxu0 0.0
    %2262 = vmatpush1.msra.mxu0 0.0
    %2263 = vmatprep.subr.mxu0 0.0
    %2264 = vmatpush1.msra.mxu0 0.0
    %2265 = vmatprep.subr.mxu0 0.0
    %2266 = vmatpush1.msra.mxu0 0.0
    %2267 = vmatprep.subr.mxu0 0.0
    %2268 = vmatpush1.msra.mxu0 0.0
    %2269 = vmatprep.subr.mxu0 0.0
    %2270 = vmatpush1.msra.mxu0 0.0
    %2271 = vmatprep.subr.mxu0 0.0
    %2272 = vmatpush1.msra.mxu0 0.0
    %2273 = vmatprep.subr.mxu0 0.0
    %2274 = vmatpush1.msra.mxu0 0.0
    %2275 = vmatprep.subr.mxu0 0.0
    %2276 = vmatpush1.msra.mxu0 0.0
    %2277 = vmatprep.subr.mxu0 0.0
    %2278 = vmatpush1.msra.mxu0 0.0
    %2279 = vmatprep.subr.mxu0 0.0
    %2280 = vmatpush1.msra.mxu0 0.0
    %2281 = vmatprep.subr.mxu0 0.0
    %2282 = vmatpush1.msra.mxu0 0.0
    %2283 = vmatprep.subr.mxu0 0.0
    %2284 = vmatpush1.msra.mxu0 0.0
    %2285 = vmatprep.subr.mxu0 0.0
    %2286 = vmatpush1.msra.mxu0 0.0
    %2287 = vmatprep.subr.mxu0 0.0
    %2288 = vmatpush1.msra.mxu0 0.0
    %2289 = vmatprep.subr.mxu0 0.0
    %2290 = vmatpush1.msra.mxu0 0.0
    %2291 = vmatprep.subr.mxu0 0.0
    %2292 = vmatpush1.msra.mxu0 0.0
    %2293 = vmatprep.subr.mxu0 0.0
    %2294 = vmatpush1.msra.mxu0 0.0
    %2295 = vmatprep.subr.mxu0 0.0
    %2296 = vmatpush1.msra.mxu0 0.0
    %2297 = vmatprep.subr.mxu0 0.0
    %2298 = vmatpush1.msra.mxu0 0.0
    %2299 = vmatprep.subr.mxu0 0.0
    %2300 = vmatpush1.msra.mxu0 0.0
    %2301 = vmatprep.subr.mxu0 0.0
    %2302 = vmatpush1.msra.mxu0 0.0
    %2303 = vmatprep.subr.mxu0 0.0
    %2304 = vmatpush1.msra.mxu0 0.0
    %2305 = vmatprep.subr.mxu0 0.0
    %2306 = vmatpush1.msra.mxu0 0.0
    %2307 = vmatprep.subr.mxu0 0.0
    %2308 = vmatpush1.msra.mxu0 0.0
    %2309 = vmatprep.subr.mxu0 0.0
    %2310 = vmatpush1.msra.mxu0 0.0
    %2311 = vmatprep.subr.mxu0 0.0
    %2312 = vmatpush1.msra.mxu0 0.0
    %2313 = vmatprep.subr.mxu0 0.0
    %2314 = vmatpush1.msra.mxu0 0.0
    %2315 = vmatprep.subr.mxu0 0.0
    %2316 = vmatpush1.msra.mxu0 0.0
    %2317 = vmatprep.subr.mxu0 0.0
    %2318 = vmatpush1.msra.mxu0 0.0
    %2319 = vmatprep.mubr.f32.mxu0 0.0
    %2320 = vmatmul.mubr.f32.gmra.mrb[0].mxu0 %v2244
    %v2321 = vpop.f32.mrb[0].mxu0
    %v2322 = vadd.f32 0.0, %v2321
    %v2323 = vpop.f32.mrb[0].mxu0
    %2324 = vmatprep.mubr.f32.mxu0 0.0
    %2325 = vmatmul.mubr.f32.gmra.mrb[0].mxu0 %v2247
    %v2326 = vpop.f32.mrb[0].mxu0
    %v2327 = vadd.f32 0.0, %v2326
    %v2328 = vpop.f32.mrb[0].mxu0
    %2329 = vmatprep.mubr.f32.mxu0 0.0
    %2330 = vmatmul.mubr.f32.gmra.mrb[0].mxu0 %v2250
    %v2331 = vpop.f32.mrb[0].mxu0
    %v2332 = vadd.f32 0.0, %v2331
    %v2333 = vpop.f32.mrb[0].mxu0
    %2334 = vmatprep.mubr.f32.mxu0 0.0
    %2335 = vmatmul.mubr.f32.gmra.mrb[0].mxu0 %v2253
    %v2336 = vpop.f32.mrb[0].mxu0
    %v2337 = vadd.f32 0.0, %v2336
    %v2338 = vpop.f32.mrb[0].mxu0
    %2339 = vdwg.mxu0
    %v2341 = vsel %vm808, %v2215, 0
    %v2344 = vsel %vm808, %v2216, 0
    %v2347 = vsel %vm808, %v2217, 0
    %v2350 = vsel %vm808, %v2218, 0
    %2352 = vmatprep.subr.mxu0 0.0
    %2353 = vmatpush1.msra.mxu0 %v2219
    %2354 = vmatprep.subr.mxu0 0.0
    %2355 = vmatpush1.msra.mxu0 %v2220
    %2356 = vmatprep.subr.mxu0 0.0
    %2357 = vmatpush1.msra.mxu0 0.0
    %2358 = vmatprep.subr.mxu0 0.0
    %2359 = vmatpush1.msra.mxu0 0.0
    %2360 = vmatprep.subr.mxu0 0.0
    %2361 = vmatpush1.msra.mxu0 0.0
    %2362 = vmatprep.subr.mxu0 0.0
    %2363 = vmatpush1.msra.mxu0 0.0
    %2364 = vmatprep.subr.mxu0 0.0
    %2365 = vmatpush1.msra.mxu0 0.0
    %2366 = vmatprep.subr.mxu0 0.0
    %2367 = vmatpush1.msra.mxu0 0.0
    %2368 = vmatprep.subr.mxu0 0.0
    %2369 = vmatpush1.msra.mxu0 0.0
    %2370 = vmatprep.subr.mxu0 0.0
    %2371 = vmatpush1.msra.mxu0 0.0
    %2372 = vmatprep.subr.mxu0 0.0
    %2373 = vmatpush1.msra.mxu0 0.0
    %2374 = vmatprep.subr.mxu0 0.0
    %2375 = vmatpush1.msra.mxu0 0.0
    %2376 = vmatprep.subr.mxu0 0.0
    %2377 = vmatpush1.msra.mxu0 0.0
    %2378 = vmatprep.subr.mxu0 0.0
    %2379 = vmatpush1.msra.mxu0 0.0
    %2380 = vmatprep.subr.mxu0 0.0
    %2381 = vmatpush1.msra.mxu0 0.0
    %2382 = vmatprep.subr.mxu0 0.0
    %2383 = vmatpush1.msra.mxu0 0.0
    %2384 = vmatprep.subr.mxu0 0.0
    %2385 = vmatpush1.msra.mxu0 0.0
    %2386 = vmatprep.subr.mxu0 0.0
    %2387 = vmatpush1.msra.mxu0 0.0
    %2388 = vmatprep.subr.mxu0 0.0
    %2389 = vmatpush1.msra.mxu0 0.0
    %2390 = vmatprep.subr.mxu0 0.0
    %2391 = vmatpush1.msra.mxu0 0.0
    %2392 = vmatprep.subr.mxu0 0.0
    %2393 = vmatpush1.msra.mxu0 0.0
    %2394 = vmatprep.subr.mxu0 0.0
    %2395 = vmatpush1.msra.mxu0 0.0
    %2396 = vmatprep.subr.mxu0 0.0
    %2397 = vmatpush1.msra.mxu0 0.0
    %2398 = vmatprep.subr.mxu0 0.0
    %2399 = vmatpush1.msra.mxu0 0.0
    %2400 = vmatprep.subr.mxu0 0.0
    %2401 = vmatpush1.msra.mxu0 0.0
    %2402 = vmatprep.subr.mxu0 0.0
    %2403 = vmatpush1.msra.mxu0 0.0
    %2404 = vmatprep.subr.mxu0 0.0
    %2405 = vmatpush1.msra.mxu0 0.0
    %2406 = vmatprep.subr.mxu0 0.0
    %2407 = vmatpush1.msra.mxu0 0.0
    %2408 = vmatprep.subr.mxu0 0.0
    %2409 = vmatpush1.msra.mxu0 0.0
    %2410 = vmatprep.subr.mxu0 0.0
    %2411 = vmatpush1.msra.mxu0 0.0
    %2412 = vmatprep.subr.mxu0 0.0
    %2413 = vmatpush1.msra.mxu0 0.0
    %2414 = vmatprep.subr.mxu0 0.0
    %2415 = vmatpush1.msra.mxu0 0.0
    %2416 = vmatprep.mubr.f32.mxu0 0.0
    %2417 = vmatmul.mubr.f32.gmra.mrb[0].mxu0 %v2341
    %v2418 = vpop.f32.mrb[0].mxu0
    %v2419 = vadd.f32 %v2322, %v2418
    %v2420 = vpop.f32.mrb[0].mxu0
    %2421 = vmatprep.mubr.f32.mxu0 0.0
    %2422 = vmatmul.mubr.f32.gmra.mrb[0].mxu0 %v2344
    %v2423 = vpop.f32.mrb[0].mxu0
    %v2424 = vadd.f32 %v2327, %v2423
    %v2425 = vpop.f32.mrb[0].mxu0
    %2426 = vmatprep.mubr.f32.mxu0 0.0
    %2427 = vmatmul.mubr.f32.gmra.mrb[0].mxu0 %v2347
    %v2428 = vpop.f32.mrb[0].mxu0
    %v2429 = vadd.f32 %v2332, %v2428
    %v2430 = vpop.f32.mrb[0].mxu0
    %2431 = vmatprep.mubr.f32.mxu0 0.0
    %2432 = vmatmul.mubr.f32.gmra.mrb[0].mxu0 %v2350
    %v2433 = vpop.f32.mrb[0].mxu0
    %v2434 = vadd.f32 %v2337, %v2433
    %v2435 = vpop.f32.mrb[0].mxu0
    %2436 = vdwg.mxu0
    %s2437 = scalar_lea.vmem [#allocation2], 68
    %v2438 = vld [vmem:[%s2437] ss:$2 sm:$0xff]
    %s2439 = scalar_lea.vmem [#allocation2], 84
    %v2440 = vld [vmem:[%s2439] ss:$2 sm:$0xff]
    %s2441 = scalar_lea.vmem [#allocation2], 100
    %v2442 = vld [vmem:[%s2441] ss:$2 sm:$0xff]
    %s2443 = scalar_lea.vmem [#allocation2], 116
    %v2444 = vld [vmem:[%s2443] ss:$2 sm:$0x3]
    %s2445 = scalar_lea.vmem [#allocation2], 69
    %v2446 = vld [vmem:[%s2445] ss:$2 sm:$0xff]
    %s2447 = scalar_lea.vmem [#allocation2], 85
    %v2448 = vld [vmem:[%s2447] ss:$2 sm:$0xff]
    %s2449 = scalar_lea.vmem [#allocation2], 101
    %v2450 = vld [vmem:[%s2449] ss:$2 sm:$0xff]
    %s2451 = scalar_lea.vmem [#allocation2], 117
    %v2452 = vld [vmem:[%s2451] ss:$2 sm:$0x3]
    %v2453 = vmax.f32 %v2438, %v2446
    %v2454 = vmax.f32 %v2440, %v2448
    %v2455 = vmax.f32 %v2442, %v2450
    %v2456 = vmax.f32 %v2444, %v2452
    %v2457 = vld [vmem:[%s1829] sm:$0xff]
    %v2458 = vld [vmem:[%s1829 + $0x8] sm:$0xff]
    %v2460 = vsel %vm808, %v2453, 0
    %v2463 = vsel %vm808, %v2454, 0
    %v2466 = vsel %vm808, %v2455, 0
    %v2469 = vsel %vm808, %v2456, 0
    %2471 = vmatprep.subr.mxu0 0.0
    %2472 = vmatpush1.msra.mxu0 %v2457
    %2473 = vmatprep.subr.mxu0 0.0
    %2474 = vmatpush1.msra.mxu0 %v2458
    %2475 = vmatprep.subr.mxu0 0.0
    %2476 = vmatpush1.msra.mxu0 0.0
    %2477 = vmatprep.subr.mxu0 0.0
    %2478 = vmatpush1.msra.mxu0 0.0
    %2479 = vmatprep.subr.mxu0 0.0
    %2480 = vmatpush1.msra.mxu0 0.0
    %2481 = vmatprep.subr.mxu0 0.0
    %2482 = vmatpush1.msra.mxu0 0.0
    %2483 = vmatprep.subr.mxu0 0.0
    %2484 = vmatpush1.msra.mxu0 0.0
    %2485 = vmatprep.subr.mxu0 0.0
    %2486 = vmatpush1.msra.mxu0 0.0
    %2487 = vmatprep.subr.mxu0 0.0
    %2488 = vmatpush1.msra.mxu0 0.0
    %2489 = vmatprep.subr.mxu0 0.0
    %2490 = vmatpush1.msra.mxu0 0.0
    %2491 = vmatprep.subr.mxu0 0.0
    %2492 = vmatpush1.msra.mxu0 0.0
    %2493 = vmatprep.subr.mxu0 0.0
    %2494 = vmatpush1.msra.mxu0 0.0
    %2495 = vmatprep.subr.mxu0 0.0
    %2496 = vmatpush1.msra.mxu0 0.0
    %2497 = vmatprep.subr.mxu0 0.0
    %2498 = vmatpush1.msra.mxu0 0.0
    %2499 = vmatprep.subr.mxu0 0.0
    %2500 = vmatpush1.msra.mxu0 0.0
    %2501 = vmatprep.subr.mxu0 0.0
    %2502 = vmatpush1.msra.mxu0 0.0
    %2503 = vmatprep.subr.mxu0 0.0
    %2504 = vmatpush1.msra.mxu0 0.0
    %2505 = vmatprep.subr.mxu0 0.0
    %2506 = vmatpush1.msra.mxu0 0.0
    %2507 = vmatprep.subr.mxu0 0.0
    %2508 = vmatpush1.msra.mxu0 0.0
    %2509 = vmatprep.subr.mxu0 0.0
    %2510 = vmatpush1.msra.mxu0 0.0
    %2511 = vmatprep.subr.mxu0 0.0
    %2512 = vmatpush1.msra.mxu0 0.0
    %2513 = vmatprep.subr.mxu0 0.0
    %2514 = vmatpush1.msra.mxu0 0.0
    %2515 = vmatprep.subr.mxu0 0.0
    %2516 = vmatpush1.msra.mxu0 0.0
    %2517 = vmatprep.subr.mxu0 0.0
    %2518 = vmatpush1.msra.mxu0 0.0
    %2519 = vmatprep.subr.mxu0 0.0
    %2520 = vmatpush1.msra.mxu0 0.0
    %2521 = vmatprep.subr.mxu0 0.0
    %2522 = vmatpush1.msra.mxu0 0.0
    %2523 = vmatprep.subr.mxu0 0.0
    %2524 = vmatpush1.msra.mxu0 0.0
    %2525 = vmatprep.subr.mxu0 0.0
    %2526 = vmatpush1.msra.mxu0 0.0
    %2527 = vmatprep.subr.mxu0 0.0
    %2528 = vmatpush1.msra.mxu0 0.0
    %2529 = vmatprep.subr.mxu0 0.0
    %2530 = vmatpush1.msra.mxu0 0.0
    %2531 = vmatprep.subr.mxu0 0.0
    %2532 = vmatpush1.msra.mxu0 0.0
    %2533 = vmatprep.subr.mxu0 0.0
    %2534 = vmatpush1.msra.mxu0 0.0
    %2535 = vmatprep.mubr.f32.mxu0 0.0
    %2536 = vmatmul.mubr.f32.gmra.mrb[0].mxu0 %v2460
    %v2537 = vpop.f32.mrb[0].mxu0
    %v2538 = vadd.f32 0.0, %v2537
    %v2539 = vpop.f32.mrb[0].mxu0
    %2540 = vmatprep.mubr.f32.mxu0 0.0
    %2541 = vmatmul.mubr.f32.gmra.mrb[0].mxu0 %v2463
    %v2542 = vpop.f32.mrb[0].mxu0
    %v2543 = vadd.f32 0.0, %v2542
    %v2544 = vpop.f32.mrb[0].mxu0
    %2545 = vmatprep.mubr.f32.mxu0 0.0
    %2546 = vmatmul.mubr.f32.gmra.mrb[0].mxu0 %v2466
    %v2547 = vpop.f32.mrb[0].mxu0
    %v2548 = vadd.f32 0.0, %v2547
    %v2549 = vpop.f32.mrb[0].mxu0
    %2550 = vmatprep.mubr.f32.mxu0 0.0
    %2551 = vmatmul.mubr.f32.gmra.mrb[0].mxu0 %v2469
    %v2552 = vpop.f32.mrb[0].mxu0
    %v2553 = vadd.f32 0.0, %v2552
    %v2554 = vpop.f32.mrb[0].mxu0
    %2555 = vdwg.mxu0
    %v2556 = vadd.f32 %v2419, %v2538
    %v2557 = vadd.f32 %v2424, %v2543
    %v2558 = vadd.f32 %v2429, %v2548
    %v2559 = vadd.f32 %v2434, %v2553
    %s2560 = scalar_lea.vmem [#allocation2], 70
    %v2561 = vld [vmem:[%s2560] ss:$2 sm:$0xff]
    %s2562 = scalar_lea.vmem [#allocation2], 86
    %v2563 = vld [vmem:[%s2562] ss:$2 sm:$0xff]
    %s2564 = scalar_lea.vmem [#allocation2], 102
    %v2565 = vld [vmem:[%s2564] ss:$2 sm:$0xff]
    %s2566 = scalar_lea.vmem [#allocation2], 118
    %v2567 = vld [vmem:[%s2566] ss:$2 sm:$0x3]
    %s2568 = scalar_lea.vmem [#allocation2], 71
    %v2569 = vld [vmem:[%s2568] ss:$2 sm:$0xff]
    %s2570 = scalar_lea.vmem [#allocation2], 87
    %v2571 = vld [vmem:[%s2570] ss:$2 sm:$0xff]
    %s2572 = scalar_lea.vmem [#allocation2], 103
    %v2573 = vld [vmem:[%s2572] ss:$2 sm:$0xff]
    %s2574 = scalar_lea.vmem [#allocation2], 119
    %v2575 = vld [vmem:[%s2574] ss:$2 sm:$0x3]
    %v2576 = vmax.f32 %v2561, %v2569
    %v2577 = vmax.f32 %v2563, %v2571
    %v2578 = vmax.f32 %v2565, %v2573
    %v2579 = vmax.f32 %v2567, %v2575
    %v2580 = vld [vmem:[%s1953] sm:$0xff]
    %v2581 = vld [vmem:[%s1953 + $0x8] sm:$0xff]
    %v2583 = vsel %vm808, %v2576, 0
    %v2586 = vsel %vm808, %v2577, 0
    %v2589 = vsel %vm808, %v2578, 0
    %v2592 = vsel %vm808, %v2579, 0
    %2594 = vmatprep.subr.mxu0 0.0
    %2595 = vmatpush1.msra.mxu0 %v2580
    %2596 = vmatprep.subr.mxu0 0.0
    %2597 = vmatpush1.msra.mxu0 %v2581
    %2598 = vmatprep.subr.mxu0 0.0
    %2599 = vmatpush1.msra.mxu0 0.0
    %2600 = vmatprep.subr.mxu0 0.0
    %2601 = vmatpush1.msra.mxu0 0.0
    %2602 = vmatprep.subr.mxu0 0.0
    %2603 = vmatpush1.msra.mxu0 0.0
    %2604 = vmatprep.subr.mxu0 0.0
    %2605 = vmatpush1.msra.mxu0 0.0
    %2606 = vmatprep.subr.mxu0 0.0
    %2607 = vmatpush1.msra.mxu0 0.0
    %2608 = vmatprep.subr.mxu0 0.0
    %2609 = vmatpush1.msra.mxu0 0.0
    %2610 = vmatprep.subr.mxu0 0.0
    %2611 = vmatpush1.msra.mxu0 0.0
    %2612 = vmatprep.subr.mxu0 0.0
    %2613 = vmatpush1.msra.mxu0 0.0
    %2614 = vmatprep.subr.mxu0 0.0
    %2615 = vmatpush1.msra.mxu0 0.0
    %2616 = vmatprep.subr.mxu0 0.0
    %2617 = vmatpush1.msra.mxu0 0.0
    %2618 = vmatprep.subr.mxu0 0.0
    %2619 = vmatpush1.msra.mxu0 0.0
    %2620 = vmatprep.subr.mxu0 0.0
    %2621 = vmatpush1.msra.mxu0 0.0
    %2622 = vmatprep.subr.mxu0 0.0
    %2623 = vmatpush1.msra.mxu0 0.0
    %2624 = vmatprep.subr.mxu0 0.0
    %2625 = vmatpush1.msra.mxu0 0.0
    %2626 = vmatprep.subr.mxu0 0.0
    %2627 = vmatpush1.msra.mxu0 0.0
    %2628 = vmatprep.subr.mxu0 0.0
    %2629 = vmatpush1.msra.mxu0 0.0
    %2630 = vmatprep.subr.mxu0 0.0
    %2631 = vmatpush1.msra.mxu0 0.0
    %2632 = vmatprep.subr.mxu0 0.0
    %2633 = vmatpush1.msra.mxu0 0.0
    %2634 = vmatprep.subr.mxu0 0.0
    %2635 = vmatpush1.msra.mxu0 0.0
    %2636 = vmatprep.subr.mxu0 0.0
    %2637 = vmatpush1.msra.mxu0 0.0
    %2638 = vmatprep.subr.mxu0 0.0
    %2639 = vmatpush1.msra.mxu0 0.0
    %2640 = vmatprep.subr.mxu0 0.0
    %2641 = vmatpush1.msra.mxu0 0.0
    %2642 = vmatprep.subr.mxu0 0.0
    %2643 = vmatpush1.msra.mxu0 0.0
    %2644 = vmatprep.subr.mxu0 0.0
    %2645 = vmatpush1.msra.mxu0 0.0
    %2646 = vmatprep.subr.mxu0 0.0
    %2647 = vmatpush1.msra.mxu0 0.0
    %2648 = vmatprep.subr.mxu0 0.0
    %2649 = vmatpush1.msra.mxu0 0.0
    %2650 = vmatprep.subr.mxu0 0.0
    %2651 = vmatpush1.msra.mxu0 0.0
    %2652 = vmatprep.subr.mxu0 0.0
    %2653 = vmatpush1.msra.mxu0 0.0
    %2654 = vmatprep.subr.mxu0 0.0
    %2655 = vmatpush1.msra.mxu0 0.0
    %2656 = vmatprep.subr.mxu0 0.0
    %2657 = vmatpush1.msra.mxu0 0.0
    %2658 = vmatprep.mubr.f32.mxu0 0.0
    %2659 = vmatmul.mubr.f32.gmra.mrb[0].mxu0 %v2583
    %v2660 = vpop.f32.mrb[0].mxu0
    %v2661 = vadd.f32 0.0, %v2660
    %v2662 = vpop.f32.mrb[0].mxu0
    %2663 = vmatprep.mubr.f32.mxu0 0.0
    %2664 = vmatmul.mubr.f32.gmra.mrb[0].mxu0 %v2586
    %v2665 = vpop.f32.mrb[0].mxu0
    %v2666 = vadd.f32 0.0, %v2665
    %v2667 = vpop.f32.mrb[0].mxu0
    %2668 = vmatprep.mubr.f32.mxu0 0.0
    %2669 = vmatmul.mubr.f32.gmra.mrb[0].mxu0 %v2589
    %v2670 = vpop.f32.mrb[0].mxu0
    %v2671 = vadd.f32 0.0, %v2670
    %v2672 = vpop.f32.mrb[0].mxu0
    %2673 = vmatprep.mubr.f32.mxu0 0.0
    %2674 = vmatmul.mubr.f32.gmra.mrb[0].mxu0 %v2592
    %v2675 = vpop.f32.mrb[0].mxu0
    %v2676 = vadd.f32 0.0, %v2675
    %v2677 = vpop.f32.mrb[0].mxu0
    %2678 = vdwg.mxu0
    %v2679 = vadd.f32 %v2556, %v2661
    %v2680 = vadd.f32 %v2557, %v2666
    %v2681 = vadd.f32 %v2558, %v2671
    %v2682 = vadd.f32 %v2559, %v2676
    %s2683 = scalar_lea.vmem [#allocation2], 72
    %v2684 = vld [vmem:[%s2683] ss:$2 sm:$0xff]
    %s2685 = scalar_lea.vmem [#allocation2], 88
    %v2686 = vld [vmem:[%s2685] ss:$2 sm:$0xff]
    %s2687 = scalar_lea.vmem [#allocation2], 104
    %v2688 = vld [vmem:[%s2687] ss:$2 sm:$0xff]
    %s2689 = scalar_lea.vmem [#allocation2], 120
    %v2690 = vld [vmem:[%s2689] ss:$2 sm:$0x3]
    %s2691 = scalar_lea.vmem [#allocation2], 73
    %v2692 = vld [vmem:[%s2691] ss:$2 sm:$0xff]
    %s2693 = scalar_lea.vmem [#allocation2], 89
    %v2694 = vld [vmem:[%s2693] ss:$2 sm:$0xff]
    %s2695 = scalar_lea.vmem [#allocation2], 105
    %v2696 = vld [vmem:[%s2695] ss:$2 sm:$0xff]
    %s2697 = scalar_lea.vmem [#allocation2], 121
    %v2698 = vld [vmem:[%s2697] ss:$2 sm:$0x3]
    %v2699 = vmax.f32 %v2684, %v2692
    %v2700 = vmax.f32 %v2686, %v2694
    %v2701 = vmax.f32 %v2688, %v2696
    %v2702 = vmax.f32 %v2690, %v2698
    %v2703 = vld [vmem:[%s2077] sm:$0xff]
    %v2704 = vld [vmem:[%s2077 + $0x8] sm:$0xff]
    %v2706 = vsel %vm808, %v2699, 0
    %v2709 = vsel %vm808, %v2700, 0
    %v2712 = vsel %vm808, %v2701, 0
    %v2715 = vsel %vm808, %v2702, 0
    %2717 = vmatprep.subr.mxu0 0.0
    %2718 = vmatpush1.msra.mxu0 %v2703
    %2719 = vmatprep.subr.mxu0 0.0
    %2720 = vmatpush1.msra.mxu0 %v2704
    %2721 = vmatprep.subr.mxu0 0.0
    %2722 = vmatpush1.msra.mxu0 0.0
    %2723 = vmatprep.subr.mxu0 0.0
    %2724 = vmatpush1.msra.mxu0 0.0
    %2725 = vmatprep.subr.mxu0 0.0
    %2726 = vmatpush1.msra.mxu0 0.0
    %2727 = vmatprep.subr.mxu0 0.0
    %2728 = vmatpush1.msra.mxu0 0.0
    %2729 = vmatprep.subr.mxu0 0.0
    %2730 = vmatpush1.msra.mxu0 0.0
    %2731 = vmatprep.subr.mxu0 0.0
    %2732 = vmatpush1.msra.mxu0 0.0
    %2733 = vmatprep.subr.mxu0 0.0
    %2734 = vmatpush1.msra.mxu0 0.0
    %2735 = vmatprep.subr.mxu0 0.0
    %2736 = vmatpush1.msra.mxu0 0.0
    %2737 = vmatprep.subr.mxu0 0.0
    %2738 = vmatpush1.msra.mxu0 0.0
    %2739 = vmatprep.subr.mxu0 0.0
    %2740 = vmatpush1.msra.mxu0 0.0
    %2741 = vmatprep.subr.mxu0 0.0
    %2742 = vmatpush1.msra.mxu0 0.0
    %2743 = vmatprep.subr.mxu0 0.0
    %2744 = vmatpush1.msra.mxu0 0.0
    %2745 = vmatprep.subr.mxu0 0.0
    %2746 = vmatpush1.msra.mxu0 0.0
    %2747 = vmatprep.subr.mxu0 0.0
    %2748 = vmatpush1.msra.mxu0 0.0
    %2749 = vmatprep.subr.mxu0 0.0
    %2750 = vmatpush1.msra.mxu0 0.0
    %2751 = vmatprep.subr.mxu0 0.0
    %2752 = vmatpush1.msra.mxu0 0.0
    %2753 = vmatprep.subr.mxu0 0.0
    %2754 = vmatpush1.msra.mxu0 0.0
    %2755 = vmatprep.subr.mxu0 0.0
    %2756 = vmatpush1.msra.mxu0 0.0
    %2757 = vmatprep.subr.mxu0 0.0
    %2758 = vmatpush1.msra.mxu0 0.0
    %2759 = vmatprep.subr.mxu0 0.0
    %2760 = vmatpush1.msra.mxu0 0.0
    %2761 = vmatprep.subr.mxu0 0.0
    %2762 = vmatpush1.msra.mxu0 0.0
    %2763 = vmatprep.subr.mxu0 0.0
    %2764 = vmatpush1.msra.mxu0 0.0
    %2765 = vmatprep.subr.mxu0 0.0
    %2766 = vmatpush1.msra.mxu0 0.0
    %2767 = vmatprep.subr.mxu0 0.0
    %2768 = vmatpush1.msra.mxu0 0.0
    %2769 = vmatprep.subr.mxu0 0.0
    %2770 = vmatpush1.msra.mxu0 0.0
    %2771 = vmatprep.subr.mxu0 0.0
    %2772 = vmatpush1.msra.mxu0 0.0
    %2773 = vmatprep.subr.mxu0 0.0
    %2774 = vmatpush1.msra.mxu0 0.0
    %2775 = vmatprep.subr.mxu0 0.0
    %2776 = vmatpush1.msra.mxu0 0.0
    %2777 = vmatprep.subr.mxu0 0.0
    %2778 = vmatpush1.msra.mxu0 0.0
    %2779 = vmatprep.subr.mxu0 0.0
    %2780 = vmatpush1.msra.mxu0 0.0
    %2781 = vmatprep.mubr.f32.mxu0 0.0
    %2782 = vmatmul.mubr.f32.gmra.mrb[0].mxu0 %v2706
    %v2783 = vpop.f32.mrb[0].mxu0
    %v2784 = vadd.f32 0.0, %v2783
    %v2785 = vpop.f32.mrb[0].mxu0
    %2786 = vmatprep.mubr.f32.mxu0 0.0
    %2787 = vmatmul.mubr.f32.gmra.mrb[0].mxu0 %v2709
    %v2788 = vpop.f32.mrb[0].mxu0
    %v2789 = vadd.f32 0.0, %v2788
    %v2790 = vpop.f32.mrb[0].mxu0
    %2791 = vmatprep.mubr.f32.mxu0 0.0
    %2792 = vmatmul.mubr.f32.gmra.mrb[0].mxu0 %v2712
    %v2793 = vpop.f32.mrb[0].mxu0
    %v2794 = vadd.f32 0.0, %v2793
    %v2795 = vpop.f32.mrb[0].mxu0
    %2796 = vmatprep.mubr.f32.mxu0 0.0
    %2797 = vmatmul.mubr.f32.gmra.mrb[0].mxu0 %v2715
    %v2798 = vpop.f32.mrb[0].mxu0
    %v2799 = vadd.f32 0.0, %v2798
    %v2800 = vpop.f32.mrb[0].mxu0
    %2801 = vdwg.mxu0
    %v2802 = vadd.f32 %v2679, %v2784
    %v2803 = vadd.f32 %v2680, %v2789
    %v2804 = vadd.f32 %v2681, %v2794
    %v2805 = vadd.f32 %v2682, %v2799
    %v2806 = vadd.f32 %v2802, %v2184
    %v2807 = vadd.f32 %v2803, %v2184
    %v2808 = vadd.f32 %v2804, %v2184
    %v2809 = vadd.f32 %v2805, %v2184
    %v2810 = vmax.f32 %v2806, 0.0
    %v2811 = vmax.f32 %v2807, 0.0
    %v2812 = vmax.f32 %v2808, 0.0
    %v2813 = vmax.f32 %v2809, 0.0
    %2814 = vst.msk [vmem:[#allocation3 + $0x20] sm:$0xff] %vm2193, %v2810
    %2815 = vst.msk [vmem:[#allocation3 + $0x28] sm:$0xff] %vm2193, %v2811
    %2816 = vst.msk [vmem:[#allocation3 + $0x30] sm:$0xff] %vm2193, %v2812
    %2817 = vst.msk [vmem:[#allocation3 + $0x38] sm:$0x3] %vm2197, %v2813
    %v2818 = vld [vmem:[#allocation3] ss:$32 sm:$0x1]
    %v2819 = vld [vmem:[#allocation3] ss:$32 sm:$0x2]
    %v2820 = vor.u32 %v2818, %v2819
    %s2821 = scalar_lea.vmem [#allocation3], 1
    %v2822 = vld [vmem:[%s2821] ss:$32 sm:$0x1]
    %v2823 = vld [vmem:[%s2821] ss:$32 sm:$0x2]
    %v2824 = vor.u32 %v2822, %v2823
    %v2825 = vmax.f32 %v2820, %v2824
    %v2826 = vld [vmem:[#allocation7] sm:$0xff]
    %v2827 = vld [vmem:[#allocation7 + $0x8] sm:$0xff]
    %v2828 = vld [vmem:[#allocation7 + $0x10] sm:$0xff]
    %v2829 = vld [vmem:[#allocation7 + $0x18] sm:$0xff]
    %s2830 = scalar_lea.vmem [#allocation3], 2
    %v2831 = vld [vmem:[%s2830] ss:$32 sm:$0x1]
    %v2832 = vld [vmem:[%s2830] ss:$32 sm:$0x2]
    %v2833 = vor.u32 %v2831, %v2832
    %s2834 = scalar_lea.vmem [#allocation3], 3
    %v2835 = vld [vmem:[%s2834] ss:$32 sm:$0x1]
    %v2836 = vld [vmem:[%s2834] ss:$32 sm:$0x2]
    %v2837 = vor.u32 %v2835, %v2836
    %v2838 = vmax.f32 %v2833, %v2837
    %s2839 = scalar_lea.vmem [#allocation7], 32
    %v2840 = vld [vmem:[%s2839] sm:$0xff]
    %v2841 = vld [vmem:[%s2839 + $0x8] sm:$0xff]
    %v2842 = vld [vmem:[%s2839 + $0x10] sm:$0xff]
    %v2843 = vld [vmem:[%s2839 + $0x18] sm:$0xff]
    %v2845 = vsel %vm2193, %v2838, 0
    %2847 = vmatprep.subr.mxu0 0.0
    %2848 = vmatpush1.msra.mxu0 %v2840
    %2849 = vmatprep.subr.mxu0 0.0
    %2850 = vmatpush1.msra.mxu0 %v2841
    %2851 = vmatprep.subr.mxu0 0.0
    %2852 = vmatpush1.msra.mxu0 %v2842
    %2853 = vmatprep.subr.mxu0 0.0
    %2854 = vmatpush1.msra.mxu0 %v2843
    %2855 = vmatprep.subr.mxu0 0.0
    %2856 = vmatpush1.msra.mxu0 0.0
    %2857 = vmatprep.subr.mxu0 0.0
    %2858 = vmatpush1.msra.mxu0 0.0
    %2859 = vmatprep.subr.mxu0 0.0
    %2860 = vmatpush1.msra.mxu0 0.0
    %2861 = vmatprep.subr.mxu0 0.0
    %2862 = vmatpush1.msra.mxu0 0.0
    %2863 = vmatprep.subr.mxu0 0.0
    %2864 = vmatpush1.msra.mxu0 0.0
    %2865 = vmatprep.subr.mxu0 0.0
    %2866 = vmatpush1.msra.mxu0 0.0
    %2867 = vmatprep.subr.mxu0 0.0
    %2868 = vmatpush1.msra.mxu0 0.0
    %2869 = vmatprep.subr.mxu0 0.0
    %2870 = vmatpush1.msra.mxu0 0.0
    %2871 = vmatprep.subr.mxu0 0.0
    %2872 = vmatpush1.msra.mxu0 0.0
    %2873 = vmatprep.subr.mxu0 0.0
    %2874 = vmatpush1.msra.mxu0 0.0
    %2875 = vmatprep.subr.mxu0 0.0
    %2876 = vmatpush1.msra.mxu0 0.0
    %2877 = vmatprep.subr.mxu0 0.0
    %2878 = vmatpush1.msra.mxu0 0.0
    %2879 = vmatprep.subr.mxu0 0.0
    %2880 = vmatpush1.msra.mxu0 0.0
    %2881 = vmatprep.subr.mxu0 0.0
    %2882 = vmatpush1.msra.mxu0 0.0
    %2883 = vmatprep.subr.mxu0 0.0
    %2884 = vmatpush1.msra.mxu0 0.0
    %2885 = vmatprep.subr.mxu0 0.0
    %2886 = vmatpush1.msra.mxu0 0.0
    %2887 = vmatprep.subr.mxu0 0.0
    %2888 = vmatpush1.msra.mxu0 0.0
    %2889 = vmatprep.subr.mxu0 0.0
    %2890 = vmatpush1.msra.mxu0 0.0
    %2891 = vmatprep.subr.mxu0 0.0
    %2892 = vmatpush1.msra.mxu0 0.0
    %2893 = vmatprep.subr.mxu0 0.0
    %2894 = vmatpush1.msra.mxu0 0.0
    %2895 = vmatprep.subr.mxu0 0.0
    %2896 = vmatpush1.msra.mxu0 0.0
    %2897 = vmatprep.subr.mxu0 0.0
    %2898 = vmatpush1.msra.mxu0 0.0
    %2899 = vmatprep.subr.mxu0 0.0
    %2900 = vmatpush1.msra.mxu0 0.0
    %2901 = vmatprep.subr.mxu0 0.0
    %2902 = vmatpush1.msra.mxu0 0.0
    %2903 = vmatprep.subr.mxu0 0.0
    %2904 = vmatpush1.msra.mxu0 0.0
    %2905 = vmatprep.subr.mxu0 0.0
    %2906 = vmatpush1.msra.mxu0 0.0
    %2907 = vmatprep.subr.mxu0 0.0
    %2908 = vmatpush1.msra.mxu0 0.0
    %2909 = vmatprep.subr.mxu0 0.0
    %2910 = vmatpush1.msra.mxu0 0.0
    %2911 = vmatprep.mubr.f32.mxu0 0.0
    %2912 = vmatmul.mubr.f32.gmra.mrb[0].mxu0 %v2845
    %v2913 = vpop.f32.mrb[0].mxu0
    %v2914 = vadd.f32 0.0, %v2913
    %v2915 = vpop.f32.mrb[0].mxu0
    %2916 = vdwg.mxu0
    %v2918 = vsel %vm2193, %v2825, 0
    %2920 = vmatprep.subr.mxu0 0.0
    %2921 = vmatpush1.msra.mxu0 %v2826
    %2922 = vmatprep.subr.mxu0 0.0
    %2923 = vmatpush1.msra.mxu0 %v2827
    %2924 = vmatprep.subr.mxu0 0.0
    %2925 = vmatpush1.msra.mxu0 %v2828
    %2926 = vmatprep.subr.mxu0 0.0
    %2927 = vmatpush1.msra.mxu0 %v2829
    %2928 = vmatprep.subr.mxu0 0.0
    %2929 = vmatpush1.msra.mxu0 0.0
    %2930 = vmatprep.subr.mxu0 0.0
    %2931 = vmatpush1.msra.mxu0 0.0
    %2932 = vmatprep.subr.mxu0 0.0
    %2933 = vmatpush1.msra.mxu0 0.0
    %2934 = vmatprep.subr.mxu0 0.0
    %2935 = vmatpush1.msra.mxu0 0.0
    %2936 = vmatprep.subr.mxu0 0.0
    %2937 = vmatpush1.msra.mxu0 0.0
    %2938 = vmatprep.subr.mxu0 0.0
    %2939 = vmatpush1.msra.mxu0 0.0
    %2940 = vmatprep.subr.mxu0 0.0
    %2941 = vmatpush1.msra.mxu0 0.0
    %2942 = vmatprep.subr.mxu0 0.0
    %2943 = vmatpush1.msra.mxu0 0.0
    %2944 = vmatprep.subr.mxu0 0.0
    %2945 = vmatpush1.msra.mxu0 0.0
    %2946 = vmatprep.subr.mxu0 0.0
    %2947 = vmatpush1.msra.mxu0 0.0
    %2948 = vmatprep.subr.mxu0 0.0
    %2949 = vmatpush1.msra.mxu0 0.0
    %2950 = vmatprep.subr.mxu0 0.0
    %2951 = vmatpush1.msra.mxu0 0.0
    %2952 = vmatprep.subr.mxu0 0.0
    %2953 = vmatpush1.msra.mxu0 0.0
    %2954 = vmatprep.subr.mxu0 0.0
    %2955 = vmatpush1.msra.mxu0 0.0
    %2956 = vmatprep.subr.mxu0 0.0
    %2957 = vmatpush1.msra.mxu0 0.0
    %2958 = vmatprep.subr.mxu0 0.0
    %2959 = vmatpush1.msra.mxu0 0.0
    %2960 = vmatprep.subr.mxu0 0.0
    %2961 = vmatpush1.msra.mxu0 0.0
    %2962 = vmatprep.subr.mxu0 0.0
    %2963 = vmatpush1.msra.mxu0 0.0
    %2964 = vmatprep.subr.mxu0 0.0
    %2965 = vmatpush1.msra.mxu0 0.0
    %2966 = vmatprep.subr.mxu0 0.0
    %2967 = vmatpush1.msra.mxu0 0.0
    %2968 = vmatprep.subr.mxu0 0.0
    %2969 = vmatpush1.msra.mxu0 0.0
    %2970 = vmatprep.subr.mxu0 0.0
    %2971 = vmatpush1.msra.mxu0 0.0
    %2972 = vmatprep.subr.mxu0 0.0
    %2973 = vmatpush1.msra.mxu0 0.0
    %2974 = vmatprep.subr.mxu0 0.0
    %2975 = vmatpush1.msra.mxu0 0.0
    %2976 = vmatprep.subr.mxu0 0.0
    %2977 = vmatpush1.msra.mxu0 0.0
    %2978 = vmatprep.subr.mxu0 0.0
    %2979 = vmatpush1.msra.mxu0 0.0
    %2980 = vmatprep.subr.mxu0 0.0
    %2981 = vmatpush1.msra.mxu0 0.0
    %2982 = vmatprep.subr.mxu0 0.0
    %2983 = vmatpush1.msra.mxu0 0.0
    %2984 = vmatprep.mubr.f32.mxu0 0.0
    %2985 = vmatmul.mubr.f32.gmra.mrb[0].mxu0 %v2918
    %v2986 = vpop.f32.mrb[0].mxu0
    %v2987 = vadd.f32 %v2914, %v2986
    %v2988 = vpop.f32.mrb[0].mxu0
    %2989 = vdwg.mxu0
    %s2990 = scalar_lea.vmem [#allocation3], 4
    %v2991 = vld [vmem:[%s2990] ss:$32 sm:$0x1]
    %v2992 = vld [vmem:[%s2990] ss:$32 sm:$0x2]
    %v2993 = vor.u32 %v2991, %v2992
    %s2994 = scalar_lea.vmem [#allocation3], 5
    %v2995 = vld [vmem:[%s2994] ss:$32 sm:$0x1]
    %v2996 = vld [vmem:[%s2994] ss:$32 sm:$0x2]
    %v2997 = vor.u32 %v2995, %v2996
    %v2998 = vmax.f32 %v2993, %v2997
    %s2999 = scalar_lea.vmem [#allocation7], 64
    %v3000 = vld [vmem:[%s2999] sm:$0xff]
    %v3001 = vld [vmem:[%s2999 + $0x8] sm:$0xff]
    %v3002 = vld [vmem:[%s2999 + $0x10] sm:$0xff]
    %v3003 = vld [vmem:[%s2999 + $0x18] sm:$0xff]
    %v3005 = vsel %vm2193, %v2998, 0
    %3007 = vmatprep.subr.mxu0 0.0
    %3008 = vmatpush1.msra.mxu0 %v3000
    %3009 = vmatprep.subr.mxu0 0.0
    %3010 = vmatpush1.msra.mxu0 %v3001
    %3011 = vmatprep.subr.mxu0 0.0
    %3012 = vmatpush1.msra.mxu0 %v3002
    %3013 = vmatprep.subr.mxu0 0.0
    %3014 = vmatpush1.msra.mxu0 %v3003
    %3015 = vmatprep.subr.mxu0 0.0
    %3016 = vmatpush1.msra.mxu0 0.0
    %3017 = vmatprep.subr.mxu0 0.0
    %3018 = vmatpush1.msra.mxu0 0.0
    %3019 = vmatprep.subr.mxu0 0.0
    %3020 = vmatpush1.msra.mxu0 0.0
    %3021 = vmatprep.subr.mxu0 0.0
    %3022 = vmatpush1.msra.mxu0 0.0
    %3023 = vmatprep.subr.mxu0 0.0
    %3024 = vmatpush1.msra.mxu0 0.0
    %3025 = vmatprep.subr.mxu0 0.0
    %3026 = vmatpush1.msra.mxu0 0.0
    %3027 = vmatprep.subr.mxu0 0.0
    %3028 = vmatpush1.msra.mxu0 0.0
    %3029 = vmatprep.subr.mxu0 0.0
    %3030 = vmatpush1.msra.mxu0 0.0
    %3031 = vmatprep.subr.mxu0 0.0
    %3032 = vmatpush1.msra.mxu0 0.0
    %3033 = vmatprep.subr.mxu0 0.0
    %3034 = vmatpush1.msra.mxu0 0.0
    %3035 = vmatprep.subr.mxu0 0.0
    %3036 = vmatpush1.msra.mxu0 0.0
    %3037 = vmatprep.subr.mxu0 0.0
    %3038 = vmatpush1.msra.mxu0 0.0
    %3039 = vmatprep.subr.mxu0 0.0
    %3040 = vmatpush1.msra.mxu0 0.0
    %3041 = vmatprep.subr.mxu0 0.0
    %3042 = vmatpush1.msra.mxu0 0.0
    %3043 = vmatprep.subr.mxu0 0.0
    %3044 = vmatpush1.msra.mxu0 0.0
    %3045 = vmatprep.subr.mxu0 0.0
    %3046 = vmatpush1.msra.mxu0 0.0
    %3047 = vmatprep.subr.mxu0 0.0
    %3048 = vmatpush1.msra.mxu0 0.0
    %3049 = vmatprep.subr.mxu0 0.0
    %3050 = vmatpush1.msra.mxu0 0.0
    %3051 = vmatprep.subr.mxu0 0.0
    %3052 = vmatpush1.msra.mxu0 0.0
    %3053 = vmatprep.subr.mxu0 0.0
    %3054 = vmatpush1.msra.mxu0 0.0
    %3055 = vmatprep.subr.mxu0 0.0
    %3056 = vmatpush1.msra.mxu0 0.0
    %3057 = vmatprep.subr.mxu0 0.0
    %3058 = vmatpush1.msra.mxu0 0.0
    %3059 = vmatprep.subr.mxu0 0.0
    %3060 = vmatpush1.msra.mxu0 0.0
    %3061 = vmatprep.subr.mxu0 0.0
    %3062 = vmatpush1.msra.mxu0 0.0
    %3063 = vmatprep.subr.mxu0 0.0
    %3064 = vmatpush1.msra.mxu0 0.0
    %3065 = vmatprep.subr.mxu0 0.0
    %3066 = vmatpush1.msra.mxu0 0.0
    %3067 = vmatprep.subr.mxu0 0.0
    %3068 = vmatpush1.msra.mxu0 0.0
    %3069 = vmatprep.subr.mxu0 0.0
    %3070 = vmatpush1.msra.mxu0 0.0
    %3071 = vmatprep.mubr.f32.mxu0 0.0
    %3072 = vmatmul.mubr.f32.gmra.mrb[0].mxu0 %v3005
    %v3073 = vpop.f32.mrb[0].mxu0
    %v3074 = vadd.f32 0.0, %v3073
    %v3075 = vpop.f32.mrb[0].mxu0
    %3076 = vdwg.mxu0
    %v3077 = vadd.f32 %v2987, %v3074
    %s3078 = scalar_lea.vmem [#allocation3], 6
    %v3079 = vld [vmem:[%s3078] ss:$32 sm:$0x1]
    %v3080 = vld [vmem:[%s3078] ss:$32 sm:$0x2]
    %v3081 = vor.u32 %v3079, %v3080
    %s3082 = scalar_lea.vmem [#allocation3], 7
    %v3083 = vld [vmem:[%s3082] ss:$32 sm:$0x1]
    %v3084 = vld [vmem:[%s3082] ss:$32 sm:$0x2]
    %v3085 = vor.u32 %v3083, %v3084
    %v3086 = vmax.f32 %v3081, %v3085
    %s3087 = scalar_lea.vmem [#allocation7], 96
    %v3088 = vld [vmem:[%s3087] sm:$0xff]
    %v3089 = vld [vmem:[%s3087 + $0x8] sm:$0xff]
    %v3090 = vld [vmem:[%s3087 + $0x10] sm:$0xff]
    %v3091 = vld [vmem:[%s3087 + $0x18] sm:$0xff]
    %v3093 = vsel %vm2193, %v3086, 0
    %3095 = vmatprep.subr.mxu0 0.0
    %3096 = vmatpush1.msra.mxu0 %v3088
    %3097 = vmatprep.subr.mxu0 0.0
    %3098 = vmatpush1.msra.mxu0 %v3089
    %3099 = vmatprep.subr.mxu0 0.0
    %3100 = vmatpush1.msra.mxu0 %v3090
    %3101 = vmatprep.subr.mxu0 0.0
    %3102 = vmatpush1.msra.mxu0 %v3091
    %3103 = vmatprep.subr.mxu0 0.0
    %3104 = vmatpush1.msra.mxu0 0.0
    %3105 = vmatprep.subr.mxu0 0.0
    %3106 = vmatpush1.msra.mxu0 0.0
    %3107 = vmatprep.subr.mxu0 0.0
    %3108 = vmatpush1.msra.mxu0 0.0
    %3109 = vmatprep.subr.mxu0 0.0
    %3110 = vmatpush1.msra.mxu0 0.0
    %3111 = vmatprep.subr.mxu0 0.0
    %3112 = vmatpush1.msra.mxu0 0.0
    %3113 = vmatprep.subr.mxu0 0.0
    %3114 = vmatpush1.msra.mxu0 0.0
    %3115 = vmatprep.subr.mxu0 0.0
    %3116 = vmatpush1.msra.mxu0 0.0
    %3117 = vmatprep.subr.mxu0 0.0
    %3118 = vmatpush1.msra.mxu0 0.0
    %3119 = vmatprep.subr.mxu0 0.0
    %3120 = vmatpush1.msra.mxu0 0.0
    %3121 = vmatprep.subr.mxu0 0.0
    %3122 = vmatpush1.msra.mxu0 0.0
    %3123 = vmatprep.subr.mxu0 0.0
    %3124 = vmatpush1.msra.mxu0 0.0
    %3125 = vmatprep.subr.mxu0 0.0
    %3126 = vmatpush1.msra.mxu0 0.0
    %3127 = vmatprep.subr.mxu0 0.0
    %3128 = vmatpush1.msra.mxu0 0.0
    %3129 = vmatprep.subr.mxu0 0.0
    %3130 = vmatpush1.msra.mxu0 0.0
    %3131 = vmatprep.subr.mxu0 0.0
    %3132 = vmatpush1.msra.mxu0 0.0
    %3133 = vmatprep.subr.mxu0 0.0
    %3134 = vmatpush1.msra.mxu0 0.0
    %3135 = vmatprep.subr.mxu0 0.0
    %3136 = vmatpush1.msra.mxu0 0.0
    %3137 = vmatprep.subr.mxu0 0.0
    %3138 = vmatpush1.msra.mxu0 0.0
    %3139 = vmatprep.subr.mxu0 0.0
    %3140 = vmatpush1.msra.mxu0 0.0
    %3141 = vmatprep.subr.mxu0 0.0
    %3142 = vmatpush1.msra.mxu0 0.0
    %3143 = vmatprep.subr.mxu0 0.0
    %3144 = vmatpush1.msra.mxu0 0.0
    %3145 = vmatprep.subr.mxu0 0.0
    %3146 = vmatpush1.msra.mxu0 0.0
    %3147 = vmatprep.subr.mxu0 0.0
    %3148 = vmatpush1.msra.mxu0 0.0
    %3149 = vmatprep.subr.mxu0 0.0
    %3150 = vmatpush1.msra.mxu0 0.0
    %3151 = vmatprep.subr.mxu0 0.0
    %3152 = vmatpush1.msra.mxu0 0.0
    %3153 = vmatprep.subr.mxu0 0.0
    %3154 = vmatpush1.msra.mxu0 0.0
    %3155 = vmatprep.subr.mxu0 0.0
    %3156 = vmatpush1.msra.mxu0 0.0
    %3157 = vmatprep.subr.mxu0 0.0
    %3158 = vmatpush1.msra.mxu0 0.0
    %3159 = vmatprep.mubr.f32.mxu0 0.0
    %3160 = vmatmul.mubr.f32.gmra.mrb[0].mxu0 %v3093
    %v3161 = vpop.f32.mrb[0].mxu0
    %v3162 = vadd.f32 0.0, %v3161
    %v3163 = vpop.f32.mrb[0].mxu0
    %3164 = vdwg.mxu0
    %v3165 = vadd.f32 %v3077, %v3162
    %s3166 = scalar_lea.vmem [#allocation3], 8
    %v3167 = vld [vmem:[%s3166] ss:$32 sm:$0x1]
    %v3168 = vld [vmem:[%s3166] ss:$32 sm:$0x2]
    %v3169 = vor.u32 %v3167, %v3168
    %s3170 = scalar_lea.vmem [#allocation3], 9
    %v3171 = vld [vmem:[%s3170] ss:$32 sm:$0x1]
    %v3172 = vld [vmem:[%s3170] ss:$32 sm:$0x2]
    %v3173 = vor.u32 %v3171, %v3172
    %v3174 = vmax.f32 %v3169, %v3173
    %s3175 = scalar_lea.vmem [#allocation7], 128
    %v3176 = vld [vmem:[%s3175] sm:$0xff]
    %v3177 = vld [vmem:[%s3175 + $0x8] sm:$0xff]
    %v3178 = vld [vmem:[%s3175 + $0x10] sm:$0xff]
    %v3179 = vld [vmem:[%s3175 + $0x18] sm:$0xff]
    %v3181 = vsel %vm2193, %v3174, 0
    %3183 = vmatprep.subr.mxu0 0.0
    %3184 = vmatpush1.msra.mxu0 %v3176
    %3185 = vmatprep.subr.mxu0 0.0
    %3186 = vmatpush1.msra.mxu0 %v3177
    %3187 = vmatprep.subr.mxu0 0.0
    %3188 = vmatpush1.msra.mxu0 %v3178
    %3189 = vmatprep.subr.mxu0 0.0
    %3190 = vmatpush1.msra.mxu0 %v3179
    %3191 = vmatprep.subr.mxu0 0.0
    %3192 = vmatpush1.msra.mxu0 0.0
    %3193 = vmatprep.subr.mxu0 0.0
    %3194 = vmatpush1.msra.mxu0 0.0
    %3195 = vmatprep.subr.mxu0 0.0
    %3196 = vmatpush1.msra.mxu0 0.0
    %3197 = vmatprep.subr.mxu0 0.0
    %3198 = vmatpush1.msra.mxu0 0.0
    %3199 = vmatprep.subr.mxu0 0.0
    %3200 = vmatpush1.msra.mxu0 0.0
    %3201 = vmatprep.subr.mxu0 0.0
    %3202 = vmatpush1.msra.mxu0 0.0
    %3203 = vmatprep.subr.mxu0 0.0
    %3204 = vmatpush1.msra.mxu0 0.0
    %3205 = vmatprep.subr.mxu0 0.0
    %3206 = vmatpush1.msra.mxu0 0.0
    %3207 = vmatprep.subr.mxu0 0.0
    %3208 = vmatpush1.msra.mxu0 0.0
    %3209 = vmatprep.subr.mxu0 0.0
    %3210 = vmatpush1.msra.mxu0 0.0
    %3211 = vmatprep.subr.mxu0 0.0
    %3212 = vmatpush1.msra.mxu0 0.0
    %3213 = vmatprep.subr.mxu0 0.0
    %3214 = vmatpush1.msra.mxu0 0.0
    %3215 = vmatprep.subr.mxu0 0.0
    %3216 = vmatpush1.msra.mxu0 0.0
    %3217 = vmatprep.subr.mxu0 0.0
    %3218 = vmatpush1.msra.mxu0 0.0
    %3219 = vmatprep.subr.mxu0 0.0
    %3220 = vmatpush1.msra.mxu0 0.0
    %3221 = vmatprep.subr.mxu0 0.0
    %3222 = vmatpush1.msra.mxu0 0.0
    %3223 = vmatprep.subr.mxu0 0.0
    %3224 = vmatpush1.msra.mxu0 0.0
    %3225 = vmatprep.subr.mxu0 0.0
    %3226 = vmatpush1.msra.mxu0 0.0
    %3227 = vmatprep.subr.mxu0 0.0
    %3228 = vmatpush1.msra.mxu0 0.0
    %3229 = vmatprep.subr.mxu0 0.0
    %3230 = vmatpush1.msra.mxu0 0.0
    %3231 = vmatprep.subr.mxu0 0.0
    %3232 = vmatpush1.msra.mxu0 0.0
    %3233 = vmatprep.subr.mxu0 0.0
    %3234 = vmatpush1.msra.mxu0 0.0
    %3235 = vmatprep.subr.mxu0 0.0
    %3236 = vmatpush1.msra.mxu0 0.0
    %3237 = vmatprep.subr.mxu0 0.0
    %3238 = vmatpush1.msra.mxu0 0.0
    %3239 = vmatprep.subr.mxu0 0.0
    %3240 = vmatpush1.msra.mxu0 0.0
    %3241 = vmatprep.subr.mxu0 0.0
    %3242 = vmatpush1.msra.mxu0 0.0
    %3243 = vmatprep.subr.mxu0 0.0
    %3244 = vmatpush1.msra.mxu0 0.0
    %3245 = vmatprep.subr.mxu0 0.0
    %3246 = vmatpush1.msra.mxu0 0.0
    %3247 = vmatprep.mubr.f32.mxu0 0.0
    %3248 = vmatmul.mubr.f32.gmra.mrb[0].mxu0 %v3181
    %v3249 = vpop.f32.mrb[0].mxu0
    %v3250 = vadd.f32 0.0, %v3249
    %v3251 = vpop.f32.mrb[0].mxu0
    %3252 = vdwg.mxu0
    %v3253 = vadd.f32 %v3165, %v3250
    %s3254 = scalar_lea.vmem [#allocation3], 10
    %v3255 = vld [vmem:[%s3254] ss:$32 sm:$0x1]
    %v3256 = vld [vmem:[%s3254] ss:$32 sm:$0x2]
    %v3257 = vor.u32 %v3255, %v3256
    %s3258 = scalar_lea.vmem [#allocation3], 11
    %v3259 = vld [vmem:[%s3258] ss:$32 sm:$0x1]
    %v3260 = vld [vmem:[%s3258] ss:$32 sm:$0x2]
    %v3261 = vor.u32 %v3259, %v3260
    %v3262 = vmax.f32 %v3257, %v3261
    %s3263 = scalar_lea.vmem [#allocation7], 160
    %v3264 = vld [vmem:[%s3263] sm:$0xff]
    %v3265 = vld [vmem:[%s3263 + $0x8] sm:$0xff]
    %v3266 = vld [vmem:[%s3263 + $0x10] sm:$0xff]
    %v3267 = vld [vmem:[%s3263 + $0x18] sm:$0xff]
    %v3269 = vsel %vm2193, %v3262, 0
    %3271 = vmatprep.subr.mxu0 0.0
    %3272 = vmatpush1.msra.mxu0 %v3264
    %3273 = vmatprep.subr.mxu0 0.0
    %3274 = vmatpush1.msra.mxu0 %v3265
    %3275 = vmatprep.subr.mxu0 0.0
    %3276 = vmatpush1.msra.mxu0 %v3266
    %3277 = vmatprep.subr.mxu0 0.0
    %3278 = vmatpush1.msra.mxu0 %v3267
    %3279 = vmatprep.subr.mxu0 0.0
    %3280 = vmatpush1.msra.mxu0 0.0
    %3281 = vmatprep.subr.mxu0 0.0
    %3282 = vmatpush1.msra.mxu0 0.0
    %3283 = vmatprep.subr.mxu0 0.0
    %3284 = vmatpush1.msra.mxu0 0.0
    %3285 = vmatprep.subr.mxu0 0.0
    %3286 = vmatpush1.msra.mxu0 0.0
    %3287 = vmatprep.subr.mxu0 0.0
    %3288 = vmatpush1.msra.mxu0 0.0
    %3289 = vmatprep.subr.mxu0 0.0
    %3290 = vmatpush1.msra.mxu0 0.0
    %3291 = vmatprep.subr.mxu0 0.0
    %3292 = vmatpush1.msra.mxu0 0.0
    %3293 = vmatprep.subr.mxu0 0.0
    %3294 = vmatpush1.msra.mxu0 0.0
    %3295 = vmatprep.subr.mxu0 0.0
    %3296 = vmatpush1.msra.mxu0 0.0
    %3297 = vmatprep.subr.mxu0 0.0
    %3298 = vmatpush1.msra.mxu0 0.0
    %3299 = vmatprep.subr.mxu0 0.0
    %3300 = vmatpush1.msra.mxu0 0.0
    %3301 = vmatprep.subr.mxu0 0.0
    %3302 = vmatpush1.msra.mxu0 0.0
    %3303 = vmatprep.subr.mxu0 0.0
    %3304 = vmatpush1.msra.mxu0 0.0
    %3305 = vmatprep.subr.mxu0 0.0
    %3306 = vmatpush1.msra.mxu0 0.0
    %3307 = vmatprep.subr.mxu0 0.0
    %3308 = vmatpush1.msra.mxu0 0.0
    %3309 = vmatprep.subr.mxu0 0.0
    %3310 = vmatpush1.msra.mxu0 0.0
    %3311 = vmatprep.subr.mxu0 0.0
    %3312 = vmatpush1.msra.mxu0 0.0
    %3313 = vmatprep.subr.mxu0 0.0
    %3314 = vmatpush1.msra.mxu0 0.0
    %3315 = vmatprep.subr.mxu0 0.0
    %3316 = vmatpush1.msra.mxu0 0.0
    %3317 = vmatprep.subr.mxu0 0.0
    %3318 = vmatpush1.msra.mxu0 0.0
    %3319 = vmatprep.subr.mxu0 0.0
    %3320 = vmatpush1.msra.mxu0 0.0
    %3321 = vmatprep.subr.mxu0 0.0
    %3322 = vmatpush1.msra.mxu0 0.0
    %3323 = vmatprep.subr.mxu0 0.0
    %3324 = vmatpush1.msra.mxu0 0.0
    %3325 = vmatprep.subr.mxu0 0.0
    %3326 = vmatpush1.msra.mxu0 0.0
    %3327 = vmatprep.subr.mxu0 0.0
    %3328 = vmatpush1.msra.mxu0 0.0
    %3329 = vmatprep.subr.mxu0 0.0
    %3330 = vmatpush1.msra.mxu0 0.0
    %3331 = vmatprep.subr.mxu0 0.0
    %3332 = vmatpush1.msra.mxu0 0.0
    %3333 = vmatprep.subr.mxu0 0.0
    %3334 = vmatpush1.msra.mxu0 0.0
    %3335 = vmatprep.mubr.f32.mxu0 0.0
    %3336 = vmatmul.mubr.f32.gmra.mrb[0].mxu0 %v3269
    %v3337 = vpop.f32.mrb[0].mxu0
    %v3338 = vadd.f32 0.0, %v3337
    %v3339 = vpop.f32.mrb[0].mxu0
    %3340 = vdwg.mxu0
    %v3341 = vadd.f32 %v3253, %v3338
    %s3342 = scalar_lea.vmem [#allocation3], 12
    %v3343 = vld [vmem:[%s3342] ss:$32 sm:$0x1]
    %v3344 = vld [vmem:[%s3342] ss:$32 sm:$0x2]
    %v3345 = vor.u32 %v3343, %v3344
    %s3346 = scalar_lea.vmem [#allocation3], 13
    %v3347 = vld [vmem:[%s3346] ss:$32 sm:$0x1]
    %v3348 = vld [vmem:[%s3346] ss:$32 sm:$0x2]
    %v3349 = vor.u32 %v3347, %v3348
    %v3350 = vmax.f32 %v3345, %v3349
    %s3351 = scalar_lea.vmem [#allocation7], 192
    %v3352 = vld [vmem:[%s3351] sm:$0xff]
    %v3353 = vld [vmem:[%s3351 + $0x8] sm:$0xff]
    %v3354 = vld [vmem:[%s3351 + $0x10] sm:$0xff]
    %v3355 = vld [vmem:[%s3351 + $0x18] sm:$0xff]
    %v3357 = vsel %vm2193, %v3350, 0
    %3359 = vmatprep.subr.mxu0 0.0
    %3360 = vmatpush1.msra.mxu0 %v3352
    %3361 = vmatprep.subr.mxu0 0.0
    %3362 = vmatpush1.msra.mxu0 %v3353
    %3363 = vmatprep.subr.mxu0 0.0
    %3364 = vmatpush1.msra.mxu0 %v3354
    %3365 = vmatprep.subr.mxu0 0.0
    %3366 = vmatpush1.msra.mxu0 %v3355
    %3367 = vmatprep.subr.mxu0 0.0
    %3368 = vmatpush1.msra.mxu0 0.0
    %3369 = vmatprep.subr.mxu0 0.0
    %3370 = vmatpush1.msra.mxu0 0.0
    %3371 = vmatprep.subr.mxu0 0.0
    %3372 = vmatpush1.msra.mxu0 0.0
    %3373 = vmatprep.subr.mxu0 0.0
    %3374 = vmatpush1.msra.mxu0 0.0
    %3375 = vmatprep.subr.mxu0 0.0
    %3376 = vmatpush1.msra.mxu0 0.0
    %3377 = vmatprep.subr.mxu0 0.0
    %3378 = vmatpush1.msra.mxu0 0.0
    %3379 = vmatprep.subr.mxu0 0.0
    %3380 = vmatpush1.msra.mxu0 0.0
    %3381 = vmatprep.subr.mxu0 0.0
    %3382 = vmatpush1.msra.mxu0 0.0
    %3383 = vmatprep.subr.mxu0 0.0
    %3384 = vmatpush1.msra.mxu0 0.0
    %3385 = vmatprep.subr.mxu0 0.0
    %3386 = vmatpush1.msra.mxu0 0.0
    %3387 = vmatprep.subr.mxu0 0.0
    %3388 = vmatpush1.msra.mxu0 0.0
    %3389 = vmatprep.subr.mxu0 0.0
    %3390 = vmatpush1.msra.mxu0 0.0
    %3391 = vmatprep.subr.mxu0 0.0
    %3392 = vmatpush1.msra.mxu0 0.0
    %3393 = vmatprep.subr.mxu0 0.0
    %3394 = vmatpush1.msra.mxu0 0.0
    %3395 = vmatprep.subr.mxu0 0.0
    %3396 = vmatpush1.msra.mxu0 0.0
    %3397 = vmatprep.subr.mxu0 0.0
    %3398 = vmatpush1.msra.mxu0 0.0
    %3399 = vmatprep.subr.mxu0 0.0
    %3400 = vmatpush1.msra.mxu0 0.0
    %3401 = vmatprep.subr.mxu0 0.0
    %3402 = vmatpush1.msra.mxu0 0.0
    %3403 = vmatprep.subr.mxu0 0.0
    %3404 = vmatpush1.msra.mxu0 0.0
    %3405 = vmatprep.subr.mxu0 0.0
    %3406 = vmatpush1.msra.mxu0 0.0
    %3407 = vmatprep.subr.mxu0 0.0
    %3408 = vmatpush1.msra.mxu0 0.0
    %3409 = vmatprep.subr.mxu0 0.0
    %3410 = vmatpush1.msra.mxu0 0.0
    %3411 = vmatprep.subr.mxu0 0.0
    %3412 = vmatpush1.msra.mxu0 0.0
    %3413 = vmatprep.subr.mxu0 0.0
    %3414 = vmatpush1.msra.mxu0 0.0
    %3415 = vmatprep.subr.mxu0 0.0
    %3416 = vmatpush1.msra.mxu0 0.0
    %3417 = vmatprep.subr.mxu0 0.0
    %3418 = vmatpush1.msra.mxu0 0.0
    %3419 = vmatprep.subr.mxu0 0.0
    %3420 = vmatpush1.msra.mxu0 0.0
    %3421 = vmatprep.subr.mxu0 0.0
    %3422 = vmatpush1.msra.mxu0 0.0
    %3423 = vmatprep.mubr.f32.mxu0 0.0
    %3424 = vmatmul.mubr.f32.gmra.mrb[0].mxu0 %v3357
    %v3425 = vpop.f32.mrb[0].mxu0
    %v3426 = vadd.f32 0.0, %v3425
    %v3427 = vpop.f32.mrb[0].mxu0
    %3428 = vdwg.mxu0
    %v3429 = vadd.f32 %v3341, %v3426
    %s3430 = scalar_lea.vmem [#allocation3], 14
    %v3431 = vld [vmem:[%s3430] ss:$32 sm:$0x1]
    %v3432 = vld [vmem:[%s3430] ss:$32 sm:$0x2]
    %v3433 = vor.u32 %v3431, %v3432
    %s3434 = scalar_lea.vmem [#allocation3], 15
    %v3435 = vld [vmem:[%s3434] ss:$32 sm:$0x1]
    %v3436 = vld [vmem:[%s3434] ss:$32 sm:$0x2]
    %v3437 = vor.u32 %v3435, %v3436
    %v3438 = vmax.f32 %v3433, %v3437
    %s3439 = scalar_lea.vmem [#allocation7], 224
    %v3440 = vld [vmem:[%s3439] sm:$0xff]
    %v3441 = vld [vmem:[%s3439 + $0x8] sm:$0xff]
    %v3442 = vld [vmem:[%s3439 + $0x10] sm:$0xff]
    %v3443 = vld [vmem:[%s3439 + $0x18] sm:$0xff]
    %v3445 = vsel %vm2193, %v3438, 0
    %3447 = vmatprep.subr.mxu0 0.0
    %3448 = vmatpush1.msra.mxu0 %v3440
    %3449 = vmatprep.subr.mxu0 0.0
    %3450 = vmatpush1.msra.mxu0 %v3441
    %3451 = vmatprep.subr.mxu0 0.0
    %3452 = vmatpush1.msra.mxu0 %v3442
    %3453 = vmatprep.subr.mxu0 0.0
    %3454 = vmatpush1.msra.mxu0 %v3443
    %3455 = vmatprep.subr.mxu0 0.0
    %3456 = vmatpush1.msra.mxu0 0.0
    %3457 = vmatprep.subr.mxu0 0.0
    %3458 = vmatpush1.msra.mxu0 0.0
    %3459 = vmatprep.subr.mxu0 0.0
    %3460 = vmatpush1.msra.mxu0 0.0
    %3461 = vmatprep.subr.mxu0 0.0
    %3462 = vmatpush1.msra.mxu0 0.0
    %3463 = vmatprep.subr.mxu0 0.0
    %3464 = vmatpush1.msra.mxu0 0.0
    %3465 = vmatprep.subr.mxu0 0.0
    %3466 = vmatpush1.msra.mxu0 0.0
    %3467 = vmatprep.subr.mxu0 0.0
    %3468 = vmatpush1.msra.mxu0 0.0
    %3469 = vmatprep.subr.mxu0 0.0
    %3470 = vmatpush1.msra.mxu0 0.0
    %3471 = vmatprep.subr.mxu0 0.0
    %3472 = vmatpush1.msra.mxu0 0.0
    %3473 = vmatprep.subr.mxu0 0.0
    %3474 = vmatpush1.msra.mxu0 0.0
    %3475 = vmatprep.subr.mxu0 0.0
    %3476 = vmatpush1.msra.mxu0 0.0
    %3477 = vmatprep.subr.mxu0 0.0
    %3478 = vmatpush1.msra.mxu0 0.0
    %3479 = vmatprep.subr.mxu0 0.0
    %3480 = vmatpush1.msra.mxu0 0.0
    %3481 = vmatprep.subr.mxu0 0.0
    %3482 = vmatpush1.msra.mxu0 0.0
    %3483 = vmatprep.subr.mxu0 0.0
    %3484 = vmatpush1.msra.mxu0 0.0
    %3485 = vmatprep.subr.mxu0 0.0
    %3486 = vmatpush1.msra.mxu0 0.0
    %3487 = vmatprep.subr.mxu0 0.0
    %3488 = vmatpush1.msra.mxu0 0.0
    %3489 = vmatprep.subr.mxu0 0.0
    %3490 = vmatpush1.msra.mxu0 0.0
    %3491 = vmatprep.subr.mxu0 0.0
    %3492 = vmatpush1.msra.mxu0 0.0
    %3493 = vmatprep.subr.mxu0 0.0
    %3494 = vmatpush1.msra.mxu0 0.0
    %3495 = vmatprep.subr.mxu0 0.0
    %3496 = vmatpush1.msra.mxu0 0.0
    %3497 = vmatprep.subr.mxu0 0.0
    %3498 = vmatpush1.msra.mxu0 0.0
    %3499 = vmatprep.subr.mxu0 0.0
    %3500 = vmatpush1.msra.mxu0 0.0
    %3501 = vmatprep.subr.mxu0 0.0
    %3502 = vmatpush1.msra.mxu0 0.0
    %3503 = vmatprep.subr.mxu0 0.0
    %3504 = vmatpush1.msra.mxu0 0.0
    %3505 = vmatprep.subr.mxu0 0.0
    %3506 = vmatpush1.msra.mxu0 0.0
    %3507 = vmatprep.subr.mxu0 0.0
    %3508 = vmatpush1.msra.mxu0 0.0
    %3509 = vmatprep.subr.mxu0 0.0
    %3510 = vmatpush1.msra.mxu0 0.0
    %3511 = vmatprep.mubr.f32.mxu0 0.0
    %3512 = vmatmul.mubr.f32.gmra.mrb[0].mxu0 %v3445
    %v3513 = vpop.f32.mrb[0].mxu0
    %v3514 = vadd.f32 0.0, %v3513
    %v3515 = vpop.f32.mrb[0].mxu0
    %3516 = vdwg.mxu0
    %v3517 = vadd.f32 %v3429, %v3514
    %s3518 = scalar_lea.vmem [#allocation3], 16
    %v3519 = vld [vmem:[%s3518] ss:$32 sm:$0x1]
    %v3520 = vld [vmem:[%s3518] ss:$32 sm:$0x2]
    %v3521 = vor.u32 %v3519, %v3520
    %s3522 = scalar_lea.vmem [#allocation3], 17
    %v3523 = vld [vmem:[%s3522] ss:$32 sm:$0x1]
    %v3524 = vld [vmem:[%s3522] ss:$32 sm:$0x2]
    %v3525 = vor.u32 %v3523, %v3524
    %v3526 = vmax.f32 %v3521, %v3525
    %s3527 = scalar_lea.vmem [#allocation7], 256
    %v3528 = vld [vmem:[%s3527] sm:$0xff]
    %v3529 = vld [vmem:[%s3527 + $0x8] sm:$0xff]
    %v3530 = vld [vmem:[%s3527 + $0x10] sm:$0xff]
    %v3531 = vld [vmem:[%s3527 + $0x18] sm:$0xff]
    %v3533 = vsel %vm2193, %v3526, 0
    %3535 = vmatprep.subr.mxu0 0.0
    %3536 = vmatpush1.msra.mxu0 %v3528
    %3537 = vmatprep.subr.mxu0 0.0
    %3538 = vmatpush1.msra.mxu0 %v3529
    %3539 = vmatprep.subr.mxu0 0.0
    %3540 = vmatpush1.msra.mxu0 %v3530
    %3541 = vmatprep.subr.mxu0 0.0
    %3542 = vmatpush1.msra.mxu0 %v3531
    %3543 = vmatprep.subr.mxu0 0.0
    %3544 = vmatpush1.msra.mxu0 0.0
    %3545 = vmatprep.subr.mxu0 0.0
    %3546 = vmatpush1.msra.mxu0 0.0
    %3547 = vmatprep.subr.mxu0 0.0
    %3548 = vmatpush1.msra.mxu0 0.0
    %3549 = vmatprep.subr.mxu0 0.0
    %3550 = vmatpush1.msra.mxu0 0.0
    %3551 = vmatprep.subr.mxu0 0.0
    %3552 = vmatpush1.msra.mxu0 0.0
    %3553 = vmatprep.subr.mxu0 0.0
    %3554 = vmatpush1.msra.mxu0 0.0
    %3555 = vmatprep.subr.mxu0 0.0
    %3556 = vmatpush1.msra.mxu0 0.0
    %3557 = vmatprep.subr.mxu0 0.0
    %3558 = vmatpush1.msra.mxu0 0.0
    %3559 = vmatprep.subr.mxu0 0.0
    %3560 = vmatpush1.msra.mxu0 0.0
    %3561 = vmatprep.subr.mxu0 0.0
    %3562 = vmatpush1.msra.mxu0 0.0
    %3563 = vmatprep.subr.mxu0 0.0
    %3564 = vmatpush1.msra.mxu0 0.0
    %3565 = vmatprep.subr.mxu0 0.0
    %3566 = vmatpush1.msra.mxu0 0.0
    %3567 = vmatprep.subr.mxu0 0.0
    %3568 = vmatpush1.msra.mxu0 0.0
    %3569 = vmatprep.subr.mxu0 0.0
    %3570 = vmatpush1.msra.mxu0 0.0
    %3571 = vmatprep.subr.mxu0 0.0
    %3572 = vmatpush1.msra.mxu0 0.0
    %3573 = vmatprep.subr.mxu0 0.0
    %3574 = vmatpush1.msra.mxu0 0.0
    %3575 = vmatprep.subr.mxu0 0.0
    %3576 = vmatpush1.msra.mxu0 0.0
    %3577 = vmatprep.subr.mxu0 0.0
    %3578 = vmatpush1.msra.mxu0 0.0
    %3579 = vmatprep.subr.mxu0 0.0
    %3580 = vmatpush1.msra.mxu0 0.0
    %3581 = vmatprep.subr.mxu0 0.0
    %3582 = vmatpush1.msra.mxu0 0.0
    %3583 = vmatprep.subr.mxu0 0.0
    %3584 = vmatpush1.msra.mxu0 0.0
    %3585 = vmatprep.subr.mxu0 0.0
    %3586 = vmatpush1.msra.mxu0 0.0
    %3587 = vmatprep.subr.mxu0 0.0
    %3588 = vmatpush1.msra.mxu0 0.0
    %3589 = vmatprep.subr.mxu0 0.0
    %3590 = vmatpush1.msra.mxu0 0.0
    %3591 = vmatprep.subr.mxu0 0.0
    %3592 = vmatpush1.msra.mxu0 0.0
    %3593 = vmatprep.subr.mxu0 0.0
    %3594 = vmatpush1.msra.mxu0 0.0
    %3595 = vmatprep.subr.mxu0 0.0
    %3596 = vmatpush1.msra.mxu0 0.0
    %3597 = vmatprep.subr.mxu0 0.0
    %3598 = vmatpush1.msra.mxu0 0.0
    %3599 = vmatprep.mubr.f32.mxu0 0.0
    %3600 = vmatmul.mubr.f32.gmra.mrb[0].mxu0 %v3533
    %v3601 = vpop.f32.mrb[0].mxu0
    %v3602 = vadd.f32 0.0, %v3601
    %v3603 = vpop.f32.mrb[0].mxu0
    %3604 = vdwg.mxu0
    %v3605 = vadd.f32 %v3517, %v3602
    %s3606 = scalar_lea.vmem [#allocation3], 18
    %v3607 = vld [vmem:[%s3606] ss:$32 sm:$0x1]
    %v3608 = vld [vmem:[%s3606] ss:$32 sm:$0x2]
    %v3609 = vor.u32 %v3607, %v3608
    %s3610 = scalar_lea.vmem [#allocation3], 19
    %v3611 = vld [vmem:[%s3610] ss:$32 sm:$0x1]
    %v3612 = vld [vmem:[%s3610] ss:$32 sm:$0x2]
    %v3613 = vor.u32 %v3611, %v3612
    %v3614 = vmax.f32 %v3609, %v3613
    %s3615 = scalar_lea.vmem [#allocation7], 288
    %v3616 = vld [vmem:[%s3615] sm:$0xff]
    %v3617 = vld [vmem:[%s3615 + $0x8] sm:$0xff]
    %v3618 = vld [vmem:[%s3615 + $0x10] sm:$0xff]
    %v3619 = vld [vmem:[%s3615 + $0x18] sm:$0xff]
    %v3621 = vsel %vm2193, %v3614, 0
    %3623 = vmatprep.subr.mxu0 0.0
    %3624 = vmatpush1.msra.mxu0 %v3616
    %3625 = vmatprep.subr.mxu0 0.0
    %3626 = vmatpush1.msra.mxu0 %v3617
    %3627 = vmatprep.subr.mxu0 0.0
    %3628 = vmatpush1.msra.mxu0 %v3618
    %3629 = vmatprep.subr.mxu0 0.0
    %3630 = vmatpush1.msra.mxu0 %v3619
    %3631 = vmatprep.subr.mxu0 0.0
    %3632 = vmatpush1.msra.mxu0 0.0
    %3633 = vmatprep.subr.mxu0 0.0
    %3634 = vmatpush1.msra.mxu0 0.0
    %3635 = vmatprep.subr.mxu0 0.0
    %3636 = vmatpush1.msra.mxu0 0.0
    %3637 = vmatprep.subr.mxu0 0.0
    %3638 = vmatpush1.msra.mxu0 0.0
    %3639 = vmatprep.subr.mxu0 0.0
    %3640 = vmatpush1.msra.mxu0 0.0
    %3641 = vmatprep.subr.mxu0 0.0
    %3642 = vmatpush1.msra.mxu0 0.0
    %3643 = vmatprep.subr.mxu0 0.0
    %3644 = vmatpush1.msra.mxu0 0.0
    %3645 = vmatprep.subr.mxu0 0.0
    %3646 = vmatpush1.msra.mxu0 0.0
    %3647 = vmatprep.subr.mxu0 0.0
    %3648 = vmatpush1.msra.mxu0 0.0
    %3649 = vmatprep.subr.mxu0 0.0
    %3650 = vmatpush1.msra.mxu0 0.0
    %3651 = vmatprep.subr.mxu0 0.0
    %3652 = vmatpush1.msra.mxu0 0.0
    %3653 = vmatprep.subr.mxu0 0.0
    %3654 = vmatpush1.msra.mxu0 0.0
    %3655 = vmatprep.subr.mxu0 0.0
    %3656 = vmatpush1.msra.mxu0 0.0
    %3657 = vmatprep.subr.mxu0 0.0
    %3658 = vmatpush1.msra.mxu0 0.0
    %3659 = vmatprep.subr.mxu0 0.0
    %3660 = vmatpush1.msra.mxu0 0.0
    %3661 = vmatprep.subr.mxu0 0.0
    %3662 = vmatpush1.msra.mxu0 0.0
    %3663 = vmatprep.subr.mxu0 0.0
    %3664 = vmatpush1.msra.mxu0 0.0
    %3665 = vmatprep.subr.mxu0 0.0
    %3666 = vmatpush1.msra.mxu0 0.0
    %3667 = vmatprep.subr.mxu0 0.0
    %3668 = vmatpush1.msra.mxu0 0.0
    %3669 = vmatprep.subr.mxu0 0.0
    %3670 = vmatpush1.msra.mxu0 0.0
    %3671 = vmatprep.subr.mxu0 0.0
    %3672 = vmatpush1.msra.mxu0 0.0
    %3673 = vmatprep.subr.mxu0 0.0
    %3674 = vmatpush1.msra.mxu0 0.0
    %3675 = vmatprep.subr.mxu0 0.0
    %3676 = vmatpush1.msra.mxu0 0.0
    %3677 = vmatprep.subr.mxu0 0.0
    %3678 = vmatpush1.msra.mxu0 0.0
    %3679 = vmatprep.subr.mxu0 0.0
    %3680 = vmatpush1.msra.mxu0 0.0
    %3681 = vmatprep.subr.mxu0 0.0
    %3682 = vmatpush1.msra.mxu0 0.0
    %3683 = vmatprep.subr.mxu0 0.0
    %3684 = vmatpush1.msra.mxu0 0.0
    %3685 = vmatprep.subr.mxu0 0.0
    %3686 = vmatpush1.msra.mxu0 0.0
    %3687 = vmatprep.mubr.f32.mxu0 0.0
    %3688 = vmatmul.mubr.f32.gmra.mrb[0].mxu0 %v3621
    %v3689 = vpop.f32.mrb[0].mxu0
    %v3690 = vadd.f32 0.0, %v3689
    %v3691 = vpop.f32.mrb[0].mxu0
    %3692 = vdwg.mxu0
    %v3693 = vadd.f32 %v3605, %v3690
    %s3694 = scalar_lea.vmem [#allocation3], 20
    %v3695 = vld [vmem:[%s3694] ss:$32 sm:$0x1]
    %v3696 = vld [vmem:[%s3694] ss:$32 sm:$0x2]
    %v3697 = vor.u32 %v3695, %v3696
    %s3698 = scalar_lea.vmem [#allocation3], 21
    %v3699 = vld [vmem:[%s3698] ss:$32 sm:$0x1]
    %v3700 = vld [vmem:[%s3698] ss:$32 sm:$0x2]
    %v3701 = vor.u32 %v3699, %v3700
    %v3702 = vmax.f32 %v3697, %v3701
    %s3703 = scalar_lea.vmem [#allocation7], 320
    %v3704 = vld [vmem:[%s3703] sm:$0xff]
    %v3705 = vld [vmem:[%s3703 + $0x8] sm:$0xff]
    %v3706 = vld [vmem:[%s3703 + $0x10] sm:$0xff]
    %v3707 = vld [vmem:[%s3703 + $0x18] sm:$0xff]
    %v3709 = vsel %vm2193, %v3702, 0
    %3711 = vmatprep.subr.mxu0 0.0
    %3712 = vmatpush1.msra.mxu0 %v3704
    %3713 = vmatprep.subr.mxu0 0.0
    %3714 = vmatpush1.msra.mxu0 %v3705
    %3715 = vmatprep.subr.mxu0 0.0
    %3716 = vmatpush1.msra.mxu0 %v3706
    %3717 = vmatprep.subr.mxu0 0.0
    %3718 = vmatpush1.msra.mxu0 %v3707
    %3719 = vmatprep.subr.mxu0 0.0
    %3720 = vmatpush1.msra.mxu0 0.0
    %3721 = vmatprep.subr.mxu0 0.0
    %3722 = vmatpush1.msra.mxu0 0.0
    %3723 = vmatprep.subr.mxu0 0.0
    %3724 = vmatpush1.msra.mxu0 0.0
    %3725 = vmatprep.subr.mxu0 0.0
    %3726 = vmatpush1.msra.mxu0 0.0
    %3727 = vmatprep.subr.mxu0 0.0
    %3728 = vmatpush1.msra.mxu0 0.0
    %3729 = vmatprep.subr.mxu0 0.0
    %3730 = vmatpush1.msra.mxu0 0.0
    %3731 = vmatprep.subr.mxu0 0.0
    %3732 = vmatpush1.msra.mxu0 0.0
    %3733 = vmatprep.subr.mxu0 0.0
    %3734 = vmatpush1.msra.mxu0 0.0
    %3735 = vmatprep.subr.mxu0 0.0
    %3736 = vmatpush1.msra.mxu0 0.0
    %3737 = vmatprep.subr.mxu0 0.0
    %3738 = vmatpush1.msra.mxu0 0.0
    %3739 = vmatprep.subr.mxu0 0.0
    %3740 = vmatpush1.msra.mxu0 0.0
    %3741 = vmatprep.subr.mxu0 0.0
    %3742 = vmatpush1.msra.mxu0 0.0
    %3743 = vmatprep.subr.mxu0 0.0
    %3744 = vmatpush1.msra.mxu0 0.0
    %3745 = vmatprep.subr.mxu0 0.0
    %3746 = vmatpush1.msra.mxu0 0.0
    %3747 = vmatprep.subr.mxu0 0.0
    %3748 = vmatpush1.msra.mxu0 0.0
    %3749 = vmatprep.subr.mxu0 0.0
    %3750 = vmatpush1.msra.mxu0 0.0
    %3751 = vmatprep.subr.mxu0 0.0
    %3752 = vmatpush1.msra.mxu0 0.0
    %3753 = vmatprep.subr.mxu0 0.0
    %3754 = vmatpush1.msra.mxu0 0.0
    %3755 = vmatprep.subr.mxu0 0.0
    %3756 = vmatpush1.msra.mxu0 0.0
    %3757 = vmatprep.subr.mxu0 0.0
    %3758 = vmatpush1.msra.mxu0 0.0
    %3759 = vmatprep.subr.mxu0 0.0
    %3760 = vmatpush1.msra.mxu0 0.0
    %3761 = vmatprep.subr.mxu0 0.0
    %3762 = vmatpush1.msra.mxu0 0.0
    %3763 = vmatprep.subr.mxu0 0.0
    %3764 = vmatpush1.msra.mxu0 0.0
    %3765 = vmatprep.subr.mxu0 0.0
    %3766 = vmatpush1.msra.mxu0 0.0
    %3767 = vmatprep.subr.mxu0 0.0
    %3768 = vmatpush1.msra.mxu0 0.0
    %3769 = vmatprep.subr.mxu0 0.0
    %3770 = vmatpush1.msra.mxu0 0.0
    %3771 = vmatprep.subr.mxu0 0.0
    %3772 = vmatpush1.msra.mxu0 0.0
    %3773 = vmatprep.subr.mxu0 0.0
    %3774 = vmatpush1.msra.mxu0 0.0
    %3775 = vmatprep.mubr.f32.mxu0 0.0
    %3776 = vmatmul.mubr.f32.gmra.mrb[0].mxu0 %v3709
    %v3777 = vpop.f32.mrb[0].mxu0
    %v3778 = vadd.f32 0.0, %v3777
    %v3779 = vpop.f32.mrb[0].mxu0
    %3780 = vdwg.mxu0
    %v3781 = vadd.f32 %v3693, %v3778
    %s3782 = scalar_lea.vmem [#allocation3], 22
    %v3783 = vld [vmem:[%s3782] ss:$32 sm:$0x1]
    %v3784 = vld [vmem:[%s3782] ss:$32 sm:$0x2]
    %v3785 = vor.u32 %v3783, %v3784
    %s3786 = scalar_lea.vmem [#allocation3], 23
    %v3787 = vld [vmem:[%s3786] ss:$32 sm:$0x1]
    %v3788 = vld [vmem:[%s3786] ss:$32 sm:$0x2]
    %v3789 = vor.u32 %v3787, %v3788
    %v3790 = vmax.f32 %v3785, %v3789
    %s3791 = scalar_lea.vmem [#allocation7], 352
    %v3792 = vld [vmem:[%s3791] sm:$0xff]
    %v3793 = vld [vmem:[%s3791 + $0x8] sm:$0xff]
    %v3794 = vld [vmem:[%s3791 + $0x10] sm:$0xff]
    %v3795 = vld [vmem:[%s3791 + $0x18] sm:$0xff]
    %v3797 = vsel %vm2193, %v3790, 0
    %3799 = vmatprep.subr.mxu0 0.0
    %3800 = vmatpush1.msra.mxu0 %v3792
    %3801 = vmatprep.subr.mxu0 0.0
    %3802 = vmatpush1.msra.mxu0 %v3793
    %3803 = vmatprep.subr.mxu0 0.0
    %3804 = vmatpush1.msra.mxu0 %v3794
    %3805 = vmatprep.subr.mxu0 0.0
    %3806 = vmatpush1.msra.mxu0 %v3795
    %3807 = vmatprep.subr.mxu0 0.0
    %3808 = vmatpush1.msra.mxu0 0.0
    %3809 = vmatprep.subr.mxu0 0.0
    %3810 = vmatpush1.msra.mxu0 0.0
    %3811 = vmatprep.subr.mxu0 0.0
    %3812 = vmatpush1.msra.mxu0 0.0
    %3813 = vmatprep.subr.mxu0 0.0
    %3814 = vmatpush1.msra.mxu0 0.0
    %3815 = vmatprep.subr.mxu0 0.0
    %3816 = vmatpush1.msra.mxu0 0.0
    %3817 = vmatprep.subr.mxu0 0.0
    %3818 = vmatpush1.msra.mxu0 0.0
    %3819 = vmatprep.subr.mxu0 0.0
    %3820 = vmatpush1.msra.mxu0 0.0
    %3821 = vmatprep.subr.mxu0 0.0
    %3822 = vmatpush1.msra.mxu0 0.0
    %3823 = vmatprep.subr.mxu0 0.0
    %3824 = vmatpush1.msra.mxu0 0.0
    %3825 = vmatprep.subr.mxu0 0.0
    %3826 = vmatpush1.msra.mxu0 0.0
    %3827 = vmatprep.subr.mxu0 0.0
    %3828 = vmatpush1.msra.mxu0 0.0
    %3829 = vmatprep.subr.mxu0 0.0
    %3830 = vmatpush1.msra.mxu0 0.0
    %3831 = vmatprep.subr.mxu0 0.0
    %3832 = vmatpush1.msra.mxu0 0.0
    %3833 = vmatprep.subr.mxu0 0.0
    %3834 = vmatpush1.msra.mxu0 0.0
    %3835 = vmatprep.subr.mxu0 0.0
    %3836 = vmatpush1.msra.mxu0 0.0
    %3837 = vmatprep.subr.mxu0 0.0
    %3838 = vmatpush1.msra.mxu0 0.0
    %3839 = vmatprep.subr.mxu0 0.0
    %3840 = vmatpush1.msra.mxu0 0.0
    %3841 = vmatprep.subr.mxu0 0.0
    %3842 = vmatpush1.msra.mxu0 0.0
    %3843 = vmatprep.subr.mxu0 0.0
    %3844 = vmatpush1.msra.mxu0 0.0
    %3845 = vmatprep.subr.mxu0 0.0
    %3846 = vmatpush1.msra.mxu0 0.0
    %3847 = vmatprep.subr.mxu0 0.0
    %3848 = vmatpush1.msra.mxu0 0.0
    %3849 = vmatprep.subr.mxu0 0.0
    %3850 = vmatpush1.msra.mxu0 0.0
    %3851 = vmatprep.subr.mxu0 0.0
    %3852 = vmatpush1.msra.mxu0 0.0
    %3853 = vmatprep.subr.mxu0 0.0
    %3854 = vmatpush1.msra.mxu0 0.0
    %3855 = vmatprep.subr.mxu0 0.0
    %3856 = vmatpush1.msra.mxu0 0.0
    %3857 = vmatprep.subr.mxu0 0.0
    %3858 = vmatpush1.msra.mxu0 0.0
    %3859 = vmatprep.subr.mxu0 0.0
    %3860 = vmatpush1.msra.mxu0 0.0
    %3861 = vmatprep.subr.mxu0 0.0
    %3862 = vmatpush1.msra.mxu0 0.0
    %3863 = vmatprep.mubr.f32.mxu0 0.0
    %3864 = vmatmul.mubr.f32.gmra.mrb[0].mxu0 %v3797
    %v3865 = vpop.f32.mrb[0].mxu0
    %v3866 = vadd.f32 0.0, %v3865
    %v3867 = vpop.f32.mrb[0].mxu0
    %3868 = vdwg.mxu0
    %v3869 = vadd.f32 %v3781, %v3866
    %s3870 = scalar_lea.vmem [#allocation3], 24
    %v3871 = vld [vmem:[%s3870] ss:$32 sm:$0x1]
    %v3872 = vld [vmem:[%s3870] ss:$32 sm:$0x2]
    %v3873 = vor.u32 %v3871, %v3872
    %s3874 = scalar_lea.vmem [#allocation3], 25
    %v3875 = vld [vmem:[%s3874] ss:$32 sm:$0x1]
    %v3876 = vld [vmem:[%s3874] ss:$32 sm:$0x2]
    %v3877 = vor.u32 %v3875, %v3876
    %v3878 = vmax.f32 %v3873, %v3877
    %s3879 = scalar_lea.vmem [#allocation7], 384
    %v3880 = vld [vmem:[%s3879] sm:$0xff]
    %v3881 = vld [vmem:[%s3879 + $0x8] sm:$0xff]
    %v3882 = vld [vmem:[%s3879 + $0x10] sm:$0xff]
    %v3883 = vld [vmem:[%s3879 + $0x18] sm:$0xff]
    %v3885 = vsel %vm2193, %v3878, 0
    %3887 = vmatprep.subr.mxu0 0.0
    %3888 = vmatpush1.msra.mxu0 %v3880
    %3889 = vmatprep.subr.mxu0 0.0
    %3890 = vmatpush1.msra.mxu0 %v3881
    %3891 = vmatprep.subr.mxu0 0.0
    %3892 = vmatpush1.msra.mxu0 %v3882
    %3893 = vmatprep.subr.mxu0 0.0
    %3894 = vmatpush1.msra.mxu0 %v3883
    %3895 = vmatprep.subr.mxu0 0.0
    %3896 = vmatpush1.msra.mxu0 0.0
    %3897 = vmatprep.subr.mxu0 0.0
    %3898 = vmatpush1.msra.mxu0 0.0
    %3899 = vmatprep.subr.mxu0 0.0
    %3900 = vmatpush1.msra.mxu0 0.0
    %3901 = vmatprep.subr.mxu0 0.0
    %3902 = vmatpush1.msra.mxu0 0.0
    %3903 = vmatprep.subr.mxu0 0.0
    %3904 = vmatpush1.msra.mxu0 0.0
    %3905 = vmatprep.subr.mxu0 0.0
    %3906 = vmatpush1.msra.mxu0 0.0
    %3907 = vmatprep.subr.mxu0 0.0
    %3908 = vmatpush1.msra.mxu0 0.0
    %3909 = vmatprep.subr.mxu0 0.0
    %3910 = vmatpush1.msra.mxu0 0.0
    %3911 = vmatprep.subr.mxu0 0.0
    %3912 = vmatpush1.msra.mxu0 0.0
    %3913 = vmatprep.subr.mxu0 0.0
    %3914 = vmatpush1.msra.mxu0 0.0
    %3915 = vmatprep.subr.mxu0 0.0
    %3916 = vmatpush1.msra.mxu0 0.0
    %3917 = vmatprep.subr.mxu0 0.0
    %3918 = vmatpush1.msra.mxu0 0.0
    %3919 = vmatprep.subr.mxu0 0.0
    %3920 = vmatpush1.msra.mxu0 0.0
    %3921 = vmatprep.subr.mxu0 0.0
    %3922 = vmatpush1.msra.mxu0 0.0
    %3923 = vmatprep.subr.mxu0 0.0
    %3924 = vmatpush1.msra.mxu0 0.0
    %3925 = vmatprep.subr.mxu0 0.0
    %3926 = vmatpush1.msra.mxu0 0.0
    %3927 = vmatprep.subr.mxu0 0.0
    %3928 = vmatpush1.msra.mxu0 0.0
    %3929 = vmatprep.subr.mxu0 0.0
    %3930 = vmatpush1.msra.mxu0 0.0
    %3931 = vmatprep.subr.mxu0 0.0
    %3932 = vmatpush1.msra.mxu0 0.0
    %3933 = vmatprep.subr.mxu0 0.0
    %3934 = vmatpush1.msra.mxu0 0.0
    %3935 = vmatprep.subr.mxu0 0.0
    %3936 = vmatpush1.msra.mxu0 0.0
    %3937 = vmatprep.subr.mxu0 0.0
    %3938 = vmatpush1.msra.mxu0 0.0
    %3939 = vmatprep.subr.mxu0 0.0
    %3940 = vmatpush1.msra.mxu0 0.0
    %3941 = vmatprep.subr.mxu0 0.0
    %3942 = vmatpush1.msra.mxu0 0.0
    %3943 = vmatprep.subr.mxu0 0.0
    %3944 = vmatpush1.msra.mxu0 0.0
    %3945 = vmatprep.subr.mxu0 0.0
    %3946 = vmatpush1.msra.mxu0 0.0
    %3947 = vmatprep.subr.mxu0 0.0
    %3948 = vmatpush1.msra.mxu0 0.0
    %3949 = vmatprep.subr.mxu0 0.0
    %3950 = vmatpush1.msra.mxu0 0.0
    %3951 = vmatprep.mubr.f32.mxu0 0.0
    %3952 = vmatmul.mubr.f32.gmra.mrb[0].mxu0 %v3885
    %v3953 = vpop.f32.mrb[0].mxu0
    %v3954 = vadd.f32 0.0, %v3953
    %v3955 = vpop.f32.mrb[0].mxu0
    %3956 = vdwg.mxu0
    %v3957 = vadd.f32 %v3869, %v3954
    %v3958 = vlaneseq
    %v3959 = vshrl.u32 %v3958, 7
    %v3960 = vsub.s32 2, %v3959
    %v3961 = vrot.slane %v52, %v3960
    %v3962 = vadd.f32 %v3957, %v3961
    %v3963 = vmax.f32 %v3962, 0.0
    %v3964 = vld [vmem:[%s4] sm:$0xff]
    %v3965 = vld [vmem:[%s4 + $0x8] sm:$0xff]
    %v3966 = vld [vmem:[%s4 + $0x10] sm:$0xff]
    %v3967 = vld [vmem:[%s4 + $0x18] sm:$0xff]
    %v3968 = vld [vmem:[%s4 + $0x20] sm:$0xff]
    %v3969 = vld [vmem:[%s4 + $0x28] sm:$0xff]
    %v3970 = vld [vmem:[%s4 + $0x30] sm:$0xff]
    %v3971 = vld [vmem:[%s4 + $0x38] sm:$0xff]
    %v3972 = vld [vmem:[%s4 + $0x40] sm:$0xff]
    %v3973 = vld [vmem:[%s4 + $0x48] sm:$0xff]
    %v3974 = vld [vmem:[%s4 + $0x50] sm:$0xff]
    %v3975 = vld [vmem:[%s4 + $0x58] sm:$0xff]
    %v3976 = vld [vmem:[%s4 + $0x60] sm:$0xff]
    %v3977 = vld [vmem:[%s4 + $0x68] sm:$0xff]
    %v3978 = vld [vmem:[%s4 + $0x70] sm:$0xff]
    %v3979 = vld [vmem:[%s4 + $0x78] sm:$0xff]
    %v3980 = vlaneseq
    %v3981 = vshrl.u32 %v3980, 7
    %v3982 = vsub.s32 3, %v3981
    %v3983 = vrot.slane %v52, %v3982
    %3984 = vmatprep.subr.mxu0 0.0
    %3985 = vmatpush1.msra.mxu0 %v3964
    %3986 = vmatprep.subr.mxu0 0.0
    %3987 = vmatpush1.msra.mxu0 %v3965
    %3988 = vmatprep.subr.mxu0 0.0
    %3989 = vmatpush1.msra.mxu0 %v3966
    %3990 = vmatprep.subr.mxu0 0.0
    %3991 = vmatpush1.msra.mxu0 %v3967
    %3992 = vmatprep.subr.mxu0 0.0
    %3993 = vmatpush1.msra.mxu0 %v3968
    %3994 = vmatprep.subr.mxu0 0.0
    %3995 = vmatpush1.msra.mxu0 %v3969
    %3996 = vmatprep.subr.mxu0 0.0
    %3997 = vmatpush1.msra.mxu0 %v3970
    %3998 = vmatprep.subr.mxu0 0.0
    %3999 = vmatpush1.msra.mxu0 %v3971
    %4000 = vmatprep.subr.mxu0 0.0
    %4001 = vmatpush1.msra.mxu0 %v3972
    %4002 = vmatprep.subr.mxu0 0.0
    %4003 = vmatpush1.msra.mxu0 %v3973
    %4004 = vmatprep.subr.mxu0 0.0
    %4005 = vmatpush1.msra.mxu0 %v3974
    %4006 = vmatprep.subr.mxu0 0.0
    %4007 = vmatpush1.msra.mxu0 %v3975
    %4008 = vmatprep.subr.mxu0 0.0
    %4009 = vmatpush1.msra.mxu0 %v3976
    %4010 = vmatprep.subr.mxu0 0.0
    %4011 = vmatpush1.msra.mxu0 %v3977
    %4012 = vmatprep.subr.mxu0 0.0
    %4013 = vmatpush1.msra.mxu0 %v3978
    %4014 = vmatprep.subr.mxu0 0.0
    %4015 = vmatpush1.msra.mxu0 %v3979
    %4016 = vmatprep.subr.mxu0 0.0
    %4017 = vmatpush1.msra.mxu0 0.0
    %4018 = vmatprep.subr.mxu0 0.0
    %4019 = vmatpush1.msra.mxu0 0.0
    %4020 = vmatprep.subr.mxu0 0.0
    %4021 = vmatpush1.msra.mxu0 0.0
    %4022 = vmatprep.subr.mxu0 0.0
    %4023 = vmatpush1.msra.mxu0 0.0
    %4024 = vmatprep.subr.mxu0 0.0
    %4025 = vmatpush1.msra.mxu0 0.0
    %4026 = vmatprep.subr.mxu0 0.0
    %4027 = vmatpush1.msra.mxu0 0.0
    %4028 = vmatprep.subr.mxu0 0.0
    %4029 = vmatpush1.msra.mxu0 0.0
    %4030 = vmatprep.subr.mxu0 0.0
    %4031 = vmatpush1.msra.mxu0 0.0
    %4032 = vmatprep.subr.mxu0 0.0
    %4033 = vmatpush1.msra.mxu0 0.0
    %4034 = vmatprep.subr.mxu0 0.0
    %4035 = vmatpush1.msra.mxu0 0.0
    %4036 = vmatprep.subr.mxu0 0.0
    %4037 = vmatpush1.msra.mxu0 0.0
    %4038 = vmatprep.subr.mxu0 0.0
    %4039 = vmatpush1.msra.mxu0 0.0
    %4040 = vmatprep.subr.mxu0 0.0
    %4041 = vmatpush1.msra.mxu0 0.0
    %4042 = vmatprep.subr.mxu0 0.0
    %4043 = vmatpush1.msra.mxu0 0.0
    %4044 = vmatprep.subr.mxu0 0.0
    %4045 = vmatpush1.msra.mxu0 0.0
    %4046 = vmatprep.subr.mxu0 0.0
    %4047 = vmatpush1.msra.mxu0 0.0
    %4048 = vmatprep.mubr.f32.mxu0 0.0
    %4049 = vmatmul.mubr.f32.gmra.mrb[0].mxu0 %v3963
    %v4050 = vpop.f32.mrb[0].mxu0
    %v4051 = vadd.f32 %v3983, %v4050
    %v4052 = vpop.f32.mrb[0].mxu0
    %4053 = vdwg.mxu0
    %4054 = vst [vmem:[#allocation9] sm:$0x3] %v4051
    // Predicated region
    $region34: #{forward.1} parent=1 // pred_check
      _
    $region35: #{forward.1} parent=1 // pred_check_branch
      %4056 = sbr.rel (0) target = $region37
    $region36: #{forward.1} parent=1 // pred_region
      %s4058 = ssub.s32 32, 32
      %4059 = vsyncadd [#allocation6], %s4058
      %s4061 = sshll.u32 [#allocation9], 4
      %s4062 = int_to_ptr.vmem [resolvable:$true] %s4061
      %4064 = dma.vmem_to_hbm [thread:$0]  %s4062, 32, %s6, [#allocation6]
    $region37: #{forward.1} parent=1 // pred_fallthru
      _
    // Predicated region
    $region38: #{forward.1} parent=1 // pred_check
      _
    $region39: #{forward.1} parent=1 // pred_check_branch
      %4066 = sbr.rel (0) target = $region41
    $region40: #{forward.1} parent=1 // pred_region
      %4067 = dma.done [#allocation6], 32
    $region41: #{forward.1} parent=1 // pred_fallthru
      _
    %4068 = vsyncpa [#allocation5], 1
    %4069 = vsyncpa [#allocation8], 1
    %4070 = vsyncpa [#allocation6], 1

</llo_original>
